<compile_context>
chip_gen: v7x
topology: tpu7x:2x2x1
jax: 0.10.0
libtpu: 0.0.40
codegen_flags: <defaults>
</compile_context>

<pallas_src>
import functools
import math

import jax
import jax.numpy as jnp
from jax.experimental import pallas as pl
from jax.experimental.pallas import tpu as pltpu

_PARAM_ORDER = ("wq", "bq", "wk", "bk", "wv", "bv", "wo", "bo",
                "ln1_g", "ln1_b", "w1", "b1", "w2", "b2", "ln2_g", "ln2_b")


def _layer_norm(x, gamma, beta, eps):
    mu = jnp.mean(x, axis=-1, keepdims=True)
    var = jnp.mean((x - mu) * (x - mu), axis=-1, keepdims=True)
    return (x - mu) * jax.lax.rsqrt(var + eps) * gamma + beta


# ----------------------------- Pallas kernel ---------------------------------
def _encoder_layer_kernel(q_ref, k_ref, v_ref,
                          wq_ref, bq_ref, wk_ref, bk_ref, wv_ref, bv_ref,
                          wo_ref, bo_ref, ln1_g_ref, ln1_b_ref,
                          w1_ref, b1_ref, w2_ref, b2_ref,
                          ln2_g_ref, ln2_b_ref,
                          o_ref, *, eps):
    f32, bf16 = jnp.float32, jnp.bfloat16
    bt, nq, d_model = q_ref.shape
    nk = k_ref.shape[1]
    h = wq_ref.shape[0]

    # Flatten the batch tile: dense matmuls / LayerNorms see (bt*nq, d_model).
    q_res = q_ref[...].reshape(bt * nq, d_model).astype(f32)     # residual (f32)
    q_bf = q_res.astype(bf16)
    k_bf = k_ref[...].reshape(bt * nk, d_model).astype(bf16)
    v_bf = v_ref[...].reshape(bt * nk, d_model).astype(bf16)

    # --- Multi-head attention with the output projection fused per head. -----
    att = jnp.zeros((bt * nq, d_model), f32)
    for head in range(h):                            # h is static -> unrolled
        # Per-head projections; weights pre-split & pre-transposed [d_model,d_k];
        # 1/sqrt(d_k) already folded into wq/bq at init.
        qh = jnp.dot(q_bf, wq_ref[head], preferred_element_type=f32) + bq_ref[head]
        kh = jnp.dot(k_bf, wk_ref[head], preferred_element_type=f32) + bk_ref[head]
        vh = jnp.dot(v_bf, wv_ref[head], preferred_element_type=f32) + bv_ref[head]

        qh3 = qh.reshape(bt, nq, qh.shape[-1]).astype(bf16)
        kh3 = kh.reshape(bt, nk, kh.shape[-1]).astype(bf16)
        vh3 = vh.reshape(bt, nk, vh.shape[-1]).astype(bf16)

        # Scores / softmax / PV stay per batch element (batched einsum).
        s = jnp.einsum("bqd,bkd->bqk", qh3, kh3, preferred_element_type=f32)
        s = s - jnp.max(s, axis=-1, keepdims=True)
        e = jnp.exp(s)
        p = e * pl.reciprocal(jnp.sum(e, axis=-1, keepdims=True), approx=True)
        oh = jnp.einsum("bqk,bkd->bqd", p.astype(bf16), vh3,
                        preferred_element_type=f32)              # [bt, nq, d_v]

        # Fused per-head output projection -> accumulate 128-lane-dense output.
        att = att + jnp.dot(oh.reshape(bt * nq, oh.shape[-1]).astype(bf16),
                            wo_ref[head], preferred_element_type=f32)
    att = att + bo_ref[...]

    # Dropout = identity (eval mode).  Residual + LayerNorm 1 (f32).
    x = _layer_norm(q_res + att, ln1_g_ref[...], ln1_b_ref[...], eps)

    # --- Position-wise feed-forward. ------------------------------------------
    hid = jnp.dot(x.astype(bf16), w1_ref[...], preferred_element_type=f32) + b1_ref[...]
    hid = jnp.maximum(hid, 0.0)
    ff = jnp.dot(hid.astype(bf16), w2_ref[...], preferred_element_type=f32) + b2_ref[...]

    # Residual + LayerNorm 2.
    y = _layer_norm(x + ff, ln2_g_ref[...], ln2_b_ref[...], eps)
    o_ref[...] = y.reshape(bt, nq, d_model).astype(o_ref.dtype)


def _choose_b_tile(b, nq, nk):
    """Batch elements per grid step.

    Targets ~256 rows per step (fills the 256-wide MXU on v6e/v7x), keeps
    >= 2 grid steps so v7x can shard the batch over its 2 TensorCores, caps
    rows so activation tiles stay well inside VMEM (64 MiB on v7x), and always
    returns a divisor of b (no ragged tiles)."""
    if b <= 1:
        return 1
    rows_cap = 1024
    bt_cap = max(1, min(b // 2, max(1, rows_cap // max(nq, nk, 1))))
    bt = min(bt_cap, max(1, -(-256 // max(nq, 1))))
    while b % bt:
        bt -= 1
    return max(bt, 1)


def make_encoder_layer_forward(d_model, eps=1e-5):
    kernel = functools.partial(_encoder_layer_kernel, eps=eps)

    def forward(queries, keys, values, params):
        b, nq, _ = queries.shape
        nk = keys.shape[1]
        bt = _choose_b_tile(b, nq, nk)
        weights = [params[name] for name in _PARAM_ORDER]

        def token_spec(seq):
            return pl.BlockSpec((bt, seq, d_model), lambda i: (i, 0, 0))

        def resident_spec(w):
            nd = w.ndim
            # Constant index_map -> block DMA'd once, stays VMEM-resident.
            return pl.BlockSpec(w.shape, lambda i: (0,) * nd)

        # TODO(synk): when scaling to large d_model/d_ff on v7x (64 MiB VMEM),
        # set vmem_limit_bytes / single-buffer the resident weight specs.
        return pl.pallas_call(
            kernel,
            out_shape=jax.ShapeDtypeStruct((b, nq, d_model), queries.dtype),
            grid=(b // bt,),
            in_specs=[token_spec(nq), token_spec(nk), token_spec(nk)]
                     + [resident_spec(w) for w in weights],
            out_specs=pl.BlockSpec((bt, nq, d_model), lambda i: (i, 0, 0)),
            compiler_params=pltpu.CompilerParams(
                dimension_semantics=("parallel",),   # batch shards on v7x's 2 TCs
            ),
        )(queries, keys, values, *weights)

    return jax.jit(forward)


# ------------------------------ Module port -----------------------------------
class EncoderLayer:
    """JAX/Pallas port of the PyTorch EncoderLayer (eval mode, no mask)."""

    def __init__(self, key, d_model=128, d_k=32, d_v=32, h=4, d_ff=256, eps=1e-5):
        self.d_model, self.d_k, self.d_v, self.h, self.d_ff, self.eps = (
            d_model, d_k, d_v, h, d_ff, eps)
        f32, bf16 = jnp.float32, jnp.bfloat16

        def xavier_t(k, fan_in, fan_out):
            bound = math.sqrt(6.0 / (fan_in + fan_out))
            # PyTorch weight is [out, in]; generate the transpose [in, out]
            # directly (uniform is symmetric -> same distribution).
            return jax.random.uniform(k, (fan_in, fan_out), f32, -bound, bound)

        def linear_default_t(k, fan_in, fan_out):
            kw, kb = jax.random.split(k)
            bound = 1.0 / math.sqrt(fan_in)
            w = jax.random.uniform(kw, (fan_in, fan_out), f32, -bound, bound)
            b = jax.random.uniform(kb, (1, fan_out), f32, -bound, bound)
            return w, b

        def split_heads(w_t, dh):
            # [d_model, h*dh] -> [h, d_model, dh]
            return w_t.reshape(d_model, h, dh).transpose(1, 0, 2)

        kq, kk, kv, ko, k1, k2 = jax.random.split(key, 6)
        scale = 1.0 / math.sqrt(d_k)

        wq_t = xavier_t(kq, d_model, h * d_k)
        wk_t = xavier_t(kk, d_model, h * d_k)
        wv_t = xavier_t(kv, d_model, h * d_v)
        wo_t = xavier_t(ko, h * d_v, d_model)
        w1_t, b1 = linear_default_t(k1, d_model, d_ff)
        w2_t, b2 = linear_default_t(k2, d_ff, d_model)

        p = {}
        # Q/K/V pre-split per head; 1/sqrt(d_k) folded into W_q / b_q.
        p["wq"] = split_heads(wq_t * scale, d_k).astype(bf16)
        p["bq"] = jnp.zeros((h, 1, d_k), f32)     # fc_q bias init = 0 (scaled 0)
        p["wk"] = split_heads(wk_t, d_k).astype(bf16)
        p["bk"] = jnp.zeros((h, 1, d_k), f32)
        p["wv"] = split_heads(wv_t, d_v).astype(bf16)
        p["bv"] = jnp.zeros((h, 1, d_v), f32)
        # W_o pre-reshaped so the output projection fuses into the head loop.
        p["wo"] = wo_t.reshape(h, d_v, d_model).astype(bf16)
        p["bo"] = jnp.zeros((1, d_model), f32)
        p["ln1_g"] = jnp.ones((1, d_model), f32)
        p["ln1_b"] = jnp.zeros((1, d_model), f32)
        p["w1"] = w1_t.astype(bf16)
        p["b1"] = b1
        p["w2"] = w2_t.astype(bf16)
        p["b2"] = b2
        p["ln2_g"] = jnp.ones((1, d_model), f32)
        p["ln2_b"] = jnp.zeros((1, d_model), f32)
        self.params = p

        self._forward = make_encoder_layer_forward(d_model, eps)

    def __call__(self, queries, keys, values, attention_mask=None, attention_weights=None):
        # TODO(synk): attention_mask / attention_weights and the stateful
        # running_keys/values path are not plumbed into the fused kernel
        # (defaults are None / non-stateful in the reference forward).
        assert attention_mask is None and attention_weights is None
        return self._forward(queries, keys, values, self.params)


# ------------------------------ Reference --------------------------------------
def reference_forward(queries, keys, values, p, eps):
    """Pure-JAX reference built from the same packed params, mirroring the
    kernel's bf16-matmul / f32-softmax+LN numerics (exact softmax divide)."""
    f32, bf16 = jnp.float32, jnp.bfloat16
    h = p["wq"].shape[0]
    q_bf = queries.astype(bf16)
    k_bf = keys.astype(bf16)
    v_bf = values.astype(bf16)

    att = jnp.zeros(queries.shape, f32)
    for i in range(h):
        qh = jnp.einsum("bnd,dk->bnk", q_bf, p["wq"][i],
                        preferred_element_type=f32) + p["bq"][i]
        kh = jnp.einsum("bnd,dk->bnk", k_bf, p["wk"][i],
                        preferred_element_type=f32) + p["bk"][i]
        vh = jnp.einsum("bnd,dk->bnk", v_bf, p["wv"][i],
                        preferred_element_type=f32) + p["bv"][i]
        s = jnp.einsum("bqd,bkd->bqk", qh.astype(bf16), kh.astype(bf16),
                       preferred_element_type=f32)
        pr = jax.nn.softmax(s, axis=-1)
        oh = jnp.einsum("bqk,bkd->bqd", pr.astype(bf16), vh.astype(bf16),
                        preferred_element_type=f32)
        att = att + jnp.einsum("bqd,de->bqe", oh.astype(bf16), p["wo"][i],
                               preferred_element_type=f32)
    att = att + p["bo"]
    x = _layer_norm(queries.astype(f32) + att, p["ln1_g"], p["ln1_b"], eps)
    hid = jnp.maximum(jnp.einsum("bnd,df->bnf", x.astype(bf16), p["w1"],
                                 preferred_element_type=f32) + p["b1"], 0.0)
    ff = jnp.einsum("bnf,fd->bnd", hid.astype(bf16), p["w2"],
                    preferred_element_type=f32) + p["b2"]
    return _layer_norm(x + ff, p["ln2_g"], p["ln2_b"], eps)


# --------------------------------- main ----------------------------------------
if __name__ == "__main__":
    d_model, d_k, d_v, h, d_ff = 128, 32, 32, 4, 256
    b_s, nq, nk = 2, 8, 8

    root = jax.random.PRNGKey(0)
    k_model, k_q, k_k, k_v = jax.random.split(root, 4)

    layer = EncoderLayer(k_model, d_model=d_model, d_k=d_k, d_v=d_v, h=h, d_ff=d_ff)

    queries = jax.random.normal(k_q, (b_s, nq, d_model), jnp.float32)
    keys = jax.random.normal(k_k, (b_s, nk, d_model), jnp.float32)
    values = jax.random.normal(k_v, (b_s, nk, d_model), jnp.float32)

    out = jax.block_until_ready(layer(queries, keys, values))
    assert out.shape == (b_s, nq, d_model)

    ref = jax.block_until_ready(
        reference_forward(queries, keys, values, layer.params, layer.eps))

    # bf16 MXU path + approx softmax reciprocal -> loosened tolerance.
    if bool(jnp.allclose(out, ref, atol=2e-2, rtol=2e-2)):
        print("KERNEL_OK")
    else:
        print("MISMATCH max_abs_err =", float(jnp.max(jnp.abs(out - ref))))
</pallas_src>

<mosaic_0001>
module attributes {stable_mosaic.version = 11 : i64} {
  func.func @_encoder_layer_kernel(%arg0: i32, %arg1: memref<1x8x128xf32, #tpu.memory_space<vmem>>, %arg2: memref<1x8x128xf32, #tpu.memory_space<vmem>>, %arg3: memref<1x8x128xf32, #tpu.memory_space<vmem>>, %arg4: memref<4x128x32xbf16, #tpu.memory_space<vmem>>, %arg5: memref<4x1x32xf32, #tpu.memory_space<vmem>>, %arg6: memref<4x128x32xbf16, #tpu.memory_space<vmem>>, %arg7: memref<4x1x32xf32, #tpu.memory_space<vmem>>, %arg8: memref<4x128x32xbf16, #tpu.memory_space<vmem>>, %arg9: memref<4x1x32xf32, #tpu.memory_space<vmem>>, %arg10: memref<4x32x128xbf16, #tpu.memory_space<vmem>>, %arg11: memref<1x128xf32, #tpu.memory_space<vmem>>, %arg12: memref<1x128xf32, #tpu.memory_space<vmem>>, %arg13: memref<1x128xf32, #tpu.memory_space<vmem>>, %arg14: memref<128x256xbf16, #tpu.memory_space<vmem>>, %arg15: memref<1x256xf32, #tpu.memory_space<vmem>>, %arg16: memref<256x128xbf16, #tpu.memory_space<vmem>>, %arg17: memref<1x128xf32, #tpu.memory_space<vmem>>, %arg18: memref<1x128xf32, #tpu.memory_space<vmem>>, %arg19: memref<1x128xf32, #tpu.memory_space<vmem>>, %arg20: memref<1x8x128xf32, #tpu.memory_space<vmem>>) attributes {dimension_semantics = [#tpu.dimension_semantics<parallel>], iteration_bounds = array<i64: 2>, scalar_prefetch = 0 : i64, scratch_operands = 0 : i64, tpu.core_type = #tpu.core_type<tc>, window_params = [{transform_indices = @transform_0, window_bounds = array<i64: 1, 8, 128>}, {transform_indices = @transform_1, window_bounds = array<i64: 1, 8, 128>}, {transform_indices = @transform_2, window_bounds = array<i64: 1, 8, 128>}, {pipeline_mode = #tpu.pipeline_mode<synchronous>, transform_indices = @transform_3, window_bounds = array<i64: 4, 128, 32>}, {pipeline_mode = #tpu.pipeline_mode<synchronous>, transform_indices = @transform_4, window_bounds = array<i64: 4, 1, 32>}, {pipeline_mode = #tpu.pipeline_mode<synchronous>, transform_indices = @transform_5, window_bounds = array<i64: 4, 128, 32>}, {pipeline_mode = #tpu.pipeline_mode<synchronous>, transform_indices = @transform_6, window_bounds = array<i64: 4, 1, 32>}, {pipeline_mode = #tpu.pipeline_mode<synchronous>, transform_indices = @transform_7, window_bounds = array<i64: 4, 128, 32>}, {pipeline_mode = #tpu.pipeline_mode<synchronous>, transform_indices = @transform_8, window_bounds = array<i64: 4, 1, 32>}, {pipeline_mode = #tpu.pipeline_mode<synchronous>, transform_indices = @transform_9, window_bounds = array<i64: 4, 32, 128>}, {pipeline_mode = #tpu.pipeline_mode<synchronous>, transform_indices = @transform_10, window_bounds = array<i64: 1, 128>}, {pipeline_mode = #tpu.pipeline_mode<synchronous>, transform_indices = @transform_11, window_bounds = array<i64: 1, 128>}, {pipeline_mode = #tpu.pipeline_mode<synchronous>, transform_indices = @transform_12, window_bounds = array<i64: 1, 128>}, {pipeline_mode = #tpu.pipeline_mode<synchronous>, transform_indices = @transform_13, window_bounds = array<i64: 128, 256>}, {pipeline_mode = #tpu.pipeline_mode<synchronous>, transform_indices = @transform_14, window_bounds = array<i64: 1, 256>}, {pipeline_mode = #tpu.pipeline_mode<synchronous>, transform_indices = @transform_15, window_bounds = array<i64: 256, 128>}, {pipeline_mode = #tpu.pipeline_mode<synchronous>, transform_indices = @transform_16, window_bounds = array<i64: 1, 128>}, {pipeline_mode = #tpu.pipeline_mode<synchronous>, transform_indices = @transform_17, window_bounds = array<i64: 1, 128>}, {pipeline_mode = #tpu.pipeline_mode<synchronous>, transform_indices = @transform_18, window_bounds = array<i64: 1, 128>}, {transform_indices = @transform_19, window_bounds = array<i64: 1, 8, 128>}]} {
    %c0 = arith.constant 0 : index
    %c0_0 = arith.constant 0 : index
    %c0_1 = arith.constant 0 : index
    %0 = vector.load %arg1[%c0, %c0_0, %c0_1] : memref<1x8x128xf32, #tpu.memory_space<vmem>>, vector<1x8x128xf32>
    %1 = vector.shape_cast %0 : vector<1x8x128xf32> to vector<8x128xf32>
    %2 = arith.truncf %1 : vector<8x128xf32> to vector<8x128xbf16>
    %c0_2 = arith.constant 0 : index
    %c0_3 = arith.constant 0 : index
    %c0_4 = arith.constant 0 : index
    %3 = vector.load %arg2[%c0_2, %c0_3, %c0_4] : memref<1x8x128xf32, #tpu.memory_space<vmem>>, vector<1x8x128xf32>
    %4 = vector.shape_cast %3 : vector<1x8x128xf32> to vector<8x128xf32>
    %5 = arith.truncf %4 : vector<8x128xf32> to vector<8x128xbf16>
    %c0_5 = arith.constant 0 : index
    %c0_6 = arith.constant 0 : index
    %c0_7 = arith.constant 0 : index
    %6 = vector.load %arg3[%c0_5, %c0_6, %c0_7] : memref<1x8x128xf32, #tpu.memory_space<vmem>>, vector<1x8x128xf32>
    %7 = vector.shape_cast %6 : vector<1x8x128xf32> to vector<8x128xf32>
    %8 = arith.truncf %7 : vector<8x128xf32> to vector<8x128xbf16>
    %cst = arith.constant 0.000000e+00 : f32
    %9 = vector.broadcast %cst : f32 to vector<8x128xf32>
    %c0_8 = arith.constant 0 : index
    %c0_9 = arith.constant 0 : index
    %c0_10 = arith.constant 0 : index
    %10 = vector.load %arg4[%c0_8, %c0_9, %c0_10] : memref<4x128x32xbf16, #tpu.memory_space<vmem>>, vector<1x128x32xbf16>
    %11 = vector.shape_cast %10 : vector<1x128x32xbf16> to vector<128x32xbf16>
    %cst_11 = arith.constant dense<0.000000e+00> : vector<8x32xf32>
    %12 = tpu.matmul %2, %11, %cst_11 {dimension_numbers = #tpu.dot_dimension_numbers<[1], [0], [0], [1], [0, 0, 1, 1], [], []>} : vector<8x128xbf16>, vector<128x32xbf16>, vector<8x32xf32> -> vector<8x32xf32>
    %c0_12 = arith.constant 0 : index
    %c0_13 = arith.constant 0 : index
    %c0_14 = arith.constant 0 : index
    %13 = vector.load %arg5[%c0_12, %c0_13, %c0_14] : memref<4x1x32xf32, #tpu.memory_space<vmem>>, vector<1x1x32xf32>
    %14 = vector.shape_cast %13 : vector<1x1x32xf32> to vector<1x32xf32>
    %15 = vector.broadcast %14 : vector<1x32xf32> to vector<8x32xf32>
    %16 = arith.addf %12, %15 : vector<8x32xf32>
    %c0_15 = arith.constant 0 : index
    %c0_16 = arith.constant 0 : index
    %c0_17 = arith.constant 0 : index
    %17 = vector.load %arg6[%c0_15, %c0_16, %c0_17] : memref<4x128x32xbf16, #tpu.memory_space<vmem>>, vector<1x128x32xbf16>
    %18 = vector.shape_cast %17 : vector<1x128x32xbf16> to vector<128x32xbf16>
    %cst_18 = arith.constant dense<0.000000e+00> : vector<8x32xf32>
    %19 = tpu.matmul %5, %18, %cst_18 {dimension_numbers = #tpu.dot_dimension_numbers<[1], [0], [0], [1], [0, 0, 1, 1], [], []>} : vector<8x128xbf16>, vector<128x32xbf16>, vector<8x32xf32> -> vector<8x32xf32>
    %c0_19 = arith.constant 0 : index
    %c0_20 = arith.constant 0 : index
    %c0_21 = arith.constant 0 : index
    %20 = vector.load %arg7[%c0_19, %c0_20, %c0_21] : memref<4x1x32xf32, #tpu.memory_space<vmem>>, vector<1x1x32xf32>
    %21 = vector.shape_cast %20 : vector<1x1x32xf32> to vector<1x32xf32>
    %22 = vector.broadcast %21 : vector<1x32xf32> to vector<8x32xf32>
    %23 = arith.addf %19, %22 : vector<8x32xf32>
    %c0_22 = arith.constant 0 : index
    %c0_23 = arith.constant 0 : index
    %c0_24 = arith.constant 0 : index
    %24 = vector.load %arg8[%c0_22, %c0_23, %c0_24] : memref<4x128x32xbf16, #tpu.memory_space<vmem>>, vector<1x128x32xbf16>
    %25 = vector.shape_cast %24 : vector<1x128x32xbf16> to vector<128x32xbf16>
    %cst_25 = arith.constant dense<0.000000e+00> : vector<8x32xf32>
    %26 = tpu.matmul %8, %25, %cst_25 {dimension_numbers = #tpu.dot_dimension_numbers<[1], [0], [0], [1], [0, 0, 1, 1], [], []>} : vector<8x128xbf16>, vector<128x32xbf16>, vector<8x32xf32> -> vector<8x32xf32>
    %c0_26 = arith.constant 0 : index
    %c0_27 = arith.constant 0 : index
    %c0_28 = arith.constant 0 : index
    %27 = vector.load %arg9[%c0_26, %c0_27, %c0_28] : memref<4x1x32xf32, #tpu.memory_space<vmem>>, vector<1x1x32xf32>
    %28 = vector.shape_cast %27 : vector<1x1x32xf32> to vector<1x32xf32>
    %29 = vector.broadcast %28 : vector<1x32xf32> to vector<8x32xf32>
    %30 = arith.addf %26, %29 : vector<8x32xf32>
    %31 = vector.shape_cast %16 : vector<8x32xf32> to vector<1x8x32xf32>
    %32 = arith.truncf %31 : vector<1x8x32xf32> to vector<1x8x32xbf16>
    %33 = vector.shape_cast %23 : vector<8x32xf32> to vector<1x8x32xf32>
    %34 = arith.truncf %33 : vector<1x8x32xf32> to vector<1x8x32xbf16>
    %35 = vector.shape_cast %30 : vector<8x32xf32> to vector<1x8x32xf32>
    %36 = arith.truncf %35 : vector<1x8x32xf32> to vector<1x8x32xbf16>
    "tpu.trace_start"() <{level = 10 : i32, message = "bqd,bkd->bqk"}> : () -> ()
    %cst_29 = arith.constant dense<0.000000e+00> : vector<1x8x8xf32>
    %37 = tpu.matmul %32, %34, %cst_29 {dimension_numbers = #tpu.dot_dimension_numbers<[2], [2], [1], [1], [0, 0, 0, 1, 1, 1], [0], [0]>} : vector<1x8x32xbf16>, vector<1x8x32xbf16>, vector<1x8x8xf32> -> vector<1x8x8xf32>
    "tpu.trace_stop"() : () -> ()
    %cst_30 = arith.constant dense<0xFF800000> : vector<1x8xf32>
    %38 = vector.multi_reduction <maximumf>, %37, %cst_30 [2] : vector<1x8x8xf32> to vector<1x8xf32>
    %39 = vector.shape_cast %38 : vector<1x8xf32> to vector<1x8x1xf32>
    %40 = vector.broadcast %39 : vector<1x8x1xf32> to vector<1x8x8xf32>
    %41 = arith.subf %37, %40 : vector<1x8x8xf32>
    %42 = math.exp %41 : vector<1x8x8xf32>
    %cst_31 = arith.constant dense<0.000000e+00> : vector<1x8xf32>
    %43 = vector.multi_reduction <add>, %42, %cst_31 [2] : vector<1x8x8xf32> to vector<1x8xf32>
    %44 = vector.shape_cast %43 : vector<1x8xf32> to vector<1x8x1xf32>
    %45 = tpu.reciprocal %44 {approx = true} : vector<1x8x1xf32> -> vector<1x8x1xf32>
    %46 = vector.broadcast %45 : vector<1x8x1xf32> to vector<1x8x8xf32>
    %47 = arith.mulf %42, %46 : vector<1x8x8xf32>
    %48 = arith.truncf %47 : vector<1x8x8xf32> to vector<1x8x8xbf16>
    "tpu.trace_start"() <{level = 10 : i32, message = "bqk,bkd->bqd"}> : () -> ()
    %cst_32 = arith.constant dense<0.000000e+00> : vector<1x8x32xf32>
    %49 = tpu.matmul %48, %36, %cst_32 {dimension_numbers = #tpu.dot_dimension_numbers<[2], [1], [1], [2], [0, 0, 0, 1, 1, 2], [0], [0]>} : vector<1x8x8xbf16>, vector<1x8x32xbf16>, vector<1x8x32xf32> -> vector<1x8x32xf32>
    "tpu.trace_stop"() : () -> ()
    %50 = vector.shape_cast %49 : vector<1x8x32xf32> to vector<8x32xf32>
    %51 = arith.truncf %50 : vector<8x32xf32> to vector<8x32xbf16>
    %c0_33 = arith.constant 0 : index
    %c0_34 = arith.constant 0 : index
    %c0_35 = arith.constant 0 : index
    %52 = vector.load %arg10[%c0_33, %c0_34, %c0_35] : memref<4x32x128xbf16, #tpu.memory_space<vmem>>, vector<1x32x128xbf16>
    %53 = vector.shape_cast %52 : vector<1x32x128xbf16> to vector<32x128xbf16>
    %cst_36 = arith.constant dense<0.000000e+00> : vector<8x128xf32>
    %54 = tpu.matmul %51, %53, %cst_36 {dimension_numbers = #tpu.dot_dimension_numbers<[1], [0], [0], [1], [0, 0, 1, 1], [], []>} : vector<8x32xbf16>, vector<32x128xbf16>, vector<8x128xf32> -> vector<8x128xf32>
    %55 = arith.addf %9, %54 : vector<8x128xf32>
    %c1 = arith.constant 1 : index
    %c0_37 = arith.constant 0 : index
    %c0_38 = arith.constant 0 : index
    %56 = vector.load %arg4[%c1, %c0_37, %c0_38] : memref<4x128x32xbf16, #tpu.memory_space<vmem>>, vector<1x128x32xbf16>
    %57 = vector.shape_cast %56 : vector<1x128x32xbf16> to vector<128x32xbf16>
    %cst_39 = arith.constant dense<0.000000e+00> : vector<8x32xf32>
    %58 = tpu.matmul %2, %57, %cst_39 {dimension_numbers = #tpu.dot_dimension_numbers<[1], [0], [0], [1], [0, 0, 1, 1], [], []>} : vector<8x128xbf16>, vector<128x32xbf16>, vector<8x32xf32> -> vector<8x32xf32>
    %c1_40 = arith.constant 1 : index
    %c0_41 = arith.constant 0 : index
    %c0_42 = arith.constant 0 : index
    %59 = vector.load %arg5[%c1_40, %c0_41, %c0_42] : memref<4x1x32xf32, #tpu.memory_space<vmem>>, vector<1x1x32xf32>
    %60 = vector.shape_cast %59 : vector<1x1x32xf32> to vector<1x32xf32>
    %61 = vector.broadcast %60 : vector<1x32xf32> to vector<8x32xf32>
    %62 = arith.addf %58, %61 : vector<8x32xf32>
    %c1_43 = arith.constant 1 : index
    %c0_44 = arith.constant 0 : index
    %c0_45 = arith.constant 0 : index
    %63 = vector.load %arg6[%c1_43, %c0_44, %c0_45] : memref<4x128x32xbf16, #tpu.memory_space<vmem>>, vector<1x128x32xbf16>
    %64 = vector.shape_cast %63 : vector<1x128x32xbf16> to vector<128x32xbf16>
    %cst_46 = arith.constant dense<0.000000e+00> : vector<8x32xf32>
    %65 = tpu.matmul %5, %64, %cst_46 {dimension_numbers = #tpu.dot_dimension_numbers<[1], [0], [0], [1], [0, 0, 1, 1], [], []>} : vector<8x128xbf16>, vector<128x32xbf16>, vector<8x32xf32> -> vector<8x32xf32>
    %c1_47 = arith.constant 1 : index
    %c0_48 = arith.constant 0 : index
    %c0_49 = arith.constant 0 : index
    %66 = vector.load %arg7[%c1_47, %c0_48, %c0_49] : memref<4x1x32xf32, #tpu.memory_space<vmem>>, vector<1x1x32xf32>
    %67 = vector.shape_cast %66 : vector<1x1x32xf32> to vector<1x32xf32>
    %68 = vector.broadcast %67 : vector<1x32xf32> to vector<8x32xf32>
    %69 = arith.addf %65, %68 : vector<8x32xf32>
    %c1_50 = arith.constant 1 : index
    %c0_51 = arith.constant 0 : index
    %c0_52 = arith.constant 0 : index
    %70 = vector.load %arg8[%c1_50, %c0_51, %c0_52] : memref<4x128x32xbf16, #tpu.memory_space<vmem>>, vector<1x128x32xbf16>
    %71 = vector.shape_cast %70 : vector<1x128x32xbf16> to vector<128x32xbf16>
    %cst_53 = arith.constant dense<0.000000e+00> : vector<8x32xf32>
    %72 = tpu.matmul %8, %71, %cst_53 {dimension_numbers = #tpu.dot_dimension_numbers<[1], [0], [0], [1], [0, 0, 1, 1], [], []>} : vector<8x128xbf16>, vector<128x32xbf16>, vector<8x32xf32> -> vector<8x32xf32>
    %c1_54 = arith.constant 1 : index
    %c0_55 = arith.constant 0 : index
    %c0_56 = arith.constant 0 : index
    %73 = vector.load %arg9[%c1_54, %c0_55, %c0_56] : memref<4x1x32xf32, #tpu.memory_space<vmem>>, vector<1x1x32xf32>
    %74 = vector.shape_cast %73 : vector<1x1x32xf32> to vector<1x32xf32>
    %75 = vector.broadcast %74 : vector<1x32xf32> to vector<8x32xf32>
    %76 = arith.addf %72, %75 : vector<8x32xf32>
    %77 = vector.shape_cast %62 : vector<8x32xf32> to vector<1x8x32xf32>
    %78 = arith.truncf %77 : vector<1x8x32xf32> to vector<1x8x32xbf16>
    %79 = vector.shape_cast %69 : vector<8x32xf32> to vector<1x8x32xf32>
    %80 = arith.truncf %79 : vector<1x8x32xf32> to vector<1x8x32xbf16>
    %81 = vector.shape_cast %76 : vector<8x32xf32> to vector<1x8x32xf32>
    %82 = arith.truncf %81 : vector<1x8x32xf32> to vector<1x8x32xbf16>
    "tpu.trace_start"() <{level = 10 : i32, message = "bqd,bkd->bqk"}> : () -> ()
    %cst_57 = arith.constant dense<0.000000e+00> : vector<1x8x8xf32>
    %83 = tpu.matmul %78, %80, %cst_57 {dimension_numbers = #tpu.dot_dimension_numbers<[2], [2], [1], [1], [0, 0, 0, 1, 1, 1], [0], [0]>} : vector<1x8x32xbf16>, vector<1x8x32xbf16>, vector<1x8x8xf32> -> vector<1x8x8xf32>
    "tpu.trace_stop"() : () -> ()
    %cst_58 = arith.constant dense<0xFF800000> : vector<1x8xf32>
    %84 = vector.multi_reduction <maximumf>, %83, %cst_58 [2] : vector<1x8x8xf32> to vector<1x8xf32>
    %85 = vector.shape_cast %84 : vector<1x8xf32> to vector<1x8x1xf32>
    %86 = vector.broadcast %85 : vector<1x8x1xf32> to vector<1x8x8xf32>
    %87 = arith.subf %83, %86 : vector<1x8x8xf32>
    %88 = math.exp %87 : vector<1x8x8xf32>
    %cst_59 = arith.constant dense<0.000000e+00> : vector<1x8xf32>
    %89 = vector.multi_reduction <add>, %88, %cst_59 [2] : vector<1x8x8xf32> to vector<1x8xf32>
    %90 = vector.shape_cast %89 : vector<1x8xf32> to vector<1x8x1xf32>
    %91 = tpu.reciprocal %90 {approx = true} : vector<1x8x1xf32> -> vector<1x8x1xf32>
    %92 = vector.broadcast %91 : vector<1x8x1xf32> to vector<1x8x8xf32>
    %93 = arith.mulf %88, %92 : vector<1x8x8xf32>
    %94 = arith.truncf %93 : vector<1x8x8xf32> to vector<1x8x8xbf16>
    "tpu.trace_start"() <{level = 10 : i32, message = "bqk,bkd->bqd"}> : () -> ()
    %cst_60 = arith.constant dense<0.000000e+00> : vector<1x8x32xf32>
    %95 = tpu.matmul %94, %82, %cst_60 {dimension_numbers = #tpu.dot_dimension_numbers<[2], [1], [1], [2], [0, 0, 0, 1, 1, 2], [0], [0]>} : vector<1x8x8xbf16>, vector<1x8x32xbf16>, vector<1x8x32xf32> -> vector<1x8x32xf32>
    "tpu.trace_stop"() : () -> ()
    %96 = vector.shape_cast %95 : vector<1x8x32xf32> to vector<8x32xf32>
    %97 = arith.truncf %96 : vector<8x32xf32> to vector<8x32xbf16>
    %c1_61 = arith.constant 1 : index
    %c0_62 = arith.constant 0 : index
    %c0_63 = arith.constant 0 : index
    %98 = vector.load %arg10[%c1_61, %c0_62, %c0_63] : memref<4x32x128xbf16, #tpu.memory_space<vmem>>, vector<1x32x128xbf16>
    %99 = vector.shape_cast %98 : vector<1x32x128xbf16> to vector<32x128xbf16>
    %cst_64 = arith.constant dense<0.000000e+00> : vector<8x128xf32>
    %100 = tpu.matmul %97, %99, %cst_64 {dimension_numbers = #tpu.dot_dimension_numbers<[1], [0], [0], [1], [0, 0, 1, 1], [], []>} : vector<8x32xbf16>, vector<32x128xbf16>, vector<8x128xf32> -> vector<8x128xf32>
    %101 = arith.addf %55, %100 : vector<8x128xf32>
    %c2 = arith.constant 2 : index
    %c0_65 = arith.constant 0 : index
    %c0_66 = arith.constant 0 : index
    %102 = vector.load %arg4[%c2, %c0_65, %c0_66] : memref<4x128x32xbf16, #tpu.memory_space<vmem>>, vector<1x128x32xbf16>
    %103 = vector.shape_cast %102 : vector<1x128x32xbf16> to vector<128x32xbf16>
    %cst_67 = arith.constant dense<0.000000e+00> : vector<8x32xf32>
    %104 = tpu.matmul %2, %103, %cst_67 {dimension_numbers = #tpu.dot_dimension_numbers<[1], [0], [0], [1], [0, 0, 1, 1], [], []>} : vector<8x128xbf16>, vector<128x32xbf16>, vector<8x32xf32> -> vector<8x32xf32>
    %c2_68 = arith.constant 2 : index
    %c0_69 = arith.constant 0 : index
    %c0_70 = arith.constant 0 : index
    %105 = vector.load %arg5[%c2_68, %c0_69, %c0_70] : memref<4x1x32xf32, #tpu.memory_space<vmem>>, vector<1x1x32xf32>
    %106 = vector.shape_cast %105 : vector<1x1x32xf32> to vector<1x32xf32>
    %107 = vector.broadcast %106 : vector<1x32xf32> to vector<8x32xf32>
    %108 = arith.addf %104, %107 : vector<8x32xf32>
    %c2_71 = arith.constant 2 : index
    %c0_72 = arith.constant 0 : index
    %c0_73 = arith.constant 0 : index
    %109 = vector.load %arg6[%c2_71, %c0_72, %c0_73] : memref<4x128x32xbf16, #tpu.memory_space<vmem>>, vector<1x128x32xbf16>
    %110 = vector.shape_cast %109 : vector<1x128x32xbf16> to vector<128x32xbf16>
    %cst_74 = arith.constant dense<0.000000e+00> : vector<8x32xf32>
    %111 = tpu.matmul %5, %110, %cst_74 {dimension_numbers = #tpu.dot_dimension_numbers<[1], [0], [0], [1], [0, 0, 1, 1], [], []>} : vector<8x128xbf16>, vector<128x32xbf16>, vector<8x32xf32> -> vector<8x32xf32>
    %c2_75 = arith.constant 2 : index
    %c0_76 = arith.constant 0 : index
    %c0_77 = arith.constant 0 : index
    %112 = vector.load %arg7[%c2_75, %c0_76, %c0_77] : memref<4x1x32xf32, #tpu.memory_space<vmem>>, vector<1x1x32xf32>
    %113 = vector.shape_cast %112 : vector<1x1x32xf32> to vector<1x32xf32>
    %114 = vector.broadcast %113 : vector<1x32xf32> to vector<8x32xf32>
    %115 = arith.addf %111, %114 : vector<8x32xf32>
    %c2_78 = arith.constant 2 : index
    %c0_79 = arith.constant 0 : index
    %c0_80 = arith.constant 0 : index
    %116 = vector.load %arg8[%c2_78, %c0_79, %c0_80] : memref<4x128x32xbf16, #tpu.memory_space<vmem>>, vector<1x128x32xbf16>
    %117 = vector.shape_cast %116 : vector<1x128x32xbf16> to vector<128x32xbf16>
    %cst_81 = arith.constant dense<0.000000e+00> : vector<8x32xf32>
    %118 = tpu.matmul %8, %117, %cst_81 {dimension_numbers = #tpu.dot_dimension_numbers<[1], [0], [0], [1], [0, 0, 1, 1], [], []>} : vector<8x128xbf16>, vector<128x32xbf16>, vector<8x32xf32> -> vector<8x32xf32>
    %c2_82 = arith.constant 2 : index
    %c0_83 = arith.constant 0 : index
    %c0_84 = arith.constant 0 : index
    %119 = vector.load %arg9[%c2_82, %c0_83, %c0_84] : memref<4x1x32xf32, #tpu.memory_space<vmem>>, vector<1x1x32xf32>
    %120 = vector.shape_cast %119 : vector<1x1x32xf32> to vector<1x32xf32>
    %121 = vector.broadcast %120 : vector<1x32xf32> to vector<8x32xf32>
    %122 = arith.addf %118, %121 : vector<8x32xf32>
    %123 = vector.shape_cast %108 : vector<8x32xf32> to vector<1x8x32xf32>
    %124 = arith.truncf %123 : vector<1x8x32xf32> to vector<1x8x32xbf16>
    %125 = vector.shape_cast %115 : vector<8x32xf32> to vector<1x8x32xf32>
    %126 = arith.truncf %125 : vector<1x8x32xf32> to vector<1x8x32xbf16>
    %127 = vector.shape_cast %122 : vector<8x32xf32> to vector<1x8x32xf32>
    %128 = arith.truncf %127 : vector<1x8x32xf32> to vector<1x8x32xbf16>
    "tpu.trace_start"() <{level = 10 : i32, message = "bqd,bkd->bqk"}> : () -> ()
    %cst_85 = arith.constant dense<0.000000e+00> : vector<1x8x8xf32>
    %129 = tpu.matmul %124, %126, %cst_85 {dimension_numbers = #tpu.dot_dimension_numbers<[2], [2], [1], [1], [0, 0, 0, 1, 1, 1], [0], [0]>} : vector<1x8x32xbf16>, vector<1x8x32xbf16>, vector<1x8x8xf32> -> vector<1x8x8xf32>
    "tpu.trace_stop"() : () -> ()
    %cst_86 = arith.constant dense<0xFF800000> : vector<1x8xf32>
    %130 = vector.multi_reduction <maximumf>, %129, %cst_86 [2] : vector<1x8x8xf32> to vector<1x8xf32>
    %131 = vector.shape_cast %130 : vector<1x8xf32> to vector<1x8x1xf32>
    %132 = vector.broadcast %131 : vector<1x8x1xf32> to vector<1x8x8xf32>
    %133 = arith.subf %129, %132 : vector<1x8x8xf32>
    %134 = math.exp %133 : vector<1x8x8xf32>
    %cst_87 = arith.constant dense<0.000000e+00> : vector<1x8xf32>
    %135 = vector.multi_reduction <add>, %134, %cst_87 [2] : vector<1x8x8xf32> to vector<1x8xf32>
    %136 = vector.shape_cast %135 : vector<1x8xf32> to vector<1x8x1xf32>
    %137 = tpu.reciprocal %136 {approx = true} : vector<1x8x1xf32> -> vector<1x8x1xf32>
    %138 = vector.broadcast %137 : vector<1x8x1xf32> to vector<1x8x8xf32>
    %139 = arith.mulf %134, %138 : vector<1x8x8xf32>
    %140 = arith.truncf %139 : vector<1x8x8xf32> to vector<1x8x8xbf16>
    "tpu.trace_start"() <{level = 10 : i32, message = "bqk,bkd->bqd"}> : () -> ()
    %cst_88 = arith.constant dense<0.000000e+00> : vector<1x8x32xf32>
    %141 = tpu.matmul %140, %128, %cst_88 {dimension_numbers = #tpu.dot_dimension_numbers<[2], [1], [1], [2], [0, 0, 0, 1, 1, 2], [0], [0]>} : vector<1x8x8xbf16>, vector<1x8x32xbf16>, vector<1x8x32xf32> -> vector<1x8x32xf32>
    "tpu.trace_stop"() : () -> ()
    %142 = vector.shape_cast %141 : vector<1x8x32xf32> to vector<8x32xf32>
    %143 = arith.truncf %142 : vector<8x32xf32> to vector<8x32xbf16>
    %c2_89 = arith.constant 2 : index
    %c0_90 = arith.constant 0 : index
    %c0_91 = arith.constant 0 : index
    %144 = vector.load %arg10[%c2_89, %c0_90, %c0_91] : memref<4x32x128xbf16, #tpu.memory_space<vmem>>, vector<1x32x128xbf16>
    %145 = vector.shape_cast %144 : vector<1x32x128xbf16> to vector<32x128xbf16>
    %cst_92 = arith.constant dense<0.000000e+00> : vector<8x128xf32>
    %146 = tpu.matmul %143, %145, %cst_92 {dimension_numbers = #tpu.dot_dimension_numbers<[1], [0], [0], [1], [0, 0, 1, 1], [], []>} : vector<8x32xbf16>, vector<32x128xbf16>, vector<8x128xf32> -> vector<8x128xf32>
    %147 = arith.addf %101, %146 : vector<8x128xf32>
    %c3 = arith.constant 3 : index
    %c0_93 = arith.constant 0 : index
    %c0_94 = arith.constant 0 : index
    %148 = vector.load %arg4[%c3, %c0_93, %c0_94] : memref<4x128x32xbf16, #tpu.memory_space<vmem>>, vector<1x128x32xbf16>
    %149 = vector.shape_cast %148 : vector<1x128x32xbf16> to vector<128x32xbf16>
    %cst_95 = arith.constant dense<0.000000e+00> : vector<8x32xf32>
    %150 = tpu.matmul %2, %149, %cst_95 {dimension_numbers = #tpu.dot_dimension_numbers<[1], [0], [0], [1], [0, 0, 1, 1], [], []>} : vector<8x128xbf16>, vector<128x32xbf16>, vector<8x32xf32> -> vector<8x32xf32>
    %c3_96 = arith.constant 3 : index
    %c0_97 = arith.constant 0 : index
    %c0_98 = arith.constant 0 : index
    %151 = vector.load %arg5[%c3_96, %c0_97, %c0_98] : memref<4x1x32xf32, #tpu.memory_space<vmem>>, vector<1x1x32xf32>
    %152 = vector.shape_cast %151 : vector<1x1x32xf32> to vector<1x32xf32>
    %153 = vector.broadcast %152 : vector<1x32xf32> to vector<8x32xf32>
    %154 = arith.addf %150, %153 : vector<8x32xf32>
    %c3_99 = arith.constant 3 : index
    %c0_100 = arith.constant 0 : index
    %c0_101 = arith.constant 0 : index
    %155 = vector.load %arg6[%c3_99, %c0_100, %c0_101] : memref<4x128x32xbf16, #tpu.memory_space<vmem>>, vector<1x128x32xbf16>
    %156 = vector.shape_cast %155 : vector<1x128x32xbf16> to vector<128x32xbf16>
    %cst_102 = arith.constant dense<0.000000e+00> : vector<8x32xf32>
    %157 = tpu.matmul %5, %156, %cst_102 {dimension_numbers = #tpu.dot_dimension_numbers<[1], [0], [0], [1], [0, 0, 1, 1], [], []>} : vector<8x128xbf16>, vector<128x32xbf16>, vector<8x32xf32> -> vector<8x32xf32>
    %c3_103 = arith.constant 3 : index
    %c0_104 = arith.constant 0 : index
    %c0_105 = arith.constant 0 : index
    %158 = vector.load %arg7[%c3_103, %c0_104, %c0_105] : memref<4x1x32xf32, #tpu.memory_space<vmem>>, vector<1x1x32xf32>
    %159 = vector.shape_cast %158 : vector<1x1x32xf32> to vector<1x32xf32>
    %160 = vector.broadcast %159 : vector<1x32xf32> to vector<8x32xf32>
    %161 = arith.addf %157, %160 : vector<8x32xf32>
    %c3_106 = arith.constant 3 : index
    %c0_107 = arith.constant 0 : index
    %c0_108 = arith.constant 0 : index
    %162 = vector.load %arg8[%c3_106, %c0_107, %c0_108] : memref<4x128x32xbf16, #tpu.memory_space<vmem>>, vector<1x128x32xbf16>
    %163 = vector.shape_cast %162 : vector<1x128x32xbf16> to vector<128x32xbf16>
    %cst_109 = arith.constant dense<0.000000e+00> : vector<8x32xf32>
    %164 = tpu.matmul %8, %163, %cst_109 {dimension_numbers = #tpu.dot_dimension_numbers<[1], [0], [0], [1], [0, 0, 1, 1], [], []>} : vector<8x128xbf16>, vector<128x32xbf16>, vector<8x32xf32> -> vector<8x32xf32>
    %c3_110 = arith.constant 3 : index
    %c0_111 = arith.constant 0 : index
    %c0_112 = arith.constant 0 : index
    %165 = vector.load %arg9[%c3_110, %c0_111, %c0_112] : memref<4x1x32xf32, #tpu.memory_space<vmem>>, vector<1x1x32xf32>
    %166 = vector.shape_cast %165 : vector<1x1x32xf32> to vector<1x32xf32>
    %167 = vector.broadcast %166 : vector<1x32xf32> to vector<8x32xf32>
    %168 = arith.addf %164, %167 : vector<8x32xf32>
    %169 = vector.shape_cast %154 : vector<8x32xf32> to vector<1x8x32xf32>
    %170 = arith.truncf %169 : vector<1x8x32xf32> to vector<1x8x32xbf16>
    %171 = vector.shape_cast %161 : vector<8x32xf32> to vector<1x8x32xf32>
    %172 = arith.truncf %171 : vector<1x8x32xf32> to vector<1x8x32xbf16>
    %173 = vector.shape_cast %168 : vector<8x32xf32> to vector<1x8x32xf32>
    %174 = arith.truncf %173 : vector<1x8x32xf32> to vector<1x8x32xbf16>
    "tpu.trace_start"() <{level = 10 : i32, message = "bqd,bkd->bqk"}> : () -> ()
    %cst_113 = arith.constant dense<0.000000e+00> : vector<1x8x8xf32>
    %175 = tpu.matmul %170, %172, %cst_113 {dimension_numbers = #tpu.dot_dimension_numbers<[2], [2], [1], [1], [0, 0, 0, 1, 1, 1], [0], [0]>} : vector<1x8x32xbf16>, vector<1x8x32xbf16>, vector<1x8x8xf32> -> vector<1x8x8xf32>
    "tpu.trace_stop"() : () -> ()
    %cst_114 = arith.constant dense<0xFF800000> : vector<1x8xf32>
    %176 = vector.multi_reduction <maximumf>, %175, %cst_114 [2] : vector<1x8x8xf32> to vector<1x8xf32>
    %177 = vector.shape_cast %176 : vector<1x8xf32> to vector<1x8x1xf32>
    %178 = vector.broadcast %177 : vector<1x8x1xf32> to vector<1x8x8xf32>
    %179 = arith.subf %175, %178 : vector<1x8x8xf32>
    %180 = math.exp %179 : vector<1x8x8xf32>
    %cst_115 = arith.constant dense<0.000000e+00> : vector<1x8xf32>
    %181 = vector.multi_reduction <add>, %180, %cst_115 [2] : vector<1x8x8xf32> to vector<1x8xf32>
    %182 = vector.shape_cast %181 : vector<1x8xf32> to vector<1x8x1xf32>
    %183 = tpu.reciprocal %182 {approx = true} : vector<1x8x1xf32> -> vector<1x8x1xf32>
    %184 = vector.broadcast %183 : vector<1x8x1xf32> to vector<1x8x8xf32>
    %185 = arith.mulf %180, %184 : vector<1x8x8xf32>
    %186 = arith.truncf %185 : vector<1x8x8xf32> to vector<1x8x8xbf16>
    "tpu.trace_start"() <{level = 10 : i32, message = "bqk,bkd->bqd"}> : () -> ()
    %cst_116 = arith.constant dense<0.000000e+00> : vector<1x8x32xf32>
    %187 = tpu.matmul %186, %174, %cst_116 {dimension_numbers = #tpu.dot_dimension_numbers<[2], [1], [1], [2], [0, 0, 0, 1, 1, 2], [0], [0]>} : vector<1x8x8xbf16>, vector<1x8x32xbf16>, vector<1x8x32xf32> -> vector<1x8x32xf32>
    "tpu.trace_stop"() : () -> ()
    %188 = vector.shape_cast %187 : vector<1x8x32xf32> to vector<8x32xf32>
    %189 = arith.truncf %188 : vector<8x32xf32> to vector<8x32xbf16>
    %c3_117 = arith.constant 3 : index
    %c0_118 = arith.constant 0 : index
    %c0_119 = arith.constant 0 : index
    %190 = vector.load %arg10[%c3_117, %c0_118, %c0_119] : memref<4x32x128xbf16, #tpu.memory_space<vmem>>, vector<1x32x128xbf16>
    %191 = vector.shape_cast %190 : vector<1x32x128xbf16> to vector<32x128xbf16>
    %cst_120 = arith.constant dense<0.000000e+00> : vector<8x128xf32>
    %192 = tpu.matmul %189, %191, %cst_120 {dimension_numbers = #tpu.dot_dimension_numbers<[1], [0], [0], [1], [0, 0, 1, 1], [], []>} : vector<8x32xbf16>, vector<32x128xbf16>, vector<8x128xf32> -> vector<8x128xf32>
    %193 = arith.addf %147, %192 : vector<8x128xf32>
    %c0_121 = arith.constant 0 : index
    %c0_122 = arith.constant 0 : index
    %194 = vector.load %arg11[%c0_121, %c0_122] : memref<1x128xf32, #tpu.memory_space<vmem>>, vector<1x128xf32>
    %195 = vector.broadcast %194 : vector<1x128xf32> to vector<8x128xf32>
    %196 = arith.addf %193, %195 : vector<8x128xf32>
    %197 = arith.addf %1, %196 : vector<8x128xf32>
    %c0_123 = arith.constant 0 : index
    %c0_124 = arith.constant 0 : index
    %198 = vector.load %arg12[%c0_123, %c0_124] : memref<1x128xf32, #tpu.memory_space<vmem>>, vector<1x128xf32>
    %c0_125 = arith.constant 0 : index
    %c0_126 = arith.constant 0 : index
    %199 = vector.load %arg13[%c0_125, %c0_126] : memref<1x128xf32, #tpu.memory_space<vmem>>, vector<1x128xf32>
    %cst_127 = arith.constant dense<0.000000e+00> : vector<8xf32>
    %200 = vector.multi_reduction <add>, %197, %cst_127 [1] : vector<8x128xf32> to vector<8xf32>
    %201 = vector.shape_cast %200 : vector<8xf32> to vector<8x1xf32>
    %cst_128 = arith.constant 1.280000e+02 : f32
    %202 = vector.broadcast %cst_128 : f32 to vector<8x1xf32>
    %203 = arith.divf %201, %202 : vector<8x1xf32>
    %204 = vector.broadcast %203 : vector<8x1xf32> to vector<8x128xf32>
    %205 = arith.subf %197, %204 : vector<8x128xf32>
    %206 = vector.broadcast %203 : vector<8x1xf32> to vector<8x128xf32>
    %207 = arith.subf %197, %206 : vector<8x128xf32>
    %208 = arith.mulf %205, %207 : vector<8x128xf32>
    %cst_129 = arith.constant dense<0.000000e+00> : vector<8xf32>
    %209 = vector.multi_reduction <add>, %208, %cst_129 [1] : vector<8x128xf32> to vector<8xf32>
    %210 = vector.shape_cast %209 : vector<8xf32> to vector<8x1xf32>
    %cst_130 = arith.constant 1.280000e+02 : f32
    %211 = vector.broadcast %cst_130 : f32 to vector<8x1xf32>
    %212 = arith.divf %210, %211 : vector<8x1xf32>
    %213 = vector.broadcast %203 : vector<8x1xf32> to vector<8x128xf32>
    %214 = arith.subf %197, %213 : vector<8x128xf32>
    %cst_131 = arith.constant 9.99999974E-6 : f32
    %215 = vector.broadcast %cst_131 : f32 to vector<8x1xf32>
    %216 = arith.addf %212, %215 : vector<8x1xf32>
    %217 = math.rsqrt %216 : vector<8x1xf32>
    %218 = vector.broadcast %217 : vector<8x1xf32> to vector<8x128xf32>
    %219 = arith.mulf %214, %218 : vector<8x128xf32>
    %220 = vector.broadcast %198 : vector<1x128xf32> to vector<8x128xf32>
    %221 = arith.mulf %219, %220 : vector<8x128xf32>
    %222 = vector.broadcast %199 : vector<1x128xf32> to vector<8x128xf32>
    %223 = arith.addf %221, %222 : vector<8x128xf32>
    %224 = arith.truncf %223 : vector<8x128xf32> to vector<8x128xbf16>
    %c0_132 = arith.constant 0 : index
    %c0_133 = arith.constant 0 : index
    %225 = vector.load %arg14[%c0_132, %c0_133] : memref<128x256xbf16, #tpu.memory_space<vmem>>, vector<128x256xbf16>
    %cst_134 = arith.constant dense<0.000000e+00> : vector<8x256xf32>
    %226 = tpu.matmul %224, %225, %cst_134 {dimension_numbers = #tpu.dot_dimension_numbers<[1], [0], [0], [1], [0, 0, 1, 1], [], []>} : vector<8x128xbf16>, vector<128x256xbf16>, vector<8x256xf32> -> vector<8x256xf32>
    %c0_135 = arith.constant 0 : index
    %c0_136 = arith.constant 0 : index
    %227 = vector.load %arg15[%c0_135, %c0_136] : memref<1x256xf32, #tpu.memory_space<vmem>>, vector<1x256xf32>
    %228 = vector.broadcast %227 : vector<1x256xf32> to vector<8x256xf32>
    %229 = arith.addf %226, %228 : vector<8x256xf32>
    %cst_137 = arith.constant 0.000000e+00 : f32
    %230 = vector.broadcast %cst_137 : f32 to vector<8x256xf32>
    %231 = arith.maximumf %229, %230 : vector<8x256xf32>
    %232 = arith.truncf %231 : vector<8x256xf32> to vector<8x256xbf16>
    %c0_138 = arith.constant 0 : index
    %c0_139 = arith.constant 0 : index
    %233 = vector.load %arg16[%c0_138, %c0_139] : memref<256x128xbf16, #tpu.memory_space<vmem>>, vector<256x128xbf16>
    %cst_140 = arith.constant dense<0.000000e+00> : vector<8x128xf32>
    %234 = tpu.matmul %232, %233, %cst_140 {dimension_numbers = #tpu.dot_dimension_numbers<[1], [0], [0], [1], [0, 0, 1, 1], [], []>} : vector<8x256xbf16>, vector<256x128xbf16>, vector<8x128xf32> -> vector<8x128xf32>
    %c0_141 = arith.constant 0 : index
    %c0_142 = arith.constant 0 : index
    %235 = vector.load %arg17[%c0_141, %c0_142] : memref<1x128xf32, #tpu.memory_space<vmem>>, vector<1x128xf32>
    %236 = vector.broadcast %235 : vector<1x128xf32> to vector<8x128xf32>
    %237 = arith.addf %234, %236 : vector<8x128xf32>
    %238 = arith.addf %223, %237 : vector<8x128xf32>
    %c0_143 = arith.constant 0 : index
    %c0_144 = arith.constant 0 : index
    %239 = vector.load %arg18[%c0_143, %c0_144] : memref<1x128xf32, #tpu.memory_space<vmem>>, vector<1x128xf32>
    %c0_145 = arith.constant 0 : index
    %c0_146 = arith.constant 0 : index
    %240 = vector.load %arg19[%c0_145, %c0_146] : memref<1x128xf32, #tpu.memory_space<vmem>>, vector<1x128xf32>
    %cst_147 = arith.constant dense<0.000000e+00> : vector<8xf32>
    %241 = vector.multi_reduction <add>, %238, %cst_147 [1] : vector<8x128xf32> to vector<8xf32>
    %242 = vector.shape_cast %241 : vector<8xf32> to vector<8x1xf32>
    %cst_148 = arith.constant 1.280000e+02 : f32
    %243 = vector.broadcast %cst_148 : f32 to vector<8x1xf32>
    %244 = arith.divf %242, %243 : vector<8x1xf32>
    %245 = vector.broadcast %244 : vector<8x1xf32> to vector<8x128xf32>
    %246 = arith.subf %238, %245 : vector<8x128xf32>
    %247 = vector.broadcast %244 : vector<8x1xf32> to vector<8x128xf32>
    %248 = arith.subf %238, %247 : vector<8x128xf32>
    %249 = arith.mulf %246, %248 : vector<8x128xf32>
    %cst_149 = arith.constant dense<0.000000e+00> : vector<8xf32>
    %250 = vector.multi_reduction <add>, %249, %cst_149 [1] : vector<8x128xf32> to vector<8xf32>
    %251 = vector.shape_cast %250 : vector<8xf32> to vector<8x1xf32>
    %cst_150 = arith.constant 1.280000e+02 : f32
    %252 = vector.broadcast %cst_150 : f32 to vector<8x1xf32>
    %253 = arith.divf %251, %252 : vector<8x1xf32>
    %254 = vector.broadcast %244 : vector<8x1xf32> to vector<8x128xf32>
    %255 = arith.subf %238, %254 : vector<8x128xf32>
    %cst_151 = arith.constant 9.99999974E-6 : f32
    %256 = vector.broadcast %cst_151 : f32 to vector<8x1xf32>
    %257 = arith.addf %253, %256 : vector<8x1xf32>
    %258 = math.rsqrt %257 : vector<8x1xf32>
    %259 = vector.broadcast %258 : vector<8x1xf32> to vector<8x128xf32>
    %260 = arith.mulf %255, %259 : vector<8x128xf32>
    %261 = vector.broadcast %239 : vector<1x128xf32> to vector<8x128xf32>
    %262 = arith.mulf %260, %261 : vector<8x128xf32>
    %263 = vector.broadcast %240 : vector<1x128xf32> to vector<8x128xf32>
    %264 = arith.addf %262, %263 : vector<8x128xf32>
    %265 = vector.shape_cast %264 : vector<8x128xf32> to vector<1x8x128xf32>
    %c0_152 = arith.constant 0 : index
    %c0_153 = arith.constant 0 : index
    %c0_154 = arith.constant 0 : index
    %266 = vector.load %arg20[%c0_152, %c0_153, %c0_154] : memref<1x8x128xf32, #tpu.memory_space<vmem>>, vector<1x8x128xf32>
    tpu.vector_store %arg20[%c0_152, %c0_153, %c0_154], %265 {strides = array<i32>} : memref<1x8x128xf32, #tpu.memory_space<vmem>>, vector<1x8x128xf32>,
    return
  }
  func.func @transform_0(%arg0: i32) -> (i32, i32, i32) {
    %c0_i32 = arith.constant 0 : i32
    %c0_i32_0 = arith.constant 0 : i32
    %c0_i32_1 = arith.constant 0 : i32
    return %arg0, %c0_i32, %c0_i32_0 : i32, i32, i32
  }
  func.func @transform_1(%arg0: i32) -> (i32, i32, i32) {
    %c0_i32 = arith.constant 0 : i32
    %c0_i32_0 = arith.constant 0 : i32
    %c0_i32_1 = arith.constant 0 : i32
    return %arg0, %c0_i32, %c0_i32_0 : i32, i32, i32
  }
  func.func @transform_2(%arg0: i32) -> (i32, i32, i32) {
    %c0_i32 = arith.constant 0 : i32
    %c0_i32_0 = arith.constant 0 : i32
    %c0_i32_1 = arith.constant 0 : i32
    return %arg0, %c0_i32, %c0_i32_0 : i32, i32, i32
  }
  func.func @transform_3(%arg0: i32) -> (i32, i32, i32) {
    %c0_i32 = arith.constant 0 : i32
    %c0_i32_0 = arith.constant 0 : i32
    %c0_i32_1 = arith.constant 0 : i32
    %c0_i32_2 = arith.constant 0 : i32
    return %c0_i32, %c0_i32_0, %c0_i32_1 : i32, i32, i32
  }
  func.func @transform_4(%arg0: i32) -> (i32, i32, i32) {
    %c0_i32 = arith.constant 0 : i32
    %c0_i32_0 = arith.constant 0 : i32
    %c0_i32_1 = arith.constant 0 : i32
    %c0_i32_2 = arith.constant 0 : i32
    return %c0_i32, %c0_i32_0, %c0_i32_1 : i32, i32, i32
  }
  func.func @transform_5(%arg0: i32) -> (i32, i32, i32) {
    %c0_i32 = arith.constant 0 : i32
    %c0_i32_0 = arith.constant 0 : i32
    %c0_i32_1 = arith.constant 0 : i32
    %c0_i32_2 = arith.constant 0 : i32
    return %c0_i32, %c0_i32_0, %c0_i32_1 : i32, i32, i32
  }
  func.func @transform_6(%arg0: i32) -> (i32, i32, i32) {
    %c0_i32 = arith.constant 0 : i32
    %c0_i32_0 = arith.constant 0 : i32
    %c0_i32_1 = arith.constant 0 : i32
    %c0_i32_2 = arith.constant 0 : i32
    return %c0_i32, %c0_i32_0, %c0_i32_1 : i32, i32, i32
  }
  func.func @transform_7(%arg0: i32) -> (i32, i32, i32) {
    %c0_i32 = arith.constant 0 : i32
    %c0_i32_0 = arith.constant 0 : i32
    %c0_i32_1 = arith.constant 0 : i32
    %c0_i32_2 = arith.constant 0 : i32
    return %c0_i32, %c0_i32_0, %c0_i32_1 : i32, i32, i32
  }
  func.func @transform_8(%arg0: i32) -> (i32, i32, i32) {
    %c0_i32 = arith.constant 0 : i32
    %c0_i32_0 = arith.constant 0 : i32
    %c0_i32_1 = arith.constant 0 : i32
    %c0_i32_2 = arith.constant 0 : i32
    return %c0_i32, %c0_i32_0, %c0_i32_1 : i32, i32, i32
  }
  func.func @transform_9(%arg0: i32) -> (i32, i32, i32) {
    %c0_i32 = arith.constant 0 : i32
    %c0_i32_0 = arith.constant 0 : i32
    %c0_i32_1 = arith.constant 0 : i32
    %c0_i32_2 = arith.constant 0 : i32
    return %c0_i32, %c0_i32_0, %c0_i32_1 : i32, i32, i32
  }
  func.func @transform_10(%arg0: i32) -> (i32, i32) {
    %c0_i32 = arith.constant 0 : i32
    %c0_i32_0 = arith.constant 0 : i32
    %c0_i32_1 = arith.constant 0 : i32
    return %c0_i32, %c0_i32_0 : i32, i32
  }
  func.func @transform_11(%arg0: i32) -> (i32, i32) {
    %c0_i32 = arith.constant 0 : i32
    %c0_i32_0 = arith.constant 0 : i32
    %c0_i32_1 = arith.constant 0 : i32
    return %c0_i32, %c0_i32_0 : i32, i32
  }
  func.func @transform_12(%arg0: i32) -> (i32, i32) {
    %c0_i32 = arith.constant 0 : i32
    %c0_i32_0 = arith.constant 0 : i32
    %c0_i32_1 = arith.constant 0 : i32
    return %c0_i32, %c0_i32_0 : i32, i32
  }
  func.func @transform_13(%arg0: i32) -> (i32, i32) {
    %c0_i32 = arith.constant 0 : i32
    %c0_i32_0 = arith.constant 0 : i32
    %c0_i32_1 = arith.constant 0 : i32
    return %c0_i32, %c0_i32_0 : i32, i32
  }
  func.func @transform_14(%arg0: i32) -> (i32, i32) {
    %c0_i32 = arith.constant 0 : i32
    %c0_i32_0 = arith.constant 0 : i32
    %c0_i32_1 = arith.constant 0 : i32
    return %c0_i32, %c0_i32_0 : i32, i32
  }
  func.func @transform_15(%arg0: i32) -> (i32, i32) {
    %c0_i32 = arith.constant 0 : i32
    %c0_i32_0 = arith.constant 0 : i32
    %c0_i32_1 = arith.constant 0 : i32
    return %c0_i32, %c0_i32_0 : i32, i32
  }
  func.func @transform_16(%arg0: i32) -> (i32, i32) {
    %c0_i32 = arith.constant 0 : i32
    %c0_i32_0 = arith.constant 0 : i32
    %c0_i32_1 = arith.constant 0 : i32
    return %c0_i32, %c0_i32_0 : i32, i32
  }
  func.func @transform_17(%arg0: i32) -> (i32, i32) {
    %c0_i32 = arith.constant 0 : i32
    %c0_i32_0 = arith.constant 0 : i32
    %c0_i32_1 = arith.constant 0 : i32
    return %c0_i32, %c0_i32_0 : i32, i32
  }
  func.func @transform_18(%arg0: i32) -> (i32, i32) {
    %c0_i32 = arith.constant 0 : i32
    %c0_i32_0 = arith.constant 0 : i32
    %c0_i32_1 = arith.constant 0 : i32
    return %c0_i32, %c0_i32_0 : i32, i32
  }
  func.func @transform_19(%arg0: i32) -> (i32, i32, i32) {
    %c0_i32 = arith.constant 0 : i32
    %c0_i32_0 = arith.constant 0 : i32
    %c0_i32_1 = arith.constant 0 : i32
    return %arg0, %c0_i32, %c0_i32_0 : i32, i32, i32
  }
}

</mosaic_0001>

<llo_original>
// kernel: forward.1
$region0: #{forward.1}
  #allocation0 [shape = 'u32[]', space=smem, size = 0x4, offset = 0x4, fixed_abs, tag = 'smem constant byte address 0x4 - core index']
  #allocation1 [shape = 'u32[144,128]{1,0:T(1,128)}', space=vmem, size = 0x12000, scoped, tag = 'internal scratch']
  %s0 = inlined_call_operand.vmem [shape: f32[2,8,128], index: 0, kind: input, shape index: {}]
  %s1 = inlined_call_operand.vmem [shape: f32[2,8,128], index: 1, kind: input, shape index: {}]
  %s2 = inlined_call_operand.vmem [shape: f32[2,8,128], index: 2, kind: input, shape index: {}]
  %s3 = inlined_call_operand.vmem [shape: bf16[4,128,32], index: 3, kind: input, shape index: {}]
  %s4 = inlined_call_operand.vmem [shape: f32[4,1,32], index: 4, kind: input, shape index: {}]
  %s5 = inlined_call_operand.vmem [shape: bf16[4,128,32], index: 5, kind: input, shape index: {}]
  %s6 = inlined_call_operand.vmem [shape: f32[4,1,32], index: 6, kind: input, shape index: {}]
  %s7 = inlined_call_operand.vmem [shape: bf16[4,128,32], index: 7, kind: input, shape index: {}]
  %s8 = inlined_call_operand.vmem [shape: f32[4,1,32], index: 8, kind: input, shape index: {}]
  %s9 = inlined_call_operand.vmem [shape: bf16[4,32,128], index: 9, kind: input, shape index: {}]
  %s10 = inlined_call_operand.vmem [shape: f32[1,128], index: 10, kind: input, shape index: {}]
  %s11 = inlined_call_operand.vmem [shape: f32[1,128], index: 11, kind: input, shape index: {}]
  %s12 = inlined_call_operand.vmem [shape: f32[1,128], index: 12, kind: input, shape index: {}]
  %s13 = inlined_call_operand.vmem [shape: bf16[128,256], index: 13, kind: input, shape index: {}]
  %s14 = inlined_call_operand.vmem [shape: f32[1,256], index: 14, kind: input, shape index: {}]
  %s15 = inlined_call_operand.vmem [shape: bf16[256,128], index: 15, kind: input, shape index: {}]
  %s16 = inlined_call_operand.vmem [shape: f32[1,128], index: 16, kind: input, shape index: {}]
  %s17 = inlined_call_operand.vmem [shape: f32[1,128], index: 17, kind: input, shape index: {}]
  %s18 = inlined_call_operand.vmem [shape: f32[1,128], index: 18, kind: input, shape index: {}]
  %s19 = inlined_call_operand.hbm [shape: f32[2,8,128], index: 19, kind: output, shape index: {}]
  %s20 = sld [smem:[#allocation0]]
  $region109: #{forward.1} parent=0
    _
  %s22 = ssub.s32 1, %s20
  %s23 = scalar_select 0, %s22, %s20
  $region1: #{forward.1} parent=0
    #allocation2 [shape = 'u8[8192]{0}', space=vmem, size = 0x2000, scoped, tag = 'output window, operand 0']
    #allocation3 [shape = 's32[2]{0}', space=sflag, size = 0x8, scoped, tag = 'scoped memory for forward.1']
    %24 = vsyncpa [#allocation3], 0
    %s25 = scalar_lea.sflag [#allocation3], 1
    %26 = vsyncpa %s25, 0
    loop: start=0, step=1, limit=4
    $region2: #{forward.1} parent=1 // loop_pre_header
      _
    $region3: #{forward.1} parent=1 // loop_header
      %s28 = sphi 0, %s32
      %p29 = scmp.ge.s32.totalorder %s28, 4
      %s38 = sphi 0, %s40
      %s41 = sphi 0, %s38
      %s42 = sphi 0, %s41
      %s58 = sphi 0, %s42
      %s64 = sphi 0, %s66
      %s67 = sphi 0, %s64
      %s68 = sphi 0, %s67
      %s84 = sphi 0, %s68
      %s90 = sphi 0, %s92
      %s93 = sphi 0, %s90
      %s94 = sphi 0, %s93
      %s110 = sphi 0, %s94
      %s114 = sphi 0, %s114
      %s116 = sphi 0, %s114
      %s117 = sphi 0, %s116
      %s131 = sphi 0, %s117
      %s135 = sphi 0, %s135
      %s137 = sphi 0, %s135
      %s138 = sphi 0, %s137
      %s152 = sphi 0, %s138
      %s156 = sphi 0, %s156
      %s158 = sphi 0, %s156
      %s159 = sphi 0, %s158
      %s173 = sphi 0, %s159
      %s177 = sphi 0, %s177
      %s179 = sphi 0, %s177
      %s180 = sphi 0, %s179
      %s194 = sphi 0, %s180
      %s198 = sphi 0, %s198
      %s200 = sphi 0, %s198
      %s201 = sphi 0, %s200
      %s215 = sphi 0, %s201
      %s219 = sphi 0, %s219
      %s221 = sphi 0, %s219
      %s222 = sphi 0, %s221
      %s236 = sphi 0, %s222
      %s240 = sphi 0, %s240
      %s242 = sphi 0, %s240
      %s243 = sphi 0, %s242
      %s257 = sphi 0, %s243
      %s261 = sphi 0, %s261
      %s263 = sphi 0, %s261
      %s264 = sphi 0, %s263
      %s278 = sphi 0, %s264
      %s282 = sphi 0, %s282
      %s284 = sphi 0, %s282
      %s285 = sphi 0, %s284
      %s299 = sphi 0, %s285
      %s303 = sphi 0, %s303
      %s305 = sphi 0, %s303
      %s306 = sphi 0, %s305
      %s320 = sphi 0, %s306
      %s324 = sphi 0, %s324
      %s326 = sphi 0, %s324
      %s327 = sphi 0, %s326
      %s341 = sphi 0, %s327
      %s345 = sphi 0, %s345
      %s347 = sphi 0, %s345
      %s348 = sphi 0, %s347
      %s362 = sphi 0, %s348
      %s366 = sphi 0, %s366
      %s368 = sphi 0, %s366
      %s369 = sphi 0, %s368
      %s383 = sphi 0, %s369
      %s387 = sphi 0, %s387
      %s389 = sphi 0, %s387
      %s390 = sphi 0, %s389
      %s404 = sphi 0, %s390
      %s408 = sphi 0, %s408
      %s410 = sphi 0, %s408
      %s411 = sphi 0, %s410
      %s425 = sphi 0, %s411
      %s429 = sphi 0, %s429
      %s431 = sphi 0, %s429
      %s432 = sphi 0, %s431
      %s446 = sphi 0, %s432
      %s452 = sphi 0, %s454
      %s455 = sphi 0, %s452
      %s456 = sphi 0, %s455
      %s472 = sphi 0, %s456
    $region4: #{forward.1} parent=1 // loop_header_branch
      %31 = sbr.rel (%p29) target = $region8
    $region5: #{forward.1} parent=1 // loop_body
      %s33 = ssub.s32 %s28, 1
      %s34 = ssub.s32 %s28, 2
      %s35 = sadd.s32 %s28, 1
      %s36 = ssub.s32 %s28, %s35
      %p37 = scmp.eq.s32.totalorder %s36, 0
      %s39 = sadd.s32 %s38, 1
      %s40 = scalar_select %p37, %s38, %s39
      %p43 = pneg %p37
      %p44 = scmp.eq.s32.totalorder %s28, 1
      %p45 = por %p43, %p44
      %p46 = scmp.ne.s32.totalorder %s38, %s41
      %p47 = scmp.eq.s32.totalorder %s28, 0
      %p48 = por %p46, %p47
      %p49 = scmp.ne.s32.totalorder %s38, %s41
      %p50 = scmp.eq.s32.totalorder %s33, 1
      %p51 = por %p49, %p50
      %p52 = scmp.ne.s32.totalorder %s41, %s42
      %p53 = scmp.eq.s32.totalorder %s33, 0
      %p54 = por %p52, %p53
      %p55 = scmp.ne.s32.totalorder %s41, %s42
      %p56 = scmp.eq.s32.totalorder %s34, 1
      %p57 = por %p55, %p56
      %p59 = scmp.ne.s32.totalorder %s42, %s58
      %p60 = scmp.eq.s32.totalorder %s34, 0
      %p61 = por %p59, %p60
      %s62 = ssub.s32 %s28, %s35
      %p63 = scmp.eq.s32.totalorder %s62, 0
      %s65 = sadd.s32 %s64, 1
      %s66 = scalar_select %p63, %s64, %s65
      %p69 = pneg %p63
      %p70 = scmp.eq.s32.totalorder %s28, 1
      %p71 = por %p69, %p70
      %p72 = scmp.ne.s32.totalorder %s64, %s67
      %p73 = scmp.eq.s32.totalorder %s28, 0
      %p74 = por %p72, %p73
      %p75 = scmp.ne.s32.totalorder %s64, %s67
      %p76 = scmp.eq.s32.totalorder %s33, 1
      %p77 = por %p75, %p76
      %p78 = scmp.ne.s32.totalorder %s67, %s68
      %p79 = scmp.eq.s32.totalorder %s33, 0
      %p80 = por %p78, %p79
      %p81 = scmp.ne.s32.totalorder %s67, %s68
      %p82 = scmp.eq.s32.totalorder %s34, 1
      %p83 = por %p81, %p82
      %p85 = scmp.ne.s32.totalorder %s68, %s84
      %p86 = scmp.eq.s32.totalorder %s34, 0
      %p87 = por %p85, %p86
      %s88 = ssub.s32 %s28, %s35
      %p89 = scmp.eq.s32.totalorder %s88, 0
      %s91 = sadd.s32 %s90, 1
      %s92 = scalar_select %p89, %s90, %s91
      %p95 = pneg %p89
      %p96 = scmp.eq.s32.totalorder %s28, 1
      %p97 = por %p95, %p96
      %p98 = scmp.ne.s32.totalorder %s90, %s93
      %p99 = scmp.eq.s32.totalorder %s28, 0
      %p100 = por %p98, %p99
      %p101 = scmp.ne.s32.totalorder %s90, %s93
      %p102 = scmp.eq.s32.totalorder %s33, 1
      %p103 = por %p101, %p102
      %p104 = scmp.ne.s32.totalorder %s93, %s94
      %p105 = scmp.eq.s32.totalorder %s33, 0
      %p106 = por %p104, %p105
      %p107 = scmp.ne.s32.totalorder %s93, %s94
      %p108 = scmp.eq.s32.totalorder %s34, 1
      %p109 = por %p107, %p108
      %p111 = scmp.ne.s32.totalorder %s94, %s110
      %p112 = scmp.eq.s32.totalorder %s34, 0
      %p113 = por %p111, %p112
      %s115 = sadd.s32 %s114, 1
      %p118 = scmp.eq.s32.totalorder %s28, 1
      %p119 = scmp.ne.s32.totalorder %s114, %s116
      %p120 = scmp.eq.s32.totalorder %s28, 0
      %p121 = por %p119, %p120
      %p122 = scmp.ne.s32.totalorder %s114, %s116
      %p123 = scmp.eq.s32.totalorder %s33, 1
      %p124 = por %p122, %p123
      %p125 = scmp.ne.s32.totalorder %s116, %s117
      %p126 = scmp.eq.s32.totalorder %s33, 0
      %p127 = por %p125, %p126
      %p128 = scmp.ne.s32.totalorder %s116, %s117
      %p129 = scmp.eq.s32.totalorder %s34, 1
      %p130 = por %p128, %p129
      %p132 = scmp.ne.s32.totalorder %s117, %s131
      %p133 = scmp.eq.s32.totalorder %s34, 0
      %p134 = por %p132, %p133
      %s136 = sadd.s32 %s135, 1
      %p139 = scmp.eq.s32.totalorder %s28, 1
      %p140 = scmp.ne.s32.totalorder %s135, %s137
      %p141 = scmp.eq.s32.totalorder %s28, 0
      %p142 = por %p140, %p141
      %p143 = scmp.ne.s32.totalorder %s135, %s137
      %p144 = scmp.eq.s32.totalorder %s33, 1
      %p145 = por %p143, %p144
      %p146 = scmp.ne.s32.totalorder %s137, %s138
      %p147 = scmp.eq.s32.totalorder %s33, 0
      %p148 = por %p146, %p147
      %p149 = scmp.ne.s32.totalorder %s137, %s138
      %p150 = scmp.eq.s32.totalorder %s34, 1
      %p151 = por %p149, %p150
      %p153 = scmp.ne.s32.totalorder %s138, %s152
      %p154 = scmp.eq.s32.totalorder %s34, 0
      %p155 = por %p153, %p154
      %s157 = sadd.s32 %s156, 1
      %p160 = scmp.eq.s32.totalorder %s28, 1
      %p161 = scmp.ne.s32.totalorder %s156, %s158
      %p162 = scmp.eq.s32.totalorder %s28, 0
      %p163 = por %p161, %p162
      %p164 = scmp.ne.s32.totalorder %s156, %s158
      %p165 = scmp.eq.s32.totalorder %s33, 1
      %p166 = por %p164, %p165
      %p167 = scmp.ne.s32.totalorder %s158, %s159
      %p168 = scmp.eq.s32.totalorder %s33, 0
      %p169 = por %p167, %p168
      %p170 = scmp.ne.s32.totalorder %s158, %s159
      %p171 = scmp.eq.s32.totalorder %s34, 1
      %p172 = por %p170, %p171
      %p174 = scmp.ne.s32.totalorder %s159, %s173
      %p175 = scmp.eq.s32.totalorder %s34, 0
      %p176 = por %p174, %p175
      %s178 = sadd.s32 %s177, 1
      %p181 = scmp.eq.s32.totalorder %s28, 1
      %p182 = scmp.ne.s32.totalorder %s177, %s179
      %p183 = scmp.eq.s32.totalorder %s28, 0
      %p184 = por %p182, %p183
      %p185 = scmp.ne.s32.totalorder %s177, %s179
      %p186 = scmp.eq.s32.totalorder %s33, 1
      %p187 = por %p185, %p186
      %p188 = scmp.ne.s32.totalorder %s179, %s180
      %p189 = scmp.eq.s32.totalorder %s33, 0
      %p190 = por %p188, %p189
      %p191 = scmp.ne.s32.totalorder %s179, %s180
      %p192 = scmp.eq.s32.totalorder %s34, 1
      %p193 = por %p191, %p192
      %p195 = scmp.ne.s32.totalorder %s180, %s194
      %p196 = scmp.eq.s32.totalorder %s34, 0
      %p197 = por %p195, %p196
      %s199 = sadd.s32 %s198, 1
      %p202 = scmp.eq.s32.totalorder %s28, 1
      %p203 = scmp.ne.s32.totalorder %s198, %s200
      %p204 = scmp.eq.s32.totalorder %s28, 0
      %p205 = por %p203, %p204
      %p206 = scmp.ne.s32.totalorder %s198, %s200
      %p207 = scmp.eq.s32.totalorder %s33, 1
      %p208 = por %p206, %p207
      %p209 = scmp.ne.s32.totalorder %s200, %s201
      %p210 = scmp.eq.s32.totalorder %s33, 0
      %p211 = por %p209, %p210
      %p212 = scmp.ne.s32.totalorder %s200, %s201
      %p213 = scmp.eq.s32.totalorder %s34, 1
      %p214 = por %p212, %p213
      %p216 = scmp.ne.s32.totalorder %s201, %s215
      %p217 = scmp.eq.s32.totalorder %s34, 0
      %p218 = por %p216, %p217
      %s220 = sadd.s32 %s219, 1
      %p223 = scmp.eq.s32.totalorder %s28, 1
      %p224 = scmp.ne.s32.totalorder %s219, %s221
      %p225 = scmp.eq.s32.totalorder %s28, 0
      %p226 = por %p224, %p225
      %p227 = scmp.ne.s32.totalorder %s219, %s221
      %p228 = scmp.eq.s32.totalorder %s33, 1
      %p229 = por %p227, %p228
      %p230 = scmp.ne.s32.totalorder %s221, %s222
      %p231 = scmp.eq.s32.totalorder %s33, 0
      %p232 = por %p230, %p231
      %p233 = scmp.ne.s32.totalorder %s221, %s222
      %p234 = scmp.eq.s32.totalorder %s34, 1
      %p235 = por %p233, %p234
      %p237 = scmp.ne.s32.totalorder %s222, %s236
      %p238 = scmp.eq.s32.totalorder %s34, 0
      %p239 = por %p237, %p238
      %s241 = sadd.s32 %s240, 1
      %p244 = scmp.eq.s32.totalorder %s28, 1
      %p245 = scmp.ne.s32.totalorder %s240, %s242
      %p246 = scmp.eq.s32.totalorder %s28, 0
      %p247 = por %p245, %p246
      %p248 = scmp.ne.s32.totalorder %s240, %s242
      %p249 = scmp.eq.s32.totalorder %s33, 1
      %p250 = por %p248, %p249
      %p251 = scmp.ne.s32.totalorder %s242, %s243
      %p252 = scmp.eq.s32.totalorder %s33, 0
      %p253 = por %p251, %p252
      %p254 = scmp.ne.s32.totalorder %s242, %s243
      %p255 = scmp.eq.s32.totalorder %s34, 1
      %p256 = por %p254, %p255
      %p258 = scmp.ne.s32.totalorder %s243, %s257
      %p259 = scmp.eq.s32.totalorder %s34, 0
      %p260 = por %p258, %p259
      %s262 = sadd.s32 %s261, 1
      %p265 = scmp.eq.s32.totalorder %s28, 1
      %p266 = scmp.ne.s32.totalorder %s261, %s263
      %p267 = scmp.eq.s32.totalorder %s28, 0
      %p268 = por %p266, %p267
      %p269 = scmp.ne.s32.totalorder %s261, %s263
      %p270 = scmp.eq.s32.totalorder %s33, 1
      %p271 = por %p269, %p270
      %p272 = scmp.ne.s32.totalorder %s263, %s264
      %p273 = scmp.eq.s32.totalorder %s33, 0
      %p274 = por %p272, %p273
      %p275 = scmp.ne.s32.totalorder %s263, %s264
      %p276 = scmp.eq.s32.totalorder %s34, 1
      %p277 = por %p275, %p276
      %p279 = scmp.ne.s32.totalorder %s264, %s278
      %p280 = scmp.eq.s32.totalorder %s34, 0
      %p281 = por %p279, %p280
      %s283 = sadd.s32 %s282, 1
      %p286 = scmp.eq.s32.totalorder %s28, 1
      %p287 = scmp.ne.s32.totalorder %s282, %s284
      %p288 = scmp.eq.s32.totalorder %s28, 0
      %p289 = por %p287, %p288
      %p290 = scmp.ne.s32.totalorder %s282, %s284
      %p291 = scmp.eq.s32.totalorder %s33, 1
      %p292 = por %p290, %p291
      %p293 = scmp.ne.s32.totalorder %s284, %s285
      %p294 = scmp.eq.s32.totalorder %s33, 0
      %p295 = por %p293, %p294
      %p296 = scmp.ne.s32.totalorder %s284, %s285
      %p297 = scmp.eq.s32.totalorder %s34, 1
      %p298 = por %p296, %p297
      %p300 = scmp.ne.s32.totalorder %s285, %s299
      %p301 = scmp.eq.s32.totalorder %s34, 0
      %p302 = por %p300, %p301
      %s304 = sadd.s32 %s303, 1
      %p307 = scmp.eq.s32.totalorder %s28, 1
      %p308 = scmp.ne.s32.totalorder %s303, %s305
      %p309 = scmp.eq.s32.totalorder %s28, 0
      %p310 = por %p308, %p309
      %p311 = scmp.ne.s32.totalorder %s303, %s305
      %p312 = scmp.eq.s32.totalorder %s33, 1
      %p313 = por %p311, %p312
      %p314 = scmp.ne.s32.totalorder %s305, %s306
      %p315 = scmp.eq.s32.totalorder %s33, 0
      %p316 = por %p314, %p315
      %p317 = scmp.ne.s32.totalorder %s305, %s306
      %p318 = scmp.eq.s32.totalorder %s34, 1
      %p319 = por %p317, %p318
      %p321 = scmp.ne.s32.totalorder %s306, %s320
      %p322 = scmp.eq.s32.totalorder %s34, 0
      %p323 = por %p321, %p322
      %s325 = sadd.s32 %s324, 1
      %p328 = scmp.eq.s32.totalorder %s28, 1
      %p329 = scmp.ne.s32.totalorder %s324, %s326
      %p330 = scmp.eq.s32.totalorder %s28, 0
      %p331 = por %p329, %p330
      %p332 = scmp.ne.s32.totalorder %s324, %s326
      %p333 = scmp.eq.s32.totalorder %s33, 1
      %p334 = por %p332, %p333
      %p335 = scmp.ne.s32.totalorder %s326, %s327
      %p336 = scmp.eq.s32.totalorder %s33, 0
      %p337 = por %p335, %p336
      %p338 = scmp.ne.s32.totalorder %s326, %s327
      %p339 = scmp.eq.s32.totalorder %s34, 1
      %p340 = por %p338, %p339
      %p342 = scmp.ne.s32.totalorder %s327, %s341
      %p343 = scmp.eq.s32.totalorder %s34, 0
      %p344 = por %p342, %p343
      %s346 = sadd.s32 %s345, 1
      %p349 = scmp.eq.s32.totalorder %s28, 1
      %p350 = scmp.ne.s32.totalorder %s345, %s347
      %p351 = scmp.eq.s32.totalorder %s28, 0
      %p352 = por %p350, %p351
      %p353 = scmp.ne.s32.totalorder %s345, %s347
      %p354 = scmp.eq.s32.totalorder %s33, 1
      %p355 = por %p353, %p354
      %p356 = scmp.ne.s32.totalorder %s347, %s348
      %p357 = scmp.eq.s32.totalorder %s33, 0
      %p358 = por %p356, %p357
      %p359 = scmp.ne.s32.totalorder %s347, %s348
      %p360 = scmp.eq.s32.totalorder %s34, 1
      %p361 = por %p359, %p360
      %p363 = scmp.ne.s32.totalorder %s348, %s362
      %p364 = scmp.eq.s32.totalorder %s34, 0
      %p365 = por %p363, %p364
      %s367 = sadd.s32 %s366, 1
      %p370 = scmp.eq.s32.totalorder %s28, 1
      %p371 = scmp.ne.s32.totalorder %s366, %s368
      %p372 = scmp.eq.s32.totalorder %s28, 0
      %p373 = por %p371, %p372
      %p374 = scmp.ne.s32.totalorder %s366, %s368
      %p375 = scmp.eq.s32.totalorder %s33, 1
      %p376 = por %p374, %p375
      %p377 = scmp.ne.s32.totalorder %s368, %s369
      %p378 = scmp.eq.s32.totalorder %s33, 0
      %p379 = por %p377, %p378
      %p380 = scmp.ne.s32.totalorder %s368, %s369
      %p381 = scmp.eq.s32.totalorder %s34, 1
      %p382 = por %p380, %p381
      %p384 = scmp.ne.s32.totalorder %s369, %s383
      %p385 = scmp.eq.s32.totalorder %s34, 0
      %p386 = por %p384, %p385
      %s388 = sadd.s32 %s387, 1
      %p391 = scmp.eq.s32.totalorder %s28, 1
      %p392 = scmp.ne.s32.totalorder %s387, %s389
      %p393 = scmp.eq.s32.totalorder %s28, 0
      %p394 = por %p392, %p393
      %p395 = scmp.ne.s32.totalorder %s387, %s389
      %p396 = scmp.eq.s32.totalorder %s33, 1
      %p397 = por %p395, %p396
      %p398 = scmp.ne.s32.totalorder %s389, %s390
      %p399 = scmp.eq.s32.totalorder %s33, 0
      %p400 = por %p398, %p399
      %p401 = scmp.ne.s32.totalorder %s389, %s390
      %p402 = scmp.eq.s32.totalorder %s34, 1
      %p403 = por %p401, %p402
      %p405 = scmp.ne.s32.totalorder %s390, %s404
      %p406 = scmp.eq.s32.totalorder %s34, 0
      %p407 = por %p405, %p406
      %s409 = sadd.s32 %s408, 1
      %p412 = scmp.eq.s32.totalorder %s28, 1
      %p413 = scmp.ne.s32.totalorder %s408, %s410
      %p414 = scmp.eq.s32.totalorder %s28, 0
      %p415 = por %p413, %p414
      %p416 = scmp.ne.s32.totalorder %s408, %s410
      %p417 = scmp.eq.s32.totalorder %s33, 1
      %p418 = por %p416, %p417
      %p419 = scmp.ne.s32.totalorder %s410, %s411
      %p420 = scmp.eq.s32.totalorder %s33, 0
      %p421 = por %p419, %p420
      %p422 = scmp.ne.s32.totalorder %s410, %s411
      %p423 = scmp.eq.s32.totalorder %s34, 1
      %p424 = por %p422, %p423
      %p426 = scmp.ne.s32.totalorder %s411, %s425
      %p427 = scmp.eq.s32.totalorder %s34, 0
      %p428 = por %p426, %p427
      %s430 = sadd.s32 %s429, 1
      %p433 = scmp.eq.s32.totalorder %s28, 1
      %p434 = scmp.ne.s32.totalorder %s429, %s431
      %p435 = scmp.eq.s32.totalorder %s28, 0
      %p436 = por %p434, %p435
      %p437 = scmp.ne.s32.totalorder %s429, %s431
      %p438 = scmp.eq.s32.totalorder %s33, 1
      %p439 = por %p437, %p438
      %p440 = scmp.ne.s32.totalorder %s431, %s432
      %p441 = scmp.eq.s32.totalorder %s33, 0
      %p442 = por %p440, %p441
      %p443 = scmp.ne.s32.totalorder %s431, %s432
      %p444 = scmp.eq.s32.totalorder %s34, 1
      %p445 = por %p443, %p444
      %p447 = scmp.ne.s32.totalorder %s432, %s446
      %p448 = scmp.eq.s32.totalorder %s34, 0
      %p449 = por %p447, %p448
      %s450 = ssub.s32 %s28, %s35
      %p451 = scmp.eq.s32.totalorder %s450, 0
      %s453 = sadd.s32 %s452, 1
      %s454 = scalar_select %p451, %s452, %s453
      %p457 = pneg %p451
      %p458 = scmp.eq.s32.totalorder %s28, 1
      %p459 = por %p457, %p458
      %p460 = scmp.ne.s32.totalorder %s452, %s455
      %p461 = scmp.eq.s32.totalorder %s28, 0
      %p462 = por %p460, %p461
      %p463 = scmp.ne.s32.totalorder %s452, %s455
      %p464 = scmp.eq.s32.totalorder %s33, 1
      %p465 = por %p463, %p464
      %p466 = scmp.ne.s32.totalorder %s455, %s456
      %p467 = scmp.eq.s32.totalorder %s33, 0
      %p468 = por %p466, %p467
      %p469 = scmp.ne.s32.totalorder %s455, %s456
      %p470 = scmp.eq.s32.totalorder %s34, 1
      %p471 = por %p469, %p470
      %p473 = scmp.ne.s32.totalorder %s456, %s472
      %p474 = scmp.eq.s32.totalorder %s34, 0
      %p475 = por %p473, %p474
      %p476 = scmp.le.s32.totalorder 1, %s28
      %p477 = scmp.lt.s32.totalorder %s28, 3
      %p478 = pnand %p476, %p477
      %p479 = pneg %p478
      // Predicated region
      $region9: #{forward.1} parent=5 // pred_check
        _
      $region10: #{forward.1} parent=5 // pred_check_branch
        %481 = sbr.rel (%p478) target = $region12
      $region11: #{forward.1} parent=5 // pred_region
        %s482 = ssub.s32 %s28, 1
        // Predicated region
        $region13: #{forward.1} parent=11 // pred_check
          %p483 = pneg %p127
        $region14: #{forward.1} parent=11 // pred_check_branch
          %485 = sbr.rel (%p483) target = $region16
        $region15: #{forward.1} parent=11 // pred_region
          _
        $region16: #{forward.1} parent=11 // pred_fallthru
          _
        // Predicated region
        $region17: #{forward.1} parent=11 // pred_check
          %p486 = pneg %p148
        $region18: #{forward.1} parent=11 // pred_check_branch
          %488 = sbr.rel (%p486) target = $region20
        $region19: #{forward.1} parent=11 // pred_region
          _
        $region20: #{forward.1} parent=11 // pred_fallthru
          _
        // Predicated region
        $region21: #{forward.1} parent=11 // pred_check
          %p489 = pneg %p169
        $region22: #{forward.1} parent=11 // pred_check_branch
          %491 = sbr.rel (%p489) target = $region24
        $region23: #{forward.1} parent=11 // pred_region
          _
        $region24: #{forward.1} parent=11 // pred_fallthru
          _
        // Predicated region
        $region25: #{forward.1} parent=11 // pred_check
          %p492 = pneg %p190
        $region26: #{forward.1} parent=11 // pred_check_branch
          %494 = sbr.rel (%p492) target = $region28
        $region27: #{forward.1} parent=11 // pred_region
          _
        $region28: #{forward.1} parent=11 // pred_fallthru
          _
        // Predicated region
        $region29: #{forward.1} parent=11 // pred_check
          %p495 = pneg %p211
        $region30: #{forward.1} parent=11 // pred_check_branch
          %497 = sbr.rel (%p495) target = $region32
        $region31: #{forward.1} parent=11 // pred_region
          _
        $region32: #{forward.1} parent=11 // pred_fallthru
          _
        // Predicated region
        $region33: #{forward.1} parent=11 // pred_check
          %p498 = pneg %p232
        $region34: #{forward.1} parent=11 // pred_check_branch
          %500 = sbr.rel (%p498) target = $region36
        $region35: #{forward.1} parent=11 // pred_region
          _
        $region36: #{forward.1} parent=11 // pred_fallthru
          _
        // Predicated region
        $region37: #{forward.1} parent=11 // pred_check
          %p501 = pneg %p253
        $region38: #{forward.1} parent=11 // pred_check_branch
          %503 = sbr.rel (%p501) target = $region40
        $region39: #{forward.1} parent=11 // pred_region
          _
        $region40: #{forward.1} parent=11 // pred_fallthru
          _
        // Predicated region
        $region41: #{forward.1} parent=11 // pred_check
          %p504 = pneg %p274
        $region42: #{forward.1} parent=11 // pred_check_branch
          %506 = sbr.rel (%p504) target = $region44
        $region43: #{forward.1} parent=11 // pred_region
          _
        $region44: #{forward.1} parent=11 // pred_fallthru
          _
        // Predicated region
        $region45: #{forward.1} parent=11 // pred_check
          %p507 = pneg %p295
        $region46: #{forward.1} parent=11 // pred_check_branch
          %509 = sbr.rel (%p507) target = $region48
        $region47: #{forward.1} parent=11 // pred_region
          _
        $region48: #{forward.1} parent=11 // pred_fallthru
          _
        // Predicated region
        $region49: #{forward.1} parent=11 // pred_check
          %p510 = pneg %p316
        $region50: #{forward.1} parent=11 // pred_check_branch
          %512 = sbr.rel (%p510) target = $region52
        $region51: #{forward.1} parent=11 // pred_region
          _
        $region52: #{forward.1} parent=11 // pred_fallthru
          _
        // Predicated region
        $region53: #{forward.1} parent=11 // pred_check
          %p513 = pneg %p337
        $region54: #{forward.1} parent=11 // pred_check_branch
          %515 = sbr.rel (%p513) target = $region56
        $region55: #{forward.1} parent=11 // pred_region
          _
        $region56: #{forward.1} parent=11 // pred_fallthru
          _
        // Predicated region
        $region57: #{forward.1} parent=11 // pred_check
          %p516 = pneg %p358
        $region58: #{forward.1} parent=11 // pred_check_branch
          %518 = sbr.rel (%p516) target = $region60
        $region59: #{forward.1} parent=11 // pred_region
          _
        $region60: #{forward.1} parent=11 // pred_fallthru
          _
        // Predicated region
        $region61: #{forward.1} parent=11 // pred_check
          %p519 = pneg %p379
        $region62: #{forward.1} parent=11 // pred_check_branch
          %521 = sbr.rel (%p519) target = $region64
        $region63: #{forward.1} parent=11 // pred_region
          _
        $region64: #{forward.1} parent=11 // pred_fallthru
          _
        // Predicated region
        $region65: #{forward.1} parent=11 // pred_check
          %p522 = pneg %p400
        $region66: #{forward.1} parent=11 // pred_check_branch
          %524 = sbr.rel (%p522) target = $region68
        $region67: #{forward.1} parent=11 // pred_region
          _
        $region68: #{forward.1} parent=11 // pred_fallthru
          _
        // Predicated region
        $region69: #{forward.1} parent=11 // pred_check
          %p525 = pneg %p421
        $region70: #{forward.1} parent=11 // pred_check_branch
          %527 = sbr.rel (%p525) target = $region72
        $region71: #{forward.1} parent=11 // pred_region
          _
        $region72: #{forward.1} parent=11 // pred_fallthru
          _
        // Predicated region
        $region73: #{forward.1} parent=11 // pred_check
          %p528 = pneg %p442
        $region74: #{forward.1} parent=11 // pred_check_branch
          %530 = sbr.rel (%p528) target = $region76
        $region75: #{forward.1} parent=11 // pred_region
          _
        $region76: #{forward.1} parent=11 // pred_fallthru
          _
      $region12: #{forward.1} parent=5 // pred_fallthru
        _
      %p531 = scmp.lt.s32.totalorder %s28, 2
      // Predicated region
      $region77: #{forward.1} parent=5 // pred_check
        %p532 = pneg %p531
      $region78: #{forward.1} parent=5 // pred_check_branch
        %534 = sbr.rel (%p532) target = $region80
      $region79: #{forward.1} parent=5 // pred_region
        // Predicated region
        $region81: #{forward.1} parent=79 // pred_check
          %p535 = pneg %p48
        $region82: #{forward.1} parent=79 // pred_check_branch
          %537 = sbr.rel (%p535) target = $region84
        $region83: #{forward.1} parent=79 // pred_region
          %p538 = scmp.lt.s32.totalorder %s28, 1
          %s539 = scalar_select %p538, %s28, 1
          %s540 = smul.addr %s539, 8
          %s541 = scalar_lea.vmem %s0, %s540
        $region84: #{forward.1} parent=79 // pred_fallthru
          _
        // Predicated region
        $region85: #{forward.1} parent=79 // pred_check
          %p542 = pneg %p74
        $region86: #{forward.1} parent=79 // pred_check_branch
          %544 = sbr.rel (%p542) target = $region88
        $region87: #{forward.1} parent=79 // pred_region
          %p545 = scmp.lt.s32.totalorder %s28, 1
          %s546 = scalar_select %p545, %s28, 1
          %s547 = smul.addr %s546, 8
          %s548 = scalar_lea.vmem %s1, %s547
        $region88: #{forward.1} parent=79 // pred_fallthru
          _
        // Predicated region
        $region89: #{forward.1} parent=79 // pred_check
          %p549 = pneg %p100
        $region90: #{forward.1} parent=79 // pred_check_branch
          %551 = sbr.rel (%p549) target = $region92
        $region91: #{forward.1} parent=79 // pred_region
          %p552 = scmp.lt.s32.totalorder %s28, 1
          %s553 = scalar_select %p552, %s28, 1
          %s554 = smul.addr %s553, 8
          %s555 = scalar_lea.vmem %s2, %s554
        $region92: #{forward.1} parent=79 // pred_fallthru
          _
      $region80: #{forward.1} parent=5 // pred_fallthru
        _
      %p556 = scmp.le.s32.totalorder 1, %s28
      %p557 = scmp.lt.s32.totalorder %s28, 3
      %p558 = pnand %p556, %p557
      %p559 = pneg %p558
      // Predicated region
      $region93: #{forward.1} parent=5 // pred_check
        _
      $region94: #{forward.1} parent=5 // pred_check_branch
        %561 = sbr.rel (%p558) target = $region96
      $region95: #{forward.1} parent=5 // pred_region
        %s562 = ssub.s32 %s28, 1
        %p563 = scmp.lt.s32.totalorder %s33, 1
        %s564 = scalar_select %p563, %s33, 1
        %s565 = smul.addr %s564, 8
        %s566 = scalar_lea.vmem %s0, %s565
        %p567 = pneg %p54
        %p568 = pneg %p51
        %p569 = scmp.lt.s32.totalorder %s33, 1
        %s570 = scalar_select %p569, %s33, 1
        %s571 = smul.addr %s570, 8
        %s572 = scalar_lea.vmem %s1, %s571
        %p573 = pneg %p80
        %p574 = pneg %p77
        %p575 = scmp.lt.s32.totalorder %s33, 1
        %s576 = scalar_select %p575, %s33, 1
        %s577 = smul.addr %s576, 8
        %s578 = scalar_lea.vmem %s2, %s577
        %p579 = pneg %p106
        %p580 = pneg %p103
        %p581 = pneg %p127
        %p582 = pneg %p124
        %p583 = pneg %p148
        %p584 = pneg %p145
        %p585 = pneg %p169
        %p586 = pneg %p166
        %p587 = pneg %p190
        %p588 = pneg %p187
        %p589 = pneg %p211
        %p590 = pneg %p208
        %p591 = pneg %p232
        %p592 = pneg %p229
        %p593 = pneg %p253
        %p594 = pneg %p250
        %p595 = pneg %p274
        %p596 = pneg %p271
        %p597 = pneg %p295
        %p598 = pneg %p292
        %p599 = pneg %p316
        %p600 = pneg %p313
        %p601 = pneg %p337
        %p602 = pneg %p334
        %p603 = pneg %p358
        %p604 = pneg %p355
        %p605 = pneg %p379
        %p606 = pneg %p376
        %p607 = pneg %p400
        %p608 = pneg %p397
        %p609 = pneg %p421
        %p610 = pneg %p418
        %p611 = pneg %p442
        %p612 = pneg %p439
        %p613 = pneg %p468
        %p614 = pneg %p465
        %s615 = sand.u32 %s455, 1
        %s616 = scalar_lea.sflag [#allocation3], %s615
        %s617 = sand.u32 %s455, 1
        %s618 = smul.addr %s617, 8
        %s619 = scalar_lea.vmem [#allocation2], %s618
        %p620 = scmp.lt.s32.totalorder %s33, 1
        %s621 = scalar_select %p620, %s33, 1
        %s622 = smul.addr %s621, 8
        %s623 = scalar_lea.vmem %s0, %s622
        %p624 = scmp.lt.s32.totalorder %s33, 1
        %s625 = scalar_select %p624, %s33, 1
        %s626 = smul.addr %s625, 8
        %s627 = scalar_lea.vmem %s1, %s626
        %p628 = scmp.lt.s32.totalorder %s33, 1
        %s629 = scalar_select %p628, %s33, 1
        %s630 = smul.addr %s629, 8
        %s631 = scalar_lea.vmem %s2, %s630
        %v633 = vld [vmem:[%s623] sm:$0xff]
        %v634 = vpack.c.bf16 %v633, %v633
        %v635 = vld [vmem:[%s627] sm:$0xff]
        %v636 = vpack.c.bf16 %v635, %v635
        %v637 = vld [vmem:[%s631] sm:$0xff]
        %v638 = vpack.c.bf16 %v637, %v637
        %v639 = vld [vmem:[%s3] sm:$0xf]
        %v640 = vld [vmem:[%s3 + $0x4] sm:$0xf]
        %v641 = vld [vmem:[%s3 + $0x8] sm:$0xf]
        %v642 = vld [vmem:[%s3 + $0xc] sm:$0xf]
        %v643 = vld [vmem:[%s3 + $0x10] sm:$0xf]
        %v644 = vld [vmem:[%s3 + $0x14] sm:$0xf]
        %v645 = vld [vmem:[%s3 + $0x18] sm:$0xf]
        %v646 = vld [vmem:[%s3 + $0x1c] sm:$0xf]
        %v647 = vld [vmem:[%s3 + $0x20] sm:$0xf]
        %v648 = vld [vmem:[%s3 + $0x24] sm:$0xf]
        %v649 = vld [vmem:[%s3 + $0x28] sm:$0xf]
        %v650 = vld [vmem:[%s3 + $0x2c] sm:$0xf]
        %v651 = vld [vmem:[%s3 + $0x30] sm:$0xf]
        %v652 = vld [vmem:[%s3 + $0x34] sm:$0xf]
        %v653 = vld [vmem:[%s3 + $0x38] sm:$0xf]
        %v654 = vld [vmem:[%s3 + $0x3c] sm:$0xf]
        %v655 = vld [vmem:[%s4] sm:$0x1]
        %v657 = vlaneseq
        %v658 = vshrl.u32 %v657, 7
        %v659 = vsub.s32 0, %v658
        %v660 = vrot.slane %v655, %v659
        %v678 = vunpack.c.l.b16 %v639
        %v679 = vunpack.c.l.b16 %v640
        %v680 = vunpack.c.l.b16 %v641
        %v681 = vunpack.c.l.b16 %v642
        %v682 = vunpack.c.l.b16 %v643
        %v683 = vunpack.c.l.b16 %v644
        %v684 = vunpack.c.l.b16 %v645
        %v685 = vunpack.c.l.b16 %v646
        %v686 = vunpack.c.l.b16 %v647
        %v687 = vunpack.c.l.b16 %v648
        %v688 = vunpack.c.l.b16 %v649
        %v689 = vunpack.c.l.b16 %v650
        %v690 = vunpack.c.l.b16 %v651
        %v691 = vunpack.c.l.b16 %v652
        %v692 = vunpack.c.l.b16 %v653
        %v693 = vunpack.c.l.b16 %v654
        %v694 = vpack.c.b16 %v679, %v678
        %v695 = vpack.c.b16 %v681, %v680
        %v696 = vpack.c.b16 %v683, %v682
        %v697 = vpack.c.b16 %v685, %v684
        %v698 = vpack.c.b16 %v687, %v686
        %v699 = vpack.c.b16 %v689, %v688
        %v700 = vpack.c.b16 %v691, %v690
        %v701 = vpack.c.b16 %v693, %v692
        %710 = vmatprep.subr.bf16.mxu0 0
        %711 = vmatpush1.bf16.msra.mxu0 %v694
        %712 = vmatprep.subr.bf16.mxu0 0
        %713 = vmatpush1.bf16.msra.mxu0 %v695
        %714 = vmatprep.subr.bf16.mxu0 0
        %715 = vmatpush1.bf16.msra.mxu0 %v696
        %716 = vmatprep.subr.bf16.mxu0 0
        %717 = vmatpush1.bf16.msra.mxu0 %v697
        %718 = vmatprep.subr.bf16.mxu0 0
        %719 = vmatpush1.bf16.msra.mxu0 %v698
        %720 = vmatprep.subr.bf16.mxu0 0
        %721 = vmatpush1.bf16.msra.mxu0 %v699
        %722 = vmatprep.subr.bf16.mxu0 0
        %723 = vmatpush1.bf16.msra.mxu0 %v700
        %724 = vmatprep.subr.bf16.mxu0 0
        %725 = vmatpush1.bf16.msra.mxu0 %v701
        %726 = vmatprep.subr.bf16.mxu0 0
        %727 = vmatpush1.bf16.msra.mxu0 0
        %728 = vmatprep.subr.bf16.mxu0 0
        %729 = vmatpush1.bf16.msra.mxu0 0
        %730 = vmatprep.subr.bf16.mxu0 0
        %731 = vmatpush1.bf16.msra.mxu0 0
        %732 = vmatprep.subr.bf16.mxu0 0
        %733 = vmatpush1.bf16.msra.mxu0 0
        %734 = vmatprep.subr.bf16.mxu0 0
        %735 = vmatpush1.bf16.msra.mxu0 0
        %736 = vmatprep.subr.bf16.mxu0 0
        %737 = vmatpush1.bf16.msra.mxu0 0
        %738 = vmatprep.subr.bf16.mxu0 0
        %739 = vmatpush1.bf16.msra.mxu0 0
        %740 = vmatprep.subr.bf16.mxu0 0
        %741 = vmatpush1.bf16.msra.mxu0 0
        %742 = vmatprep.mubr.bf16.mxu0 0
        %743 = vmatmul.mubr.bf16.gmra.mrb[0].mxu0 %v634
        %v744 = vpop.f32.mrb[0].mxu0
        %v745 = vadd.f32 %v660, %v744
        %v746 = vpop.f32.mrb[0].mxu0
        %v747 = vpop.f32.mrb[0].mxu0
        %v748 = vpop.f32.mrb[0].mxu0
        %749 = vdwg.mxu0
        %v750 = vld [vmem:[%s5] sm:$0xf]
        %v751 = vld [vmem:[%s5 + $0x4] sm:$0xf]
        %v752 = vld [vmem:[%s5 + $0x8] sm:$0xf]
        %v753 = vld [vmem:[%s5 + $0xc] sm:$0xf]
        %v754 = vld [vmem:[%s5 + $0x10] sm:$0xf]
        %v755 = vld [vmem:[%s5 + $0x14] sm:$0xf]
        %v756 = vld [vmem:[%s5 + $0x18] sm:$0xf]
        %v757 = vld [vmem:[%s5 + $0x1c] sm:$0xf]
        %v758 = vld [vmem:[%s5 + $0x20] sm:$0xf]
        %v759 = vld [vmem:[%s5 + $0x24] sm:$0xf]
        %v760 = vld [vmem:[%s5 + $0x28] sm:$0xf]
        %v761 = vld [vmem:[%s5 + $0x2c] sm:$0xf]
        %v762 = vld [vmem:[%s5 + $0x30] sm:$0xf]
        %v763 = vld [vmem:[%s5 + $0x34] sm:$0xf]
        %v764 = vld [vmem:[%s5 + $0x38] sm:$0xf]
        %v765 = vld [vmem:[%s5 + $0x3c] sm:$0xf]
        %v766 = vld [vmem:[%s6] sm:$0x1]
        %v768 = vlaneseq
        %v769 = vshrl.u32 %v768, 7
        %v770 = vsub.s32 0, %v769
        %v771 = vrot.slane %v766, %v770
        %v789 = vunpack.c.l.b16 %v750
        %v790 = vunpack.c.l.b16 %v751
        %v791 = vunpack.c.l.b16 %v752
        %v792 = vunpack.c.l.b16 %v753
        %v793 = vunpack.c.l.b16 %v754
        %v794 = vunpack.c.l.b16 %v755
        %v795 = vunpack.c.l.b16 %v756
        %v796 = vunpack.c.l.b16 %v757
        %v797 = vunpack.c.l.b16 %v758
        %v798 = vunpack.c.l.b16 %v759
        %v799 = vunpack.c.l.b16 %v760
        %v800 = vunpack.c.l.b16 %v761
        %v801 = vunpack.c.l.b16 %v762
        %v802 = vunpack.c.l.b16 %v763
        %v803 = vunpack.c.l.b16 %v764
        %v804 = vunpack.c.l.b16 %v765
        %v805 = vpack.c.b16 %v790, %v789
        %v806 = vpack.c.b16 %v792, %v791
        %v807 = vpack.c.b16 %v794, %v793
        %v808 = vpack.c.b16 %v796, %v795
        %v809 = vpack.c.b16 %v798, %v797
        %v810 = vpack.c.b16 %v800, %v799
        %v811 = vpack.c.b16 %v802, %v801
        %v812 = vpack.c.b16 %v804, %v803
        %821 = vmatprep.subr.bf16.mxu0 0
        %822 = vmatpush1.bf16.msra.mxu0 %v805
        %823 = vmatprep.subr.bf16.mxu0 0
        %824 = vmatpush1.bf16.msra.mxu0 %v806
        %825 = vmatprep.subr.bf16.mxu0 0
        %826 = vmatpush1.bf16.msra.mxu0 %v807
        %827 = vmatprep.subr.bf16.mxu0 0
        %828 = vmatpush1.bf16.msra.mxu0 %v808
        %829 = vmatprep.subr.bf16.mxu0 0
        %830 = vmatpush1.bf16.msra.mxu0 %v809
        %831 = vmatprep.subr.bf16.mxu0 0
        %832 = vmatpush1.bf16.msra.mxu0 %v810
        %833 = vmatprep.subr.bf16.mxu0 0
        %834 = vmatpush1.bf16.msra.mxu0 %v811
        %835 = vmatprep.subr.bf16.mxu0 0
        %836 = vmatpush1.bf16.msra.mxu0 %v812
        %837 = vmatprep.subr.bf16.mxu0 0
        %838 = vmatpush1.bf16.msra.mxu0 0
        %839 = vmatprep.subr.bf16.mxu0 0
        %840 = vmatpush1.bf16.msra.mxu0 0
        %841 = vmatprep.subr.bf16.mxu0 0
        %842 = vmatpush1.bf16.msra.mxu0 0
        %843 = vmatprep.subr.bf16.mxu0 0
        %844 = vmatpush1.bf16.msra.mxu0 0
        %845 = vmatprep.subr.bf16.mxu0 0
        %846 = vmatpush1.bf16.msra.mxu0 0
        %847 = vmatprep.subr.bf16.mxu0 0
        %848 = vmatpush1.bf16.msra.mxu0 0
        %849 = vmatprep.subr.bf16.mxu0 0
        %850 = vmatpush1.bf16.msra.mxu0 0
        %851 = vmatprep.subr.bf16.mxu0 0
        %852 = vmatpush1.bf16.msra.mxu0 0
        %853 = vmatprep.mubr.bf16.mxu0 0
        %854 = vmatmul.mubr.bf16.gmra.mrb[0].mxu0 %v636
        %v855 = vpop.f32.mrb[0].mxu0
        %v856 = vadd.f32 %v771, %v855
        %v857 = vpop.f32.mrb[0].mxu0
        %v858 = vpop.f32.mrb[0].mxu0
        %v859 = vpop.f32.mrb[0].mxu0
        %860 = vdwg.mxu0
        %v861 = vld [vmem:[%s7] sm:$0xf]
        %v862 = vld [vmem:[%s7 + $0x4] sm:$0xf]
        %v863 = vld [vmem:[%s7 + $0x8] sm:$0xf]
        %v864 = vld [vmem:[%s7 + $0xc] sm:$0xf]
        %v865 = vld [vmem:[%s7 + $0x10] sm:$0xf]
        %v866 = vld [vmem:[%s7 + $0x14] sm:$0xf]
        %v867 = vld [vmem:[%s7 + $0x18] sm:$0xf]
        %v868 = vld [vmem:[%s7 + $0x1c] sm:$0xf]
        %v869 = vld [vmem:[%s7 + $0x20] sm:$0xf]
        %v870 = vld [vmem:[%s7 + $0x24] sm:$0xf]
        %v871 = vld [vmem:[%s7 + $0x28] sm:$0xf]
        %v872 = vld [vmem:[%s7 + $0x2c] sm:$0xf]
        %v873 = vld [vmem:[%s7 + $0x30] sm:$0xf]
        %v874 = vld [vmem:[%s7 + $0x34] sm:$0xf]
        %v875 = vld [vmem:[%s7 + $0x38] sm:$0xf]
        %v876 = vld [vmem:[%s7 + $0x3c] sm:$0xf]
        %v877 = vld [vmem:[%s8] sm:$0x1]
        %v879 = vlaneseq
        %v880 = vshrl.u32 %v879, 7
        %v881 = vsub.s32 0, %v880
        %v882 = vrot.slane %v877, %v881
        %v900 = vunpack.c.l.b16 %v861
        %v901 = vunpack.c.l.b16 %v862
        %v902 = vunpack.c.l.b16 %v863
        %v903 = vunpack.c.l.b16 %v864
        %v904 = vunpack.c.l.b16 %v865
        %v905 = vunpack.c.l.b16 %v866
        %v906 = vunpack.c.l.b16 %v867
        %v907 = vunpack.c.l.b16 %v868
        %v908 = vunpack.c.l.b16 %v869
        %v909 = vunpack.c.l.b16 %v870
        %v910 = vunpack.c.l.b16 %v871
        %v911 = vunpack.c.l.b16 %v872
        %v912 = vunpack.c.l.b16 %v873
        %v913 = vunpack.c.l.b16 %v874
        %v914 = vunpack.c.l.b16 %v875
        %v915 = vunpack.c.l.b16 %v876
        %v916 = vpack.c.b16 %v901, %v900
        %v917 = vpack.c.b16 %v903, %v902
        %v918 = vpack.c.b16 %v905, %v904
        %v919 = vpack.c.b16 %v907, %v906
        %v920 = vpack.c.b16 %v909, %v908
        %v921 = vpack.c.b16 %v911, %v910
        %v922 = vpack.c.b16 %v913, %v912
        %v923 = vpack.c.b16 %v915, %v914
        %932 = vmatprep.subr.bf16.mxu0 0
        %933 = vmatpush1.bf16.msra.mxu0 %v916
        %934 = vmatprep.subr.bf16.mxu0 0
        %935 = vmatpush1.bf16.msra.mxu0 %v917
        %936 = vmatprep.subr.bf16.mxu0 0
        %937 = vmatpush1.bf16.msra.mxu0 %v918
        %938 = vmatprep.subr.bf16.mxu0 0
        %939 = vmatpush1.bf16.msra.mxu0 %v919
        %940 = vmatprep.subr.bf16.mxu0 0
        %941 = vmatpush1.bf16.msra.mxu0 %v920
        %942 = vmatprep.subr.bf16.mxu0 0
        %943 = vmatpush1.bf16.msra.mxu0 %v921
        %944 = vmatprep.subr.bf16.mxu0 0
        %945 = vmatpush1.bf16.msra.mxu0 %v922
        %946 = vmatprep.subr.bf16.mxu0 0
        %947 = vmatpush1.bf16.msra.mxu0 %v923
        %948 = vmatprep.subr.bf16.mxu0 0
        %949 = vmatpush1.bf16.msra.mxu0 0
        %950 = vmatprep.subr.bf16.mxu0 0
        %951 = vmatpush1.bf16.msra.mxu0 0
        %952 = vmatprep.subr.bf16.mxu0 0
        %953 = vmatpush1.bf16.msra.mxu0 0
        %954 = vmatprep.subr.bf16.mxu0 0
        %955 = vmatpush1.bf16.msra.mxu0 0
        %956 = vmatprep.subr.bf16.mxu0 0
        %957 = vmatpush1.bf16.msra.mxu0 0
        %958 = vmatprep.subr.bf16.mxu0 0
        %959 = vmatpush1.bf16.msra.mxu0 0
        %960 = vmatprep.subr.bf16.mxu0 0
        %961 = vmatpush1.bf16.msra.mxu0 0
        %962 = vmatprep.subr.bf16.mxu0 0
        %963 = vmatpush1.bf16.msra.mxu0 0
        %964 = vmatprep.mubr.bf16.mxu0 0
        %965 = vmatmul.mubr.bf16.gmra.mrb[0].mxu0 %v638
        %v966 = vpop.f32.mrb[0].mxu0
        %v967 = vadd.f32 %v882, %v966
        %v968 = vpop.f32.mrb[0].mxu0
        %v969 = vpop.f32.mrb[0].mxu0
        %v970 = vpop.f32.mrb[0].mxu0
        %971 = vdwg.mxu0
        %v972 = vpack.c.bf16 %v745, %v745
        %v973 = vpack.c.bf16 %v856, %v856
        %v974 = vpack.c.bf16 %v967, %v967
        %vm975 = vcmask 261120
        %v977 = vsel %vm975, %v972, 0
        %v980 = vsel %vm975, %v973, 0
        %982 = vmatprep.subr.bf16.mxu0 0
        %983 = vmatpush1.bf16.xpose.msra.mxu0 %v980
        %984 = vmatprep.subr.bf16.mxu0 0
        %985 = vmatpush1.bf16.xpose.msra.mxu0 0
        %986 = vmatprep.subr.bf16.mxu0 0
        %987 = vmatpush1.bf16.xpose.msra.mxu0 0
        %988 = vmatprep.subr.bf16.mxu0 0
        %989 = vmatpush1.bf16.xpose.msra.mxu0 0
        %990 = vmatprep.subr.bf16.mxu0 0
        %991 = vmatpush1.bf16.xpose.msra.mxu0 0
        %992 = vmatprep.subr.bf16.mxu0 0
        %993 = vmatpush1.bf16.xpose.msra.mxu0 0
        %994 = vmatprep.subr.bf16.mxu0 0
        %995 = vmatpush1.bf16.xpose.msra.mxu0 0
        %996 = vmatprep.subr.bf16.mxu0 0
        %997 = vmatpush1.bf16.xpose.msra.mxu0 0
        %998 = vmatprep.subr.bf16.mxu0 0
        %999 = vmatpush1.bf16.xpose.msra.mxu0 0
        %1000 = vmatprep.subr.bf16.mxu0 0
        %1001 = vmatpush1.bf16.xpose.msra.mxu0 0
        %1002 = vmatprep.subr.bf16.mxu0 0
        %1003 = vmatpush1.bf16.xpose.msra.mxu0 0
        %1004 = vmatprep.subr.bf16.mxu0 0
        %1005 = vmatpush1.bf16.xpose.msra.mxu0 0
        %1006 = vmatprep.subr.bf16.mxu0 0
        %1007 = vmatpush1.bf16.xpose.msra.mxu0 0
        %1008 = vmatprep.subr.bf16.mxu0 0
        %1009 = vmatpush1.bf16.xpose.msra.mxu0 0
        %1010 = vmatprep.subr.bf16.mxu0 0
        %1011 = vmatpush1.bf16.xpose.msra.mxu0 0
        %1012 = vmatprep.subr.bf16.mxu0 0
        %1013 = vmatpush1.bf16.xpose.msra.mxu0 0
        %1014 = vmatprep.mubr.bf16.mxu0 0
        %1015 = vmatmul.mubr.bf16.gmra.mrb[0].mxu0 %v977
        %v1016 = vpop.f32.mrb[0].mxu0
        %v1017 = vadd.f32 0.0, %v1016
        %v1018 = vpop.f32.mrb[0].mxu0
        %v1019 = vpop.f32.mrb[0].mxu0
        %v1020 = vpop.f32.mrb[0].mxu0
        %1021 = vdwg.mxu0
        %vm1022 = vcmask 64512
        %v1023 = vsel %vm1022, %v1017, -inf
        %1024 = vmax.xlane.f32.xlu0 %v1023
        %v1025 = vpop.xlane.xlu0 %1024
        %v1026 = vsub.f32 %v1017, %v1025
        %v1027 = vmul.f32 %v1026, 1.442695
        %v1028 = vpow.pop %v1027
        %v1029 = vsel %vm1022, %v1028, 0.0
        %1030 = vadd.xlane.f32.xlu0 %v1029
        %v1031 = vpop.xlane.xlu0 %1030
        %v1032 = vrcp.pop %v1031
        %v1033 = vmul.f32 %v1028, %v1032
        %v1034 = vpack.c.bf16 %v1033, %v1033
        %v1036 = vsel %vm1022, %v1034, 0
        %vm1038 = vcmask 1043456
        %v1040 = vsel %vm1038, %v974, 0
        %1042 = vmatprep.subr.bf16.mxu0 0
        %1043 = vmatpush1.bf16.msra.mxu0 %v1040
        %1044 = vmatprep.subr.bf16.mxu0 0
        %1045 = vmatpush1.bf16.msra.mxu0 0
        %1046 = vmatprep.subr.bf16.mxu0 0
        %1047 = vmatpush1.bf16.msra.mxu0 0
        %1048 = vmatprep.subr.bf16.mxu0 0
        %1049 = vmatpush1.bf16.msra.mxu0 0
        %1050 = vmatprep.subr.bf16.mxu0 0
        %1051 = vmatpush1.bf16.msra.mxu0 0
        %1052 = vmatprep.subr.bf16.mxu0 0
        %1053 = vmatpush1.bf16.msra.mxu0 0
        %1054 = vmatprep.subr.bf16.mxu0 0
        %1055 = vmatpush1.bf16.msra.mxu0 0
        %1056 = vmatprep.subr.bf16.mxu0 0
        %1057 = vmatpush1.bf16.msra.mxu0 0
        %1058 = vmatprep.subr.bf16.mxu0 0
        %1059 = vmatpush1.bf16.msra.mxu0 0
        %1060 = vmatprep.subr.bf16.mxu0 0
        %1061 = vmatpush1.bf16.msra.mxu0 0
        %1062 = vmatprep.subr.bf16.mxu0 0
        %1063 = vmatpush1.bf16.msra.mxu0 0
        %1064 = vmatprep.subr.bf16.mxu0 0
        %1065 = vmatpush1.bf16.msra.mxu0 0
        %1066 = vmatprep.subr.bf16.mxu0 0
        %1067 = vmatpush1.bf16.msra.mxu0 0
        %1068 = vmatprep.subr.bf16.mxu0 0
        %1069 = vmatpush1.bf16.msra.mxu0 0
        %1070 = vmatprep.subr.bf16.mxu0 0
        %1071 = vmatpush1.bf16.msra.mxu0 0
        %1072 = vmatprep.subr.bf16.mxu0 0
        %1073 = vmatpush1.bf16.msra.mxu0 0
        %1074 = vmatprep.mubr.bf16.mxu0 0
        %1075 = vmatmul.mubr.bf16.gmra.mrb[0].mxu0 %v1036
        %v1076 = vpop.f32.mrb[0].mxu0
        %v1077 = vadd.f32 0.0, %v1076
        %v1078 = vpop.f32.mrb[0].mxu0
        %v1079 = vpop.f32.mrb[0].mxu0
        %v1080 = vpop.f32.mrb[0].mxu0
        %1081 = vdwg.mxu0
        %v1082 = vpack.c.bf16 %v1077, %v1077
        %v1083 = vld [vmem:[%s9] sm:$0xf]
        %v1084 = vld [vmem:[%s9 + $0x4] sm:$0xf]
        %v1085 = vld [vmem:[%s9 + $0x8] sm:$0xf]
        %v1086 = vld [vmem:[%s9 + $0xc] sm:$0xf]
        %s1087 = scalar_lea.vmem %s3, 64
        %v1088 = vld [vmem:[%s1087] sm:$0xf]
        %v1089 = vld [vmem:[%s1087 + $0x4] sm:$0xf]
        %v1090 = vld [vmem:[%s1087 + $0x8] sm:$0xf]
        %v1091 = vld [vmem:[%s1087 + $0xc] sm:$0xf]
        %v1092 = vld [vmem:[%s1087 + $0x10] sm:$0xf]
        %v1093 = vld [vmem:[%s1087 + $0x14] sm:$0xf]
        %v1094 = vld [vmem:[%s1087 + $0x18] sm:$0xf]
        %v1095 = vld [vmem:[%s1087 + $0x1c] sm:$0xf]
        %v1096 = vld [vmem:[%s1087 + $0x20] sm:$0xf]
        %v1097 = vld [vmem:[%s1087 + $0x24] sm:$0xf]
        %v1098 = vld [vmem:[%s1087 + $0x28] sm:$0xf]
        %v1099 = vld [vmem:[%s1087 + $0x2c] sm:$0xf]
        %v1100 = vld [vmem:[%s1087 + $0x30] sm:$0xf]
        %v1101 = vld [vmem:[%s1087 + $0x34] sm:$0xf]
        %v1102 = vld [vmem:[%s1087 + $0x38] sm:$0xf]
        %v1103 = vld [vmem:[%s1087 + $0x3c] sm:$0xf]
        %s1104 = scalar_lea.vmem %s4, 1
        %v1105 = vld [vmem:[%s1104] sm:$0x1]
        %v1107 = vlaneseq
        %v1108 = vshrl.u32 %v1107, 7
        %v1109 = vsub.s32 0, %v1108
        %v1110 = vrot.slane %v1105, %v1109
        %v1128 = vunpack.c.l.b16 %v1088
        %v1129 = vunpack.c.l.b16 %v1089
        %v1130 = vunpack.c.l.b16 %v1090
        %v1131 = vunpack.c.l.b16 %v1091
        %v1132 = vunpack.c.l.b16 %v1092
        %v1133 = vunpack.c.l.b16 %v1093
        %v1134 = vunpack.c.l.b16 %v1094
        %v1135 = vunpack.c.l.b16 %v1095
        %v1136 = vunpack.c.l.b16 %v1096
        %v1137 = vunpack.c.l.b16 %v1097
        %v1138 = vunpack.c.l.b16 %v1098
        %v1139 = vunpack.c.l.b16 %v1099
        %v1140 = vunpack.c.l.b16 %v1100
        %v1141 = vunpack.c.l.b16 %v1101
        %v1142 = vunpack.c.l.b16 %v1102
        %v1143 = vunpack.c.l.b16 %v1103
        %v1144 = vpack.c.b16 %v1129, %v1128
        %v1145 = vpack.c.b16 %v1131, %v1130
        %v1146 = vpack.c.b16 %v1133, %v1132
        %v1147 = vpack.c.b16 %v1135, %v1134
        %v1148 = vpack.c.b16 %v1137, %v1136
        %v1149 = vpack.c.b16 %v1139, %v1138
        %v1150 = vpack.c.b16 %v1141, %v1140
        %v1151 = vpack.c.b16 %v1143, %v1142
        %1160 = vmatprep.subr.bf16.mxu0 0
        %1161 = vmatpush1.bf16.msra.mxu0 %v1144
        %1162 = vmatprep.subr.bf16.mxu0 0
        %1163 = vmatpush1.bf16.msra.mxu0 %v1145
        %1164 = vmatprep.subr.bf16.mxu0 0
        %1165 = vmatpush1.bf16.msra.mxu0 %v1146
        %1166 = vmatprep.subr.bf16.mxu0 0
        %1167 = vmatpush1.bf16.msra.mxu0 %v1147
        %1168 = vmatprep.subr.bf16.mxu0 0
        %1169 = vmatpush1.bf16.msra.mxu0 %v1148
        %1170 = vmatprep.subr.bf16.mxu0 0
        %1171 = vmatpush1.bf16.msra.mxu0 %v1149
        %1172 = vmatprep.subr.bf16.mxu0 0
        %1173 = vmatpush1.bf16.msra.mxu0 %v1150
        %1174 = vmatprep.subr.bf16.mxu0 0
        %1175 = vmatpush1.bf16.msra.mxu0 %v1151
        %1176 = vmatprep.subr.bf16.mxu0 0
        %1177 = vmatpush1.bf16.msra.mxu0 0
        %1178 = vmatprep.subr.bf16.mxu0 0
        %1179 = vmatpush1.bf16.msra.mxu0 0
        %1180 = vmatprep.subr.bf16.mxu0 0
        %1181 = vmatpush1.bf16.msra.mxu0 0
        %1182 = vmatprep.subr.bf16.mxu0 0
        %1183 = vmatpush1.bf16.msra.mxu0 0
        %1184 = vmatprep.subr.bf16.mxu0 0
        %1185 = vmatpush1.bf16.msra.mxu0 0
        %1186 = vmatprep.subr.bf16.mxu0 0
        %1187 = vmatpush1.bf16.msra.mxu0 0
        %1188 = vmatprep.subr.bf16.mxu0 0
        %1189 = vmatpush1.bf16.msra.mxu0 0
        %1190 = vmatprep.subr.bf16.mxu0 0
        %1191 = vmatpush1.bf16.msra.mxu0 0
        %1192 = vmatprep.mubr.bf16.mxu0 0
        %1193 = vmatmul.mubr.bf16.gmra.mrb[0].mxu0 %v634
        %v1194 = vpop.f32.mrb[0].mxu0
        %v1195 = vadd.f32 %v1110, %v1194
        %v1196 = vpop.f32.mrb[0].mxu0
        %v1197 = vpop.f32.mrb[0].mxu0
        %v1198 = vpop.f32.mrb[0].mxu0
        %1199 = vdwg.mxu0
        %s1200 = scalar_lea.vmem %s5, 64
        %v1201 = vld [vmem:[%s1200] sm:$0xf]
        %v1202 = vld [vmem:[%s1200 + $0x4] sm:$0xf]
        %v1203 = vld [vmem:[%s1200 + $0x8] sm:$0xf]
        %v1204 = vld [vmem:[%s1200 + $0xc] sm:$0xf]
        %v1205 = vld [vmem:[%s1200 + $0x10] sm:$0xf]
        %v1206 = vld [vmem:[%s1200 + $0x14] sm:$0xf]
        %v1207 = vld [vmem:[%s1200 + $0x18] sm:$0xf]
        %v1208 = vld [vmem:[%s1200 + $0x1c] sm:$0xf]
        %v1209 = vld [vmem:[%s1200 + $0x20] sm:$0xf]
        %v1210 = vld [vmem:[%s1200 + $0x24] sm:$0xf]
        %v1211 = vld [vmem:[%s1200 + $0x28] sm:$0xf]
        %v1212 = vld [vmem:[%s1200 + $0x2c] sm:$0xf]
        %v1213 = vld [vmem:[%s1200 + $0x30] sm:$0xf]
        %v1214 = vld [vmem:[%s1200 + $0x34] sm:$0xf]
        %v1215 = vld [vmem:[%s1200 + $0x38] sm:$0xf]
        %v1216 = vld [vmem:[%s1200 + $0x3c] sm:$0xf]
        %s1217 = scalar_lea.vmem %s6, 1
        %v1218 = vld [vmem:[%s1217] sm:$0x1]
        %v1220 = vlaneseq
        %v1221 = vshrl.u32 %v1220, 7
        %v1222 = vsub.s32 0, %v1221
        %v1223 = vrot.slane %v1218, %v1222
        %v1241 = vunpack.c.l.b16 %v1201
        %v1242 = vunpack.c.l.b16 %v1202
        %v1243 = vunpack.c.l.b16 %v1203
        %v1244 = vunpack.c.l.b16 %v1204
        %v1245 = vunpack.c.l.b16 %v1205
        %v1246 = vunpack.c.l.b16 %v1206
        %v1247 = vunpack.c.l.b16 %v1207
        %v1248 = vunpack.c.l.b16 %v1208
        %v1249 = vunpack.c.l.b16 %v1209
        %v1250 = vunpack.c.l.b16 %v1210
        %v1251 = vunpack.c.l.b16 %v1211
        %v1252 = vunpack.c.l.b16 %v1212
        %v1253 = vunpack.c.l.b16 %v1213
        %v1254 = vunpack.c.l.b16 %v1214
        %v1255 = vunpack.c.l.b16 %v1215
        %v1256 = vunpack.c.l.b16 %v1216
        %v1257 = vpack.c.b16 %v1242, %v1241
        %v1258 = vpack.c.b16 %v1244, %v1243
        %v1259 = vpack.c.b16 %v1246, %v1245
        %v1260 = vpack.c.b16 %v1248, %v1247
        %v1261 = vpack.c.b16 %v1250, %v1249
        %v1262 = vpack.c.b16 %v1252, %v1251
        %v1263 = vpack.c.b16 %v1254, %v1253
        %v1264 = vpack.c.b16 %v1256, %v1255
        %1273 = vmatprep.subr.bf16.mxu0 0
        %1274 = vmatpush1.bf16.msra.mxu0 %v1257
        %1275 = vmatprep.subr.bf16.mxu0 0
        %1276 = vmatpush1.bf16.msra.mxu0 %v1258
        %1277 = vmatprep.subr.bf16.mxu0 0
        %1278 = vmatpush1.bf16.msra.mxu0 %v1259
        %1279 = vmatprep.subr.bf16.mxu0 0
        %1280 = vmatpush1.bf16.msra.mxu0 %v1260
        %1281 = vmatprep.subr.bf16.mxu0 0
        %1282 = vmatpush1.bf16.msra.mxu0 %v1261
        %1283 = vmatprep.subr.bf16.mxu0 0
        %1284 = vmatpush1.bf16.msra.mxu0 %v1262
        %1285 = vmatprep.subr.bf16.mxu0 0
        %1286 = vmatpush1.bf16.msra.mxu0 %v1263
        %1287 = vmatprep.subr.bf16.mxu0 0
        %1288 = vmatpush1.bf16.msra.mxu0 %v1264
        %1289 = vmatprep.subr.bf16.mxu0 0
        %1290 = vmatpush1.bf16.msra.mxu0 0
        %1291 = vmatprep.subr.bf16.mxu0 0
        %1292 = vmatpush1.bf16.msra.mxu0 0
        %1293 = vmatprep.subr.bf16.mxu0 0
        %1294 = vmatpush1.bf16.msra.mxu0 0
        %1295 = vmatprep.subr.bf16.mxu0 0
        %1296 = vmatpush1.bf16.msra.mxu0 0
        %1297 = vmatprep.subr.bf16.mxu0 0
        %1298 = vmatpush1.bf16.msra.mxu0 0
        %1299 = vmatprep.subr.bf16.mxu0 0
        %1300 = vmatpush1.bf16.msra.mxu0 0
        %1301 = vmatprep.subr.bf16.mxu0 0
        %1302 = vmatpush1.bf16.msra.mxu0 0
        %1303 = vmatprep.subr.bf16.mxu0 0
        %1304 = vmatpush1.bf16.msra.mxu0 0
        %1305 = vmatprep.mubr.bf16.mxu0 0
        %1306 = vmatmul.mubr.bf16.gmra.mrb[0].mxu0 %v636
        %v1307 = vpop.f32.mrb[0].mxu0
        %v1308 = vadd.f32 %v1223, %v1307
        %v1309 = vpop.f32.mrb[0].mxu0
        %v1310 = vpop.f32.mrb[0].mxu0
        %v1311 = vpop.f32.mrb[0].mxu0
        %1312 = vdwg.mxu0
        %s1313 = scalar_lea.vmem %s7, 64
        %v1314 = vld [vmem:[%s1313] sm:$0xf]
        %v1315 = vld [vmem:[%s1313 + $0x4] sm:$0xf]
        %v1316 = vld [vmem:[%s1313 + $0x8] sm:$0xf]
        %v1317 = vld [vmem:[%s1313 + $0xc] sm:$0xf]
        %v1318 = vld [vmem:[%s1313 + $0x10] sm:$0xf]
        %v1319 = vld [vmem:[%s1313 + $0x14] sm:$0xf]
        %v1320 = vld [vmem:[%s1313 + $0x18] sm:$0xf]
        %v1321 = vld [vmem:[%s1313 + $0x1c] sm:$0xf]
        %v1322 = vld [vmem:[%s1313 + $0x20] sm:$0xf]
        %v1323 = vld [vmem:[%s1313 + $0x24] sm:$0xf]
        %v1324 = vld [vmem:[%s1313 + $0x28] sm:$0xf]
        %v1325 = vld [vmem:[%s1313 + $0x2c] sm:$0xf]
        %v1326 = vld [vmem:[%s1313 + $0x30] sm:$0xf]
        %v1327 = vld [vmem:[%s1313 + $0x34] sm:$0xf]
        %v1328 = vld [vmem:[%s1313 + $0x38] sm:$0xf]
        %v1329 = vld [vmem:[%s1313 + $0x3c] sm:$0xf]
        %s1330 = scalar_lea.vmem %s8, 1
        %v1331 = vld [vmem:[%s1330] sm:$0x1]
        %v1333 = vlaneseq
        %v1334 = vshrl.u32 %v1333, 7
        %v1335 = vsub.s32 0, %v1334
        %v1336 = vrot.slane %v1331, %v1335
        %v1354 = vunpack.c.l.b16 %v1314
        %v1355 = vunpack.c.l.b16 %v1315
        %v1356 = vunpack.c.l.b16 %v1316
        %v1357 = vunpack.c.l.b16 %v1317
        %v1358 = vunpack.c.l.b16 %v1318
        %v1359 = vunpack.c.l.b16 %v1319
        %v1360 = vunpack.c.l.b16 %v1320
        %v1361 = vunpack.c.l.b16 %v1321
        %v1362 = vunpack.c.l.b16 %v1322
        %v1363 = vunpack.c.l.b16 %v1323
        %v1364 = vunpack.c.l.b16 %v1324
        %v1365 = vunpack.c.l.b16 %v1325
        %v1366 = vunpack.c.l.b16 %v1326
        %v1367 = vunpack.c.l.b16 %v1327
        %v1368 = vunpack.c.l.b16 %v1328
        %v1369 = vunpack.c.l.b16 %v1329
        %v1370 = vpack.c.b16 %v1355, %v1354
        %v1371 = vpack.c.b16 %v1357, %v1356
        %v1372 = vpack.c.b16 %v1359, %v1358
        %v1373 = vpack.c.b16 %v1361, %v1360
        %v1374 = vpack.c.b16 %v1363, %v1362
        %v1375 = vpack.c.b16 %v1365, %v1364
        %v1376 = vpack.c.b16 %v1367, %v1366
        %v1377 = vpack.c.b16 %v1369, %v1368
        %1386 = vmatprep.subr.bf16.mxu0 0
        %1387 = vmatpush1.bf16.msra.mxu0 %v1370
        %1388 = vmatprep.subr.bf16.mxu0 0
        %1389 = vmatpush1.bf16.msra.mxu0 %v1371
        %1390 = vmatprep.subr.bf16.mxu0 0
        %1391 = vmatpush1.bf16.msra.mxu0 %v1372
        %1392 = vmatprep.subr.bf16.mxu0 0
        %1393 = vmatpush1.bf16.msra.mxu0 %v1373
        %1394 = vmatprep.subr.bf16.mxu0 0
        %1395 = vmatpush1.bf16.msra.mxu0 %v1374
        %1396 = vmatprep.subr.bf16.mxu0 0
        %1397 = vmatpush1.bf16.msra.mxu0 %v1375
        %1398 = vmatprep.subr.bf16.mxu0 0
        %1399 = vmatpush1.bf16.msra.mxu0 %v1376
        %1400 = vmatprep.subr.bf16.mxu0 0
        %1401 = vmatpush1.bf16.msra.mxu0 %v1377
        %1402 = vmatprep.subr.bf16.mxu0 0
        %1403 = vmatpush1.bf16.msra.mxu0 0
        %1404 = vmatprep.subr.bf16.mxu0 0
        %1405 = vmatpush1.bf16.msra.mxu0 0
        %1406 = vmatprep.subr.bf16.mxu0 0
        %1407 = vmatpush1.bf16.msra.mxu0 0
        %1408 = vmatprep.subr.bf16.mxu0 0
        %1409 = vmatpush1.bf16.msra.mxu0 0
        %1410 = vmatprep.subr.bf16.mxu0 0
        %1411 = vmatpush1.bf16.msra.mxu0 0
        %1412 = vmatprep.subr.bf16.mxu0 0
        %1413 = vmatpush1.bf16.msra.mxu0 0
        %1414 = vmatprep.subr.bf16.mxu0 0
        %1415 = vmatpush1.bf16.msra.mxu0 0
        %1416 = vmatprep.subr.bf16.mxu0 0
        %1417 = vmatpush1.bf16.msra.mxu0 0
        %1418 = vmatprep.mubr.bf16.mxu0 0
        %1419 = vmatmul.mubr.bf16.gmra.mrb[0].mxu0 %v638
        %v1420 = vpop.f32.mrb[0].mxu0
        %v1421 = vadd.f32 %v1336, %v1420
        %v1422 = vpop.f32.mrb[0].mxu0
        %v1423 = vpop.f32.mrb[0].mxu0
        %v1424 = vpop.f32.mrb[0].mxu0
        %1425 = vdwg.mxu0
        %v1426 = vpack.c.bf16 %v1195, %v1195
        %v1427 = vpack.c.bf16 %v1308, %v1308
        %v1428 = vpack.c.bf16 %v1421, %v1421
        %v1430 = vsel %vm975, %v1426, 0
        %v1433 = vsel %vm975, %v1427, 0
        %1435 = vmatprep.subr.bf16.mxu0 0
        %1436 = vmatpush1.bf16.xpose.msra.mxu0 %v1433
        %1437 = vmatprep.subr.bf16.mxu0 0
        %1438 = vmatpush1.bf16.xpose.msra.mxu0 0
        %1439 = vmatprep.subr.bf16.mxu0 0
        %1440 = vmatpush1.bf16.xpose.msra.mxu0 0
        %1441 = vmatprep.subr.bf16.mxu0 0
        %1442 = vmatpush1.bf16.xpose.msra.mxu0 0
        %1443 = vmatprep.subr.bf16.mxu0 0
        %1444 = vmatpush1.bf16.xpose.msra.mxu0 0
        %1445 = vmatprep.subr.bf16.mxu0 0
        %1446 = vmatpush1.bf16.xpose.msra.mxu0 0
        %1447 = vmatprep.subr.bf16.mxu0 0
        %1448 = vmatpush1.bf16.xpose.msra.mxu0 0
        %1449 = vmatprep.subr.bf16.mxu0 0
        %1450 = vmatpush1.bf16.xpose.msra.mxu0 0
        %1451 = vmatprep.subr.bf16.mxu0 0
        %1452 = vmatpush1.bf16.xpose.msra.mxu0 0
        %1453 = vmatprep.subr.bf16.mxu0 0
        %1454 = vmatpush1.bf16.xpose.msra.mxu0 0
        %1455 = vmatprep.subr.bf16.mxu0 0
        %1456 = vmatpush1.bf16.xpose.msra.mxu0 0
        %1457 = vmatprep.subr.bf16.mxu0 0
        %1458 = vmatpush1.bf16.xpose.msra.mxu0 0
        %1459 = vmatprep.subr.bf16.mxu0 0
        %1460 = vmatpush1.bf16.xpose.msra.mxu0 0
        %1461 = vmatprep.subr.bf16.mxu0 0
        %1462 = vmatpush1.bf16.xpose.msra.mxu0 0
        %1463 = vmatprep.subr.bf16.mxu0 0
        %1464 = vmatpush1.bf16.xpose.msra.mxu0 0
        %1465 = vmatprep.subr.bf16.mxu0 0
        %1466 = vmatpush1.bf16.xpose.msra.mxu0 0
        %1467 = vmatprep.mubr.bf16.mxu0 0
        %1468 = vmatmul.mubr.bf16.gmra.mrb[0].mxu0 %v1430
        %v1469 = vpop.f32.mrb[0].mxu0
        %v1470 = vadd.f32 0.0, %v1469
        %v1471 = vpop.f32.mrb[0].mxu0
        %v1472 = vpop.f32.mrb[0].mxu0
        %v1473 = vpop.f32.mrb[0].mxu0
        %1474 = vdwg.mxu0
        %v1475 = vsel %vm1022, %v1470, -inf
        %1476 = vmax.xlane.f32.xlu0 %v1475
        %v1477 = vpop.xlane.xlu0 %1476
        %v1478 = vsub.f32 %v1470, %v1477
        %v1479 = vmul.f32 %v1478, 1.442695
        %v1480 = vpow.pop %v1479
        %v1481 = vsel %vm1022, %v1480, 0.0
        %1482 = vadd.xlane.f32.xlu0 %v1481
        %v1483 = vpop.xlane.xlu0 %1482
        %v1484 = vrcp.pop %v1483
        %v1485 = vmul.f32 %v1480, %v1484
        %v1486 = vpack.c.bf16 %v1485, %v1485
        %v1488 = vsel %vm1022, %v1486, 0
        %v1491 = vsel %vm1038, %v1428, 0
        %1493 = vmatprep.subr.bf16.mxu0 0
        %1494 = vmatpush1.bf16.msra.mxu0 %v1491
        %1495 = vmatprep.subr.bf16.mxu0 0
        %1496 = vmatpush1.bf16.msra.mxu0 0
        %1497 = vmatprep.subr.bf16.mxu0 0
        %1498 = vmatpush1.bf16.msra.mxu0 0
        %1499 = vmatprep.subr.bf16.mxu0 0
        %1500 = vmatpush1.bf16.msra.mxu0 0
        %1501 = vmatprep.subr.bf16.mxu0 0
        %1502 = vmatpush1.bf16.msra.mxu0 0
        %1503 = vmatprep.subr.bf16.mxu0 0
        %1504 = vmatpush1.bf16.msra.mxu0 0
        %1505 = vmatprep.subr.bf16.mxu0 0
        %1506 = vmatpush1.bf16.msra.mxu0 0
        %1507 = vmatprep.subr.bf16.mxu0 0
        %1508 = vmatpush1.bf16.msra.mxu0 0
        %1509 = vmatprep.subr.bf16.mxu0 0
        %1510 = vmatpush1.bf16.msra.mxu0 0
        %1511 = vmatprep.subr.bf16.mxu0 0
        %1512 = vmatpush1.bf16.msra.mxu0 0
        %1513 = vmatprep.subr.bf16.mxu0 0
        %1514 = vmatpush1.bf16.msra.mxu0 0
        %1515 = vmatprep.subr.bf16.mxu0 0
        %1516 = vmatpush1.bf16.msra.mxu0 0
        %1517 = vmatprep.subr.bf16.mxu0 0
        %1518 = vmatpush1.bf16.msra.mxu0 0
        %1519 = vmatprep.subr.bf16.mxu0 0
        %1520 = vmatpush1.bf16.msra.mxu0 0
        %1521 = vmatprep.subr.bf16.mxu0 0
        %1522 = vmatpush1.bf16.msra.mxu0 0
        %1523 = vmatprep.subr.bf16.mxu0 0
        %1524 = vmatpush1.bf16.msra.mxu0 0
        %1525 = vmatprep.mubr.bf16.mxu0 0
        %1526 = vmatmul.mubr.bf16.gmra.mrb[0].mxu0 %v1488
        %v1527 = vpop.f32.mrb[0].mxu0
        %v1528 = vadd.f32 0.0, %v1527
        %v1529 = vpop.f32.mrb[0].mxu0
        %v1530 = vpop.f32.mrb[0].mxu0
        %v1531 = vpop.f32.mrb[0].mxu0
        %1532 = vdwg.mxu0
        %v1533 = vpack.c.bf16 %v1528, %v1528
        %s1534 = scalar_lea.vmem %s9, 16
        %v1535 = vld [vmem:[%s1534] sm:$0xf]
        %v1536 = vld [vmem:[%s1534 + $0x4] sm:$0xf]
        %v1537 = vld [vmem:[%s1534 + $0x8] sm:$0xf]
        %v1538 = vld [vmem:[%s1534 + $0xc] sm:$0xf]
        %v1543 = vunpack.c.l.b16 %v1535
        %v1544 = vunpack.c.l.b16 %v1536
        %v1545 = vunpack.c.l.b16 %v1537
        %v1546 = vunpack.c.l.b16 %v1538
        %v1547 = vpack.c.b16 %v1544, %v1543
        %v1548 = vpack.c.b16 %v1546, %v1545
        %v1552 = vsel %vm975, %v1533, 0
        %1554 = vmatprep.subr.bf16.mxu0 0
        %1555 = vmatpush1.bf16.msra.mxu0 %v1547
        %1556 = vmatprep.subr.bf16.mxu0 0
        %1557 = vmatpush1.bf16.msra.mxu0 %v1548
        %1558 = vmatprep.subr.bf16.mxu0 0
        %1559 = vmatpush1.bf16.msra.mxu0 0
        %1560 = vmatprep.subr.bf16.mxu0 0
        %1561 = vmatpush1.bf16.msra.mxu0 0
        %1562 = vmatprep.subr.bf16.mxu0 0
        %1563 = vmatpush1.bf16.msra.mxu0 0
        %1564 = vmatprep.subr.bf16.mxu0 0
        %1565 = vmatpush1.bf16.msra.mxu0 0
        %1566 = vmatprep.subr.bf16.mxu0 0
        %1567 = vmatpush1.bf16.msra.mxu0 0
        %1568 = vmatprep.subr.bf16.mxu0 0
        %1569 = vmatpush1.bf16.msra.mxu0 0
        %1570 = vmatprep.subr.bf16.mxu0 0
        %1571 = vmatpush1.bf16.msra.mxu0 0
        %1572 = vmatprep.subr.bf16.mxu0 0
        %1573 = vmatpush1.bf16.msra.mxu0 0
        %1574 = vmatprep.subr.bf16.mxu0 0
        %1575 = vmatpush1.bf16.msra.mxu0 0
        %1576 = vmatprep.subr.bf16.mxu0 0
        %1577 = vmatpush1.bf16.msra.mxu0 0
        %1578 = vmatprep.subr.bf16.mxu0 0
        %1579 = vmatpush1.bf16.msra.mxu0 0
        %1580 = vmatprep.subr.bf16.mxu0 0
        %1581 = vmatpush1.bf16.msra.mxu0 0
        %1582 = vmatprep.subr.bf16.mxu0 0
        %1583 = vmatpush1.bf16.msra.mxu0 0
        %1584 = vmatprep.subr.bf16.mxu0 0
        %1585 = vmatpush1.bf16.msra.mxu0 0
        %1586 = vmatprep.mubr.bf16.mxu0 0
        %1587 = vmatmul.mubr.bf16.gmra.mrb[0].mxu0 %v1552
        %v1588 = vpop.f32.mrb[0].mxu0
        %v1589 = vadd.f32 0.0, %v1588
        %v1590 = vpop.f32.mrb[0].mxu0
        %v1591 = vpop.f32.mrb[0].mxu0
        %v1592 = vpop.f32.mrb[0].mxu0
        %1593 = vdwg.mxu0
        %v1598 = vunpack.c.l.b16 %v1083
        %v1599 = vunpack.c.l.b16 %v1084
        %v1600 = vunpack.c.l.b16 %v1085
        %v1601 = vunpack.c.l.b16 %v1086
        %v1602 = vpack.c.b16 %v1599, %v1598
        %v1603 = vpack.c.b16 %v1601, %v1600
        %v1607 = vsel %vm975, %v1082, 0
        %1609 = vmatprep.subr.bf16.mxu0 0
        %1610 = vmatpush1.bf16.msra.mxu0 %v1602
        %1611 = vmatprep.subr.bf16.mxu0 0
        %1612 = vmatpush1.bf16.msra.mxu0 %v1603
        %1613 = vmatprep.subr.bf16.mxu0 0
        %1614 = vmatpush1.bf16.msra.mxu0 0
        %1615 = vmatprep.subr.bf16.mxu0 0
        %1616 = vmatpush1.bf16.msra.mxu0 0
        %1617 = vmatprep.subr.bf16.mxu0 0
        %1618 = vmatpush1.bf16.msra.mxu0 0
        %1619 = vmatprep.subr.bf16.mxu0 0
        %1620 = vmatpush1.bf16.msra.mxu0 0
        %1621 = vmatprep.subr.bf16.mxu0 0
        %1622 = vmatpush1.bf16.msra.mxu0 0
        %1623 = vmatprep.subr.bf16.mxu0 0
        %1624 = vmatpush1.bf16.msra.mxu0 0
        %1625 = vmatprep.subr.bf16.mxu0 0
        %1626 = vmatpush1.bf16.msra.mxu0 0
        %1627 = vmatprep.subr.bf16.mxu0 0
        %1628 = vmatpush1.bf16.msra.mxu0 0
        %1629 = vmatprep.subr.bf16.mxu0 0
        %1630 = vmatpush1.bf16.msra.mxu0 0
        %1631 = vmatprep.subr.bf16.mxu0 0
        %1632 = vmatpush1.bf16.msra.mxu0 0
        %1633 = vmatprep.subr.bf16.mxu0 0
        %1634 = vmatpush1.bf16.msra.mxu0 0
        %1635 = vmatprep.subr.bf16.mxu0 0
        %1636 = vmatpush1.bf16.msra.mxu0 0
        %1637 = vmatprep.subr.bf16.mxu0 0
        %1638 = vmatpush1.bf16.msra.mxu0 0
        %1639 = vmatprep.subr.bf16.mxu0 0
        %1640 = vmatpush1.bf16.msra.mxu0 0
        %1641 = vmatprep.mubr.bf16.mxu0 0
        %1642 = vmatmul.mubr.bf16.gmra.mrb[0].mxu0 %v1607
        %v1643 = vpop.f32.mrb[0].mxu0
        %v1644 = vadd.f32 %v1589, %v1643
        %v1645 = vpop.f32.mrb[0].mxu0
        %v1646 = vpop.f32.mrb[0].mxu0
        %v1647 = vpop.f32.mrb[0].mxu0
        %1648 = vdwg.mxu0
        %s1649 = scalar_lea.vmem %s3, 128
        %v1650 = vld [vmem:[%s1649] sm:$0xf]
        %v1651 = vld [vmem:[%s1649 + $0x4] sm:$0xf]
        %v1652 = vld [vmem:[%s1649 + $0x8] sm:$0xf]
        %v1653 = vld [vmem:[%s1649 + $0xc] sm:$0xf]
        %v1654 = vld [vmem:[%s1649 + $0x10] sm:$0xf]
        %v1655 = vld [vmem:[%s1649 + $0x14] sm:$0xf]
        %v1656 = vld [vmem:[%s1649 + $0x18] sm:$0xf]
        %v1657 = vld [vmem:[%s1649 + $0x1c] sm:$0xf]
        %v1658 = vld [vmem:[%s1649 + $0x20] sm:$0xf]
        %v1659 = vld [vmem:[%s1649 + $0x24] sm:$0xf]
        %v1660 = vld [vmem:[%s1649 + $0x28] sm:$0xf]
        %v1661 = vld [vmem:[%s1649 + $0x2c] sm:$0xf]
        %v1662 = vld [vmem:[%s1649 + $0x30] sm:$0xf]
        %v1663 = vld [vmem:[%s1649 + $0x34] sm:$0xf]
        %v1664 = vld [vmem:[%s1649 + $0x38] sm:$0xf]
        %v1665 = vld [vmem:[%s1649 + $0x3c] sm:$0xf]
        %s1666 = scalar_lea.vmem %s4, 2
        %v1667 = vld [vmem:[%s1666] sm:$0x1]
        %v1669 = vlaneseq
        %v1670 = vshrl.u32 %v1669, 7
        %v1671 = vsub.s32 0, %v1670
        %v1672 = vrot.slane %v1667, %v1671
        %v1690 = vunpack.c.l.b16 %v1650
        %v1691 = vunpack.c.l.b16 %v1651
        %v1692 = vunpack.c.l.b16 %v1652
        %v1693 = vunpack.c.l.b16 %v1653
        %v1694 = vunpack.c.l.b16 %v1654
        %v1695 = vunpack.c.l.b16 %v1655
        %v1696 = vunpack.c.l.b16 %v1656
        %v1697 = vunpack.c.l.b16 %v1657
        %v1698 = vunpack.c.l.b16 %v1658
        %v1699 = vunpack.c.l.b16 %v1659
        %v1700 = vunpack.c.l.b16 %v1660
        %v1701 = vunpack.c.l.b16 %v1661
        %v1702 = vunpack.c.l.b16 %v1662
        %v1703 = vunpack.c.l.b16 %v1663
        %v1704 = vunpack.c.l.b16 %v1664
        %v1705 = vunpack.c.l.b16 %v1665
        %v1706 = vpack.c.b16 %v1691, %v1690
        %v1707 = vpack.c.b16 %v1693, %v1692
        %v1708 = vpack.c.b16 %v1695, %v1694
        %v1709 = vpack.c.b16 %v1697, %v1696
        %v1710 = vpack.c.b16 %v1699, %v1698
        %v1711 = vpack.c.b16 %v1701, %v1700
        %v1712 = vpack.c.b16 %v1703, %v1702
        %v1713 = vpack.c.b16 %v1705, %v1704
        %1722 = vmatprep.subr.bf16.mxu0 0
        %1723 = vmatpush1.bf16.msra.mxu0 %v1706
        %1724 = vmatprep.subr.bf16.mxu0 0
        %1725 = vmatpush1.bf16.msra.mxu0 %v1707
        %1726 = vmatprep.subr.bf16.mxu0 0
        %1727 = vmatpush1.bf16.msra.mxu0 %v1708
        %1728 = vmatprep.subr.bf16.mxu0 0
        %1729 = vmatpush1.bf16.msra.mxu0 %v1709
        %1730 = vmatprep.subr.bf16.mxu0 0
        %1731 = vmatpush1.bf16.msra.mxu0 %v1710
        %1732 = vmatprep.subr.bf16.mxu0 0
        %1733 = vmatpush1.bf16.msra.mxu0 %v1711
        %1734 = vmatprep.subr.bf16.mxu0 0
        %1735 = vmatpush1.bf16.msra.mxu0 %v1712
        %1736 = vmatprep.subr.bf16.mxu0 0
        %1737 = vmatpush1.bf16.msra.mxu0 %v1713
        %1738 = vmatprep.subr.bf16.mxu0 0
        %1739 = vmatpush1.bf16.msra.mxu0 0
        %1740 = vmatprep.subr.bf16.mxu0 0
        %1741 = vmatpush1.bf16.msra.mxu0 0
        %1742 = vmatprep.subr.bf16.mxu0 0
        %1743 = vmatpush1.bf16.msra.mxu0 0
        %1744 = vmatprep.subr.bf16.mxu0 0
        %1745 = vmatpush1.bf16.msra.mxu0 0
        %1746 = vmatprep.subr.bf16.mxu0 0
        %1747 = vmatpush1.bf16.msra.mxu0 0
        %1748 = vmatprep.subr.bf16.mxu0 0
        %1749 = vmatpush1.bf16.msra.mxu0 0
        %1750 = vmatprep.subr.bf16.mxu0 0
        %1751 = vmatpush1.bf16.msra.mxu0 0
        %1752 = vmatprep.subr.bf16.mxu0 0
        %1753 = vmatpush1.bf16.msra.mxu0 0
        %1754 = vmatprep.mubr.bf16.mxu0 0
        %1755 = vmatmul.mubr.bf16.gmra.mrb[0].mxu0 %v634
        %v1756 = vpop.f32.mrb[0].mxu0
        %v1757 = vadd.f32 %v1672, %v1756
        %v1758 = vpop.f32.mrb[0].mxu0
        %v1759 = vpop.f32.mrb[0].mxu0
        %v1760 = vpop.f32.mrb[0].mxu0
        %1761 = vdwg.mxu0
        %s1762 = scalar_lea.vmem %s5, 128
        %v1763 = vld [vmem:[%s1762] sm:$0xf]
        %v1764 = vld [vmem:[%s1762 + $0x4] sm:$0xf]
        %v1765 = vld [vmem:[%s1762 + $0x8] sm:$0xf]
        %v1766 = vld [vmem:[%s1762 + $0xc] sm:$0xf]
        %v1767 = vld [vmem:[%s1762 + $0x10] sm:$0xf]
        %v1768 = vld [vmem:[%s1762 + $0x14] sm:$0xf]
        %v1769 = vld [vmem:[%s1762 + $0x18] sm:$0xf]
        %v1770 = vld [vmem:[%s1762 + $0x1c] sm:$0xf]
        %v1771 = vld [vmem:[%s1762 + $0x20] sm:$0xf]
        %v1772 = vld [vmem:[%s1762 + $0x24] sm:$0xf]
        %v1773 = vld [vmem:[%s1762 + $0x28] sm:$0xf]
        %v1774 = vld [vmem:[%s1762 + $0x2c] sm:$0xf]
        %v1775 = vld [vmem:[%s1762 + $0x30] sm:$0xf]
        %v1776 = vld [vmem:[%s1762 + $0x34] sm:$0xf]
        %v1777 = vld [vmem:[%s1762 + $0x38] sm:$0xf]
        %v1778 = vld [vmem:[%s1762 + $0x3c] sm:$0xf]
        %s1779 = scalar_lea.vmem %s6, 2
        %v1780 = vld [vmem:[%s1779] sm:$0x1]
        %v1782 = vlaneseq
        %v1783 = vshrl.u32 %v1782, 7
        %v1784 = vsub.s32 0, %v1783
        %v1785 = vrot.slane %v1780, %v1784
        %v1803 = vunpack.c.l.b16 %v1763
        %v1804 = vunpack.c.l.b16 %v1764
        %v1805 = vunpack.c.l.b16 %v1765
        %v1806 = vunpack.c.l.b16 %v1766
        %v1807 = vunpack.c.l.b16 %v1767
        %v1808 = vunpack.c.l.b16 %v1768
        %v1809 = vunpack.c.l.b16 %v1769
        %v1810 = vunpack.c.l.b16 %v1770
        %v1811 = vunpack.c.l.b16 %v1771
        %v1812 = vunpack.c.l.b16 %v1772
        %v1813 = vunpack.c.l.b16 %v1773
        %v1814 = vunpack.c.l.b16 %v1774
        %v1815 = vunpack.c.l.b16 %v1775
        %v1816 = vunpack.c.l.b16 %v1776
        %v1817 = vunpack.c.l.b16 %v1777
        %v1818 = vunpack.c.l.b16 %v1778
        %v1819 = vpack.c.b16 %v1804, %v1803
        %v1820 = vpack.c.b16 %v1806, %v1805
        %v1821 = vpack.c.b16 %v1808, %v1807
        %v1822 = vpack.c.b16 %v1810, %v1809
        %v1823 = vpack.c.b16 %v1812, %v1811
        %v1824 = vpack.c.b16 %v1814, %v1813
        %v1825 = vpack.c.b16 %v1816, %v1815
        %v1826 = vpack.c.b16 %v1818, %v1817
        %1835 = vmatprep.subr.bf16.mxu0 0
        %1836 = vmatpush1.bf16.msra.mxu0 %v1819
        %1837 = vmatprep.subr.bf16.mxu0 0
        %1838 = vmatpush1.bf16.msra.mxu0 %v1820
        %1839 = vmatprep.subr.bf16.mxu0 0
        %1840 = vmatpush1.bf16.msra.mxu0 %v1821
        %1841 = vmatprep.subr.bf16.mxu0 0
        %1842 = vmatpush1.bf16.msra.mxu0 %v1822
        %1843 = vmatprep.subr.bf16.mxu0 0
        %1844 = vmatpush1.bf16.msra.mxu0 %v1823
        %1845 = vmatprep.subr.bf16.mxu0 0
        %1846 = vmatpush1.bf16.msra.mxu0 %v1824
        %1847 = vmatprep.subr.bf16.mxu0 0
        %1848 = vmatpush1.bf16.msra.mxu0 %v1825
        %1849 = vmatprep.subr.bf16.mxu0 0
        %1850 = vmatpush1.bf16.msra.mxu0 %v1826
        %1851 = vmatprep.subr.bf16.mxu0 0
        %1852 = vmatpush1.bf16.msra.mxu0 0
        %1853 = vmatprep.subr.bf16.mxu0 0
        %1854 = vmatpush1.bf16.msra.mxu0 0
        %1855 = vmatprep.subr.bf16.mxu0 0
        %1856 = vmatpush1.bf16.msra.mxu0 0
        %1857 = vmatprep.subr.bf16.mxu0 0
        %1858 = vmatpush1.bf16.msra.mxu0 0
        %1859 = vmatprep.subr.bf16.mxu0 0
        %1860 = vmatpush1.bf16.msra.mxu0 0
        %1861 = vmatprep.subr.bf16.mxu0 0
        %1862 = vmatpush1.bf16.msra.mxu0 0
        %1863 = vmatprep.subr.bf16.mxu0 0
        %1864 = vmatpush1.bf16.msra.mxu0 0
        %1865 = vmatprep.subr.bf16.mxu0 0
        %1866 = vmatpush1.bf16.msra.mxu0 0
        %1867 = vmatprep.mubr.bf16.mxu0 0
        %1868 = vmatmul.mubr.bf16.gmra.mrb[0].mxu0 %v636
        %v1869 = vpop.f32.mrb[0].mxu0
        %v1870 = vadd.f32 %v1785, %v1869
        %v1871 = vpop.f32.mrb[0].mxu0
        %v1872 = vpop.f32.mrb[0].mxu0
        %v1873 = vpop.f32.mrb[0].mxu0
        %1874 = vdwg.mxu0
        %s1875 = scalar_lea.vmem %s7, 128
        %v1876 = vld [vmem:[%s1875] sm:$0xf]
        %v1877 = vld [vmem:[%s1875 + $0x4] sm:$0xf]
        %v1878 = vld [vmem:[%s1875 + $0x8] sm:$0xf]
        %v1879 = vld [vmem:[%s1875 + $0xc] sm:$0xf]
        %v1880 = vld [vmem:[%s1875 + $0x10] sm:$0xf]
        %v1881 = vld [vmem:[%s1875 + $0x14] sm:$0xf]
        %v1882 = vld [vmem:[%s1875 + $0x18] sm:$0xf]
        %v1883 = vld [vmem:[%s1875 + $0x1c] sm:$0xf]
        %v1884 = vld [vmem:[%s1875 + $0x20] sm:$0xf]
        %v1885 = vld [vmem:[%s1875 + $0x24] sm:$0xf]
        %v1886 = vld [vmem:[%s1875 + $0x28] sm:$0xf]
        %v1887 = vld [vmem:[%s1875 + $0x2c] sm:$0xf]
        %v1888 = vld [vmem:[%s1875 + $0x30] sm:$0xf]
        %v1889 = vld [vmem:[%s1875 + $0x34] sm:$0xf]
        %v1890 = vld [vmem:[%s1875 + $0x38] sm:$0xf]
        %v1891 = vld [vmem:[%s1875 + $0x3c] sm:$0xf]
        %s1892 = scalar_lea.vmem %s8, 2
        %v1893 = vld [vmem:[%s1892] sm:$0x1]
        %v1895 = vlaneseq
        %v1896 = vshrl.u32 %v1895, 7
        %v1897 = vsub.s32 0, %v1896
        %v1898 = vrot.slane %v1893, %v1897
        %v1916 = vunpack.c.l.b16 %v1876
        %v1917 = vunpack.c.l.b16 %v1877
        %v1918 = vunpack.c.l.b16 %v1878
        %v1919 = vunpack.c.l.b16 %v1879
        %v1920 = vunpack.c.l.b16 %v1880
        %v1921 = vunpack.c.l.b16 %v1881
        %v1922 = vunpack.c.l.b16 %v1882
        %v1923 = vunpack.c.l.b16 %v1883
        %v1924 = vunpack.c.l.b16 %v1884
        %v1925 = vunpack.c.l.b16 %v1885
        %v1926 = vunpack.c.l.b16 %v1886
        %v1927 = vunpack.c.l.b16 %v1887
        %v1928 = vunpack.c.l.b16 %v1888
        %v1929 = vunpack.c.l.b16 %v1889
        %v1930 = vunpack.c.l.b16 %v1890
        %v1931 = vunpack.c.l.b16 %v1891
        %v1932 = vpack.c.b16 %v1917, %v1916
        %v1933 = vpack.c.b16 %v1919, %v1918
        %v1934 = vpack.c.b16 %v1921, %v1920
        %v1935 = vpack.c.b16 %v1923, %v1922
        %v1936 = vpack.c.b16 %v1925, %v1924
        %v1937 = vpack.c.b16 %v1927, %v1926
        %v1938 = vpack.c.b16 %v1929, %v1928
        %v1939 = vpack.c.b16 %v1931, %v1930
        %1948 = vmatprep.subr.bf16.mxu0 0
        %1949 = vmatpush1.bf16.msra.mxu0 %v1932
        %1950 = vmatprep.subr.bf16.mxu0 0
        %1951 = vmatpush1.bf16.msra.mxu0 %v1933
        %1952 = vmatprep.subr.bf16.mxu0 0
        %1953 = vmatpush1.bf16.msra.mxu0 %v1934
        %1954 = vmatprep.subr.bf16.mxu0 0
        %1955 = vmatpush1.bf16.msra.mxu0 %v1935
        %1956 = vmatprep.subr.bf16.mxu0 0
        %1957 = vmatpush1.bf16.msra.mxu0 %v1936
        %1958 = vmatprep.subr.bf16.mxu0 0
        %1959 = vmatpush1.bf16.msra.mxu0 %v1937
        %1960 = vmatprep.subr.bf16.mxu0 0
        %1961 = vmatpush1.bf16.msra.mxu0 %v1938
        %1962 = vmatprep.subr.bf16.mxu0 0
        %1963 = vmatpush1.bf16.msra.mxu0 %v1939
        %1964 = vmatprep.subr.bf16.mxu0 0
        %1965 = vmatpush1.bf16.msra.mxu0 0
        %1966 = vmatprep.subr.bf16.mxu0 0
        %1967 = vmatpush1.bf16.msra.mxu0 0
        %1968 = vmatprep.subr.bf16.mxu0 0
        %1969 = vmatpush1.bf16.msra.mxu0 0
        %1970 = vmatprep.subr.bf16.mxu0 0
        %1971 = vmatpush1.bf16.msra.mxu0 0
        %1972 = vmatprep.subr.bf16.mxu0 0
        %1973 = vmatpush1.bf16.msra.mxu0 0
        %1974 = vmatprep.subr.bf16.mxu0 0
        %1975 = vmatpush1.bf16.msra.mxu0 0
        %1976 = vmatprep.subr.bf16.mxu0 0
        %1977 = vmatpush1.bf16.msra.mxu0 0
        %1978 = vmatprep.subr.bf16.mxu0 0
        %1979 = vmatpush1.bf16.msra.mxu0 0
        %1980 = vmatprep.mubr.bf16.mxu0 0
        %1981 = vmatmul.mubr.bf16.gmra.mrb[0].mxu0 %v638
        %v1982 = vpop.f32.mrb[0].mxu0
        %v1983 = vadd.f32 %v1898, %v1982
        %v1984 = vpop.f32.mrb[0].mxu0
        %v1985 = vpop.f32.mrb[0].mxu0
        %v1986 = vpop.f32.mrb[0].mxu0
        %1987 = vdwg.mxu0
        %v1988 = vpack.c.bf16 %v1757, %v1757
        %v1989 = vpack.c.bf16 %v1870, %v1870
        %v1990 = vpack.c.bf16 %v1983, %v1983
        %v1992 = vsel %vm975, %v1988, 0
        %v1995 = vsel %vm975, %v1989, 0
        %1997 = vmatprep.subr.bf16.mxu0 0
        %1998 = vmatpush1.bf16.xpose.msra.mxu0 %v1995
        %1999 = vmatprep.subr.bf16.mxu0 0
        %2000 = vmatpush1.bf16.xpose.msra.mxu0 0
        %2001 = vmatprep.subr.bf16.mxu0 0
        %2002 = vmatpush1.bf16.xpose.msra.mxu0 0
        %2003 = vmatprep.subr.bf16.mxu0 0
        %2004 = vmatpush1.bf16.xpose.msra.mxu0 0
        %2005 = vmatprep.subr.bf16.mxu0 0
        %2006 = vmatpush1.bf16.xpose.msra.mxu0 0
        %2007 = vmatprep.subr.bf16.mxu0 0
        %2008 = vmatpush1.bf16.xpose.msra.mxu0 0
        %2009 = vmatprep.subr.bf16.mxu0 0
        %2010 = vmatpush1.bf16.xpose.msra.mxu0 0
        %2011 = vmatprep.subr.bf16.mxu0 0
        %2012 = vmatpush1.bf16.xpose.msra.mxu0 0
        %2013 = vmatprep.subr.bf16.mxu0 0
        %2014 = vmatpush1.bf16.xpose.msra.mxu0 0
        %2015 = vmatprep.subr.bf16.mxu0 0
        %2016 = vmatpush1.bf16.xpose.msra.mxu0 0
        %2017 = vmatprep.subr.bf16.mxu0 0
        %2018 = vmatpush1.bf16.xpose.msra.mxu0 0
        %2019 = vmatprep.subr.bf16.mxu0 0
        %2020 = vmatpush1.bf16.xpose.msra.mxu0 0
        %2021 = vmatprep.subr.bf16.mxu0 0
        %2022 = vmatpush1.bf16.xpose.msra.mxu0 0
        %2023 = vmatprep.subr.bf16.mxu0 0
        %2024 = vmatpush1.bf16.xpose.msra.mxu0 0
        %2025 = vmatprep.subr.bf16.mxu0 0
        %2026 = vmatpush1.bf16.xpose.msra.mxu0 0
        %2027 = vmatprep.subr.bf16.mxu0 0
        %2028 = vmatpush1.bf16.xpose.msra.mxu0 0
        %2029 = vmatprep.mubr.bf16.mxu0 0
        %2030 = vmatmul.mubr.bf16.gmra.mrb[0].mxu0 %v1992
        %v2031 = vpop.f32.mrb[0].mxu0
        %v2032 = vadd.f32 0.0, %v2031
        %v2033 = vpop.f32.mrb[0].mxu0
        %v2034 = vpop.f32.mrb[0].mxu0
        %v2035 = vpop.f32.mrb[0].mxu0
        %2036 = vdwg.mxu0
        %v2037 = vsel %vm1022, %v2032, -inf
        %2038 = vmax.xlane.f32.xlu0 %v2037
        %v2039 = vpop.xlane.xlu0 %2038
        %v2040 = vsub.f32 %v2032, %v2039
        %v2041 = vmul.f32 %v2040, 1.442695
        %v2042 = vpow.pop %v2041
        %v2043 = vsel %vm1022, %v2042, 0.0
        %2044 = vadd.xlane.f32.xlu0 %v2043
        %v2045 = vpop.xlane.xlu0 %2044
        %v2046 = vrcp.pop %v2045
        %v2047 = vmul.f32 %v2042, %v2046
        %v2048 = vpack.c.bf16 %v2047, %v2047
        %v2050 = vsel %vm1022, %v2048, 0
        %v2053 = vsel %vm1038, %v1990, 0
        %2055 = vmatprep.subr.bf16.mxu0 0
        %2056 = vmatpush1.bf16.msra.mxu0 %v2053
        %2057 = vmatprep.subr.bf16.mxu0 0
        %2058 = vmatpush1.bf16.msra.mxu0 0
        %2059 = vmatprep.subr.bf16.mxu0 0
        %2060 = vmatpush1.bf16.msra.mxu0 0
        %2061 = vmatprep.subr.bf16.mxu0 0
        %2062 = vmatpush1.bf16.msra.mxu0 0
        %2063 = vmatprep.subr.bf16.mxu0 0
        %2064 = vmatpush1.bf16.msra.mxu0 0
        %2065 = vmatprep.subr.bf16.mxu0 0
        %2066 = vmatpush1.bf16.msra.mxu0 0
        %2067 = vmatprep.subr.bf16.mxu0 0
        %2068 = vmatpush1.bf16.msra.mxu0 0
        %2069 = vmatprep.subr.bf16.mxu0 0
        %2070 = vmatpush1.bf16.msra.mxu0 0
        %2071 = vmatprep.subr.bf16.mxu0 0
        %2072 = vmatpush1.bf16.msra.mxu0 0
        %2073 = vmatprep.subr.bf16.mxu0 0
        %2074 = vmatpush1.bf16.msra.mxu0 0
        %2075 = vmatprep.subr.bf16.mxu0 0
        %2076 = vmatpush1.bf16.msra.mxu0 0
        %2077 = vmatprep.subr.bf16.mxu0 0
        %2078 = vmatpush1.bf16.msra.mxu0 0
        %2079 = vmatprep.subr.bf16.mxu0 0
        %2080 = vmatpush1.bf16.msra.mxu0 0
        %2081 = vmatprep.subr.bf16.mxu0 0
        %2082 = vmatpush1.bf16.msra.mxu0 0
        %2083 = vmatprep.subr.bf16.mxu0 0
        %2084 = vmatpush1.bf16.msra.mxu0 0
        %2085 = vmatprep.subr.bf16.mxu0 0
        %2086 = vmatpush1.bf16.msra.mxu0 0
        %2087 = vmatprep.mubr.bf16.mxu0 0
        %2088 = vmatmul.mubr.bf16.gmra.mrb[0].mxu0 %v2050
        %v2089 = vpop.f32.mrb[0].mxu0
        %v2090 = vadd.f32 0.0, %v2089
        %v2091 = vpop.f32.mrb[0].mxu0
        %v2092 = vpop.f32.mrb[0].mxu0
        %v2093 = vpop.f32.mrb[0].mxu0
        %2094 = vdwg.mxu0
        %v2095 = vpack.c.bf16 %v2090, %v2090
        %s2096 = scalar_lea.vmem %s9, 32
        %v2097 = vld [vmem:[%s2096] sm:$0xf]
        %v2098 = vld [vmem:[%s2096 + $0x4] sm:$0xf]
        %v2099 = vld [vmem:[%s2096 + $0x8] sm:$0xf]
        %v2100 = vld [vmem:[%s2096 + $0xc] sm:$0xf]
        %v2105 = vunpack.c.l.b16 %v2097
        %v2106 = vunpack.c.l.b16 %v2098
        %v2107 = vunpack.c.l.b16 %v2099
        %v2108 = vunpack.c.l.b16 %v2100
        %v2109 = vpack.c.b16 %v2106, %v2105
        %v2110 = vpack.c.b16 %v2108, %v2107
        %v2114 = vsel %vm975, %v2095, 0
        %2116 = vmatprep.subr.bf16.mxu0 0
        %2117 = vmatpush1.bf16.msra.mxu0 %v2109
        %2118 = vmatprep.subr.bf16.mxu0 0
        %2119 = vmatpush1.bf16.msra.mxu0 %v2110
        %2120 = vmatprep.subr.bf16.mxu0 0
        %2121 = vmatpush1.bf16.msra.mxu0 0
        %2122 = vmatprep.subr.bf16.mxu0 0
        %2123 = vmatpush1.bf16.msra.mxu0 0
        %2124 = vmatprep.subr.bf16.mxu0 0
        %2125 = vmatpush1.bf16.msra.mxu0 0
        %2126 = vmatprep.subr.bf16.mxu0 0
        %2127 = vmatpush1.bf16.msra.mxu0 0
        %2128 = vmatprep.subr.bf16.mxu0 0
        %2129 = vmatpush1.bf16.msra.mxu0 0
        %2130 = vmatprep.subr.bf16.mxu0 0
        %2131 = vmatpush1.bf16.msra.mxu0 0
        %2132 = vmatprep.subr.bf16.mxu0 0
        %2133 = vmatpush1.bf16.msra.mxu0 0
        %2134 = vmatprep.subr.bf16.mxu0 0
        %2135 = vmatpush1.bf16.msra.mxu0 0
        %2136 = vmatprep.subr.bf16.mxu0 0
        %2137 = vmatpush1.bf16.msra.mxu0 0
        %2138 = vmatprep.subr.bf16.mxu0 0
        %2139 = vmatpush1.bf16.msra.mxu0 0
        %2140 = vmatprep.subr.bf16.mxu0 0
        %2141 = vmatpush1.bf16.msra.mxu0 0
        %2142 = vmatprep.subr.bf16.mxu0 0
        %2143 = vmatpush1.bf16.msra.mxu0 0
        %2144 = vmatprep.subr.bf16.mxu0 0
        %2145 = vmatpush1.bf16.msra.mxu0 0
        %2146 = vmatprep.subr.bf16.mxu0 0
        %2147 = vmatpush1.bf16.msra.mxu0 0
        %2148 = vmatprep.mubr.bf16.mxu0 0
        %2149 = vmatmul.mubr.bf16.gmra.mrb[0].mxu0 %v2114
        %v2150 = vpop.f32.mrb[0].mxu0
        %v2151 = vadd.f32 0.0, %v2150
        %v2152 = vpop.f32.mrb[0].mxu0
        %v2153 = vpop.f32.mrb[0].mxu0
        %v2154 = vpop.f32.mrb[0].mxu0
        %2155 = vdwg.mxu0
        %v2156 = vadd.f32 %v1644, %v2151
        %s2157 = scalar_lea.vmem %s3, 192
        %v2158 = vld [vmem:[%s2157] sm:$0xf]
        %v2159 = vld [vmem:[%s2157 + $0x4] sm:$0xf]
        %v2160 = vld [vmem:[%s2157 + $0x8] sm:$0xf]
        %v2161 = vld [vmem:[%s2157 + $0xc] sm:$0xf]
        %v2162 = vld [vmem:[%s2157 + $0x10] sm:$0xf]
        %v2163 = vld [vmem:[%s2157 + $0x14] sm:$0xf]
        %v2164 = vld [vmem:[%s2157 + $0x18] sm:$0xf]
        %v2165 = vld [vmem:[%s2157 + $0x1c] sm:$0xf]
        %v2166 = vld [vmem:[%s2157 + $0x20] sm:$0xf]
        %v2167 = vld [vmem:[%s2157 + $0x24] sm:$0xf]
        %v2168 = vld [vmem:[%s2157 + $0x28] sm:$0xf]
        %v2169 = vld [vmem:[%s2157 + $0x2c] sm:$0xf]
        %v2170 = vld [vmem:[%s2157 + $0x30] sm:$0xf]
        %v2171 = vld [vmem:[%s2157 + $0x34] sm:$0xf]
        %v2172 = vld [vmem:[%s2157 + $0x38] sm:$0xf]
        %v2173 = vld [vmem:[%s2157 + $0x3c] sm:$0xf]
        %s2174 = scalar_lea.vmem %s4, 3
        %v2175 = vld [vmem:[%s2174] sm:$0x1]
        %v2177 = vlaneseq
        %v2178 = vshrl.u32 %v2177, 7
        %v2179 = vsub.s32 0, %v2178
        %v2180 = vrot.slane %v2175, %v2179
        %v2198 = vunpack.c.l.b16 %v2158
        %v2199 = vunpack.c.l.b16 %v2159
        %v2200 = vunpack.c.l.b16 %v2160
        %v2201 = vunpack.c.l.b16 %v2161
        %v2202 = vunpack.c.l.b16 %v2162
        %v2203 = vunpack.c.l.b16 %v2163
        %v2204 = vunpack.c.l.b16 %v2164
        %v2205 = vunpack.c.l.b16 %v2165
        %v2206 = vunpack.c.l.b16 %v2166
        %v2207 = vunpack.c.l.b16 %v2167
        %v2208 = vunpack.c.l.b16 %v2168
        %v2209 = vunpack.c.l.b16 %v2169
        %v2210 = vunpack.c.l.b16 %v2170
        %v2211 = vunpack.c.l.b16 %v2171
        %v2212 = vunpack.c.l.b16 %v2172
        %v2213 = vunpack.c.l.b16 %v2173
        %v2214 = vpack.c.b16 %v2199, %v2198
        %v2215 = vpack.c.b16 %v2201, %v2200
        %v2216 = vpack.c.b16 %v2203, %v2202
        %v2217 = vpack.c.b16 %v2205, %v2204
        %v2218 = vpack.c.b16 %v2207, %v2206
        %v2219 = vpack.c.b16 %v2209, %v2208
        %v2220 = vpack.c.b16 %v2211, %v2210
        %v2221 = vpack.c.b16 %v2213, %v2212
        %2230 = vmatprep.subr.bf16.mxu0 0
        %2231 = vmatpush1.bf16.msra.mxu0 %v2214
        %2232 = vmatprep.subr.bf16.mxu0 0
        %2233 = vmatpush1.bf16.msra.mxu0 %v2215
        %2234 = vmatprep.subr.bf16.mxu0 0
        %2235 = vmatpush1.bf16.msra.mxu0 %v2216
        %2236 = vmatprep.subr.bf16.mxu0 0
        %2237 = vmatpush1.bf16.msra.mxu0 %v2217
        %2238 = vmatprep.subr.bf16.mxu0 0
        %2239 = vmatpush1.bf16.msra.mxu0 %v2218
        %2240 = vmatprep.subr.bf16.mxu0 0
        %2241 = vmatpush1.bf16.msra.mxu0 %v2219
        %2242 = vmatprep.subr.bf16.mxu0 0
        %2243 = vmatpush1.bf16.msra.mxu0 %v2220
        %2244 = vmatprep.subr.bf16.mxu0 0
        %2245 = vmatpush1.bf16.msra.mxu0 %v2221
        %2246 = vmatprep.subr.bf16.mxu0 0
        %2247 = vmatpush1.bf16.msra.mxu0 0
        %2248 = vmatprep.subr.bf16.mxu0 0
        %2249 = vmatpush1.bf16.msra.mxu0 0
        %2250 = vmatprep.subr.bf16.mxu0 0
        %2251 = vmatpush1.bf16.msra.mxu0 0
        %2252 = vmatprep.subr.bf16.mxu0 0
        %2253 = vmatpush1.bf16.msra.mxu0 0
        %2254 = vmatprep.subr.bf16.mxu0 0
        %2255 = vmatpush1.bf16.msra.mxu0 0
        %2256 = vmatprep.subr.bf16.mxu0 0
        %2257 = vmatpush1.bf16.msra.mxu0 0
        %2258 = vmatprep.subr.bf16.mxu0 0
        %2259 = vmatpush1.bf16.msra.mxu0 0
        %2260 = vmatprep.subr.bf16.mxu0 0
        %2261 = vmatpush1.bf16.msra.mxu0 0
        %2262 = vmatprep.mubr.bf16.mxu0 0
        %2263 = vmatmul.mubr.bf16.gmra.mrb[0].mxu0 %v634
        %v2264 = vpop.f32.mrb[0].mxu0
        %v2265 = vadd.f32 %v2180, %v2264
        %v2266 = vpop.f32.mrb[0].mxu0
        %v2267 = vpop.f32.mrb[0].mxu0
        %v2268 = vpop.f32.mrb[0].mxu0
        %2269 = vdwg.mxu0
        %s2270 = scalar_lea.vmem %s5, 192
        %v2271 = vld [vmem:[%s2270] sm:$0xf]
        %v2272 = vld [vmem:[%s2270 + $0x4] sm:$0xf]
        %v2273 = vld [vmem:[%s2270 + $0x8] sm:$0xf]
        %v2274 = vld [vmem:[%s2270 + $0xc] sm:$0xf]
        %v2275 = vld [vmem:[%s2270 + $0x10] sm:$0xf]
        %v2276 = vld [vmem:[%s2270 + $0x14] sm:$0xf]
        %v2277 = vld [vmem:[%s2270 + $0x18] sm:$0xf]
        %v2278 = vld [vmem:[%s2270 + $0x1c] sm:$0xf]
        %v2279 = vld [vmem:[%s2270 + $0x20] sm:$0xf]
        %v2280 = vld [vmem:[%s2270 + $0x24] sm:$0xf]
        %v2281 = vld [vmem:[%s2270 + $0x28] sm:$0xf]
        %v2282 = vld [vmem:[%s2270 + $0x2c] sm:$0xf]
        %v2283 = vld [vmem:[%s2270 + $0x30] sm:$0xf]
        %v2284 = vld [vmem:[%s2270 + $0x34] sm:$0xf]
        %v2285 = vld [vmem:[%s2270 + $0x38] sm:$0xf]
        %v2286 = vld [vmem:[%s2270 + $0x3c] sm:$0xf]
        %s2287 = scalar_lea.vmem %s6, 3
        %v2288 = vld [vmem:[%s2287] sm:$0x1]
        %v2290 = vlaneseq
        %v2291 = vshrl.u32 %v2290, 7
        %v2292 = vsub.s32 0, %v2291
        %v2293 = vrot.slane %v2288, %v2292
        %v2311 = vunpack.c.l.b16 %v2271
        %v2312 = vunpack.c.l.b16 %v2272
        %v2313 = vunpack.c.l.b16 %v2273
        %v2314 = vunpack.c.l.b16 %v2274
        %v2315 = vunpack.c.l.b16 %v2275
        %v2316 = vunpack.c.l.b16 %v2276
        %v2317 = vunpack.c.l.b16 %v2277
        %v2318 = vunpack.c.l.b16 %v2278
        %v2319 = vunpack.c.l.b16 %v2279
        %v2320 = vunpack.c.l.b16 %v2280
        %v2321 = vunpack.c.l.b16 %v2281
        %v2322 = vunpack.c.l.b16 %v2282
        %v2323 = vunpack.c.l.b16 %v2283
        %v2324 = vunpack.c.l.b16 %v2284
        %v2325 = vunpack.c.l.b16 %v2285
        %v2326 = vunpack.c.l.b16 %v2286
        %v2327 = vpack.c.b16 %v2312, %v2311
        %v2328 = vpack.c.b16 %v2314, %v2313
        %v2329 = vpack.c.b16 %v2316, %v2315
        %v2330 = vpack.c.b16 %v2318, %v2317
        %v2331 = vpack.c.b16 %v2320, %v2319
        %v2332 = vpack.c.b16 %v2322, %v2321
        %v2333 = vpack.c.b16 %v2324, %v2323
        %v2334 = vpack.c.b16 %v2326, %v2325
        %2343 = vmatprep.subr.bf16.mxu0 0
        %2344 = vmatpush1.bf16.msra.mxu0 %v2327
        %2345 = vmatprep.subr.bf16.mxu0 0
        %2346 = vmatpush1.bf16.msra.mxu0 %v2328
        %2347 = vmatprep.subr.bf16.mxu0 0
        %2348 = vmatpush1.bf16.msra.mxu0 %v2329
        %2349 = vmatprep.subr.bf16.mxu0 0
        %2350 = vmatpush1.bf16.msra.mxu0 %v2330
        %2351 = vmatprep.subr.bf16.mxu0 0
        %2352 = vmatpush1.bf16.msra.mxu0 %v2331
        %2353 = vmatprep.subr.bf16.mxu0 0
        %2354 = vmatpush1.bf16.msra.mxu0 %v2332
        %2355 = vmatprep.subr.bf16.mxu0 0
        %2356 = vmatpush1.bf16.msra.mxu0 %v2333
        %2357 = vmatprep.subr.bf16.mxu0 0
        %2358 = vmatpush1.bf16.msra.mxu0 %v2334
        %2359 = vmatprep.subr.bf16.mxu0 0
        %2360 = vmatpush1.bf16.msra.mxu0 0
        %2361 = vmatprep.subr.bf16.mxu0 0
        %2362 = vmatpush1.bf16.msra.mxu0 0
        %2363 = vmatprep.subr.bf16.mxu0 0
        %2364 = vmatpush1.bf16.msra.mxu0 0
        %2365 = vmatprep.subr.bf16.mxu0 0
        %2366 = vmatpush1.bf16.msra.mxu0 0
        %2367 = vmatprep.subr.bf16.mxu0 0
        %2368 = vmatpush1.bf16.msra.mxu0 0
        %2369 = vmatprep.subr.bf16.mxu0 0
        %2370 = vmatpush1.bf16.msra.mxu0 0
        %2371 = vmatprep.subr.bf16.mxu0 0
        %2372 = vmatpush1.bf16.msra.mxu0 0
        %2373 = vmatprep.subr.bf16.mxu0 0
        %2374 = vmatpush1.bf16.msra.mxu0 0
        %2375 = vmatprep.mubr.bf16.mxu0 0
        %2376 = vmatmul.mubr.bf16.gmra.mrb[0].mxu0 %v636
        %v2377 = vpop.f32.mrb[0].mxu0
        %v2378 = vadd.f32 %v2293, %v2377
        %v2379 = vpop.f32.mrb[0].mxu0
        %v2380 = vpop.f32.mrb[0].mxu0
        %v2381 = vpop.f32.mrb[0].mxu0
        %2382 = vdwg.mxu0
        %s2383 = scalar_lea.vmem %s7, 192
        %v2384 = vld [vmem:[%s2383] sm:$0xf]
        %v2385 = vld [vmem:[%s2383 + $0x4] sm:$0xf]
        %v2386 = vld [vmem:[%s2383 + $0x8] sm:$0xf]
        %v2387 = vld [vmem:[%s2383 + $0xc] sm:$0xf]
        %v2388 = vld [vmem:[%s2383 + $0x10] sm:$0xf]
        %v2389 = vld [vmem:[%s2383 + $0x14] sm:$0xf]
        %v2390 = vld [vmem:[%s2383 + $0x18] sm:$0xf]
        %v2391 = vld [vmem:[%s2383 + $0x1c] sm:$0xf]
        %v2392 = vld [vmem:[%s2383 + $0x20] sm:$0xf]
        %v2393 = vld [vmem:[%s2383 + $0x24] sm:$0xf]
        %v2394 = vld [vmem:[%s2383 + $0x28] sm:$0xf]
        %v2395 = vld [vmem:[%s2383 + $0x2c] sm:$0xf]
        %v2396 = vld [vmem:[%s2383 + $0x30] sm:$0xf]
        %v2397 = vld [vmem:[%s2383 + $0x34] sm:$0xf]
        %v2398 = vld [vmem:[%s2383 + $0x38] sm:$0xf]
        %v2399 = vld [vmem:[%s2383 + $0x3c] sm:$0xf]
        %s2400 = scalar_lea.vmem %s8, 3
        %v2401 = vld [vmem:[%s2400] sm:$0x1]
        %v2403 = vlaneseq
        %v2404 = vshrl.u32 %v2403, 7
        %v2405 = vsub.s32 0, %v2404
        %v2406 = vrot.slane %v2401, %v2405
        %v2424 = vunpack.c.l.b16 %v2384
        %v2425 = vunpack.c.l.b16 %v2385
        %v2426 = vunpack.c.l.b16 %v2386
        %v2427 = vunpack.c.l.b16 %v2387
        %v2428 = vunpack.c.l.b16 %v2388
        %v2429 = vunpack.c.l.b16 %v2389
        %v2430 = vunpack.c.l.b16 %v2390
        %v2431 = vunpack.c.l.b16 %v2391
        %v2432 = vunpack.c.l.b16 %v2392
        %v2433 = vunpack.c.l.b16 %v2393
        %v2434 = vunpack.c.l.b16 %v2394
        %v2435 = vunpack.c.l.b16 %v2395
        %v2436 = vunpack.c.l.b16 %v2396
        %v2437 = vunpack.c.l.b16 %v2397
        %v2438 = vunpack.c.l.b16 %v2398
        %v2439 = vunpack.c.l.b16 %v2399
        %v2440 = vpack.c.b16 %v2425, %v2424
        %v2441 = vpack.c.b16 %v2427, %v2426
        %v2442 = vpack.c.b16 %v2429, %v2428
        %v2443 = vpack.c.b16 %v2431, %v2430
        %v2444 = vpack.c.b16 %v2433, %v2432
        %v2445 = vpack.c.b16 %v2435, %v2434
        %v2446 = vpack.c.b16 %v2437, %v2436
        %v2447 = vpack.c.b16 %v2439, %v2438
        %2456 = vmatprep.subr.bf16.mxu0 0
        %2457 = vmatpush1.bf16.msra.mxu0 %v2440
        %2458 = vmatprep.subr.bf16.mxu0 0
        %2459 = vmatpush1.bf16.msra.mxu0 %v2441
        %2460 = vmatprep.subr.bf16.mxu0 0
        %2461 = vmatpush1.bf16.msra.mxu0 %v2442
        %2462 = vmatprep.subr.bf16.mxu0 0
        %2463 = vmatpush1.bf16.msra.mxu0 %v2443
        %2464 = vmatprep.subr.bf16.mxu0 0
        %2465 = vmatpush1.bf16.msra.mxu0 %v2444
        %2466 = vmatprep.subr.bf16.mxu0 0
        %2467 = vmatpush1.bf16.msra.mxu0 %v2445
        %2468 = vmatprep.subr.bf16.mxu0 0
        %2469 = vmatpush1.bf16.msra.mxu0 %v2446
        %2470 = vmatprep.subr.bf16.mxu0 0
        %2471 = vmatpush1.bf16.msra.mxu0 %v2447
        %2472 = vmatprep.subr.bf16.mxu0 0
        %2473 = vmatpush1.bf16.msra.mxu0 0
        %2474 = vmatprep.subr.bf16.mxu0 0
        %2475 = vmatpush1.bf16.msra.mxu0 0
        %2476 = vmatprep.subr.bf16.mxu0 0
        %2477 = vmatpush1.bf16.msra.mxu0 0
        %2478 = vmatprep.subr.bf16.mxu0 0
        %2479 = vmatpush1.bf16.msra.mxu0 0
        %2480 = vmatprep.subr.bf16.mxu0 0
        %2481 = vmatpush1.bf16.msra.mxu0 0
        %2482 = vmatprep.subr.bf16.mxu0 0
        %2483 = vmatpush1.bf16.msra.mxu0 0
        %2484 = vmatprep.subr.bf16.mxu0 0
        %2485 = vmatpush1.bf16.msra.mxu0 0
        %2486 = vmatprep.subr.bf16.mxu0 0
        %2487 = vmatpush1.bf16.msra.mxu0 0
        %2488 = vmatprep.mubr.bf16.mxu0 0
        %2489 = vmatmul.mubr.bf16.gmra.mrb[0].mxu0 %v638
        %v2490 = vpop.f32.mrb[0].mxu0
        %v2491 = vadd.f32 %v2406, %v2490
        %v2492 = vpop.f32.mrb[0].mxu0
        %v2493 = vpop.f32.mrb[0].mxu0
        %v2494 = vpop.f32.mrb[0].mxu0
        %2495 = vdwg.mxu0
        %v2496 = vpack.c.bf16 %v2265, %v2265
        %v2497 = vpack.c.bf16 %v2378, %v2378
        %v2498 = vpack.c.bf16 %v2491, %v2491
        %v2500 = vsel %vm975, %v2496, 0
        %v2503 = vsel %vm975, %v2497, 0
        %2505 = vmatprep.subr.bf16.mxu0 0
        %2506 = vmatpush1.bf16.xpose.msra.mxu0 %v2503
        %2507 = vmatprep.subr.bf16.mxu0 0
        %2508 = vmatpush1.bf16.xpose.msra.mxu0 0
        %2509 = vmatprep.subr.bf16.mxu0 0
        %2510 = vmatpush1.bf16.xpose.msra.mxu0 0
        %2511 = vmatprep.subr.bf16.mxu0 0
        %2512 = vmatpush1.bf16.xpose.msra.mxu0 0
        %2513 = vmatprep.subr.bf16.mxu0 0
        %2514 = vmatpush1.bf16.xpose.msra.mxu0 0
        %2515 = vmatprep.subr.bf16.mxu0 0
        %2516 = vmatpush1.bf16.xpose.msra.mxu0 0
        %2517 = vmatprep.subr.bf16.mxu0 0
        %2518 = vmatpush1.bf16.xpose.msra.mxu0 0
        %2519 = vmatprep.subr.bf16.mxu0 0
        %2520 = vmatpush1.bf16.xpose.msra.mxu0 0
        %2521 = vmatprep.subr.bf16.mxu0 0
        %2522 = vmatpush1.bf16.xpose.msra.mxu0 0
        %2523 = vmatprep.subr.bf16.mxu0 0
        %2524 = vmatpush1.bf16.xpose.msra.mxu0 0
        %2525 = vmatprep.subr.bf16.mxu0 0
        %2526 = vmatpush1.bf16.xpose.msra.mxu0 0
        %2527 = vmatprep.subr.bf16.mxu0 0
        %2528 = vmatpush1.bf16.xpose.msra.mxu0 0
        %2529 = vmatprep.subr.bf16.mxu0 0
        %2530 = vmatpush1.bf16.xpose.msra.mxu0 0
        %2531 = vmatprep.subr.bf16.mxu0 0
        %2532 = vmatpush1.bf16.xpose.msra.mxu0 0
        %2533 = vmatprep.subr.bf16.mxu0 0
        %2534 = vmatpush1.bf16.xpose.msra.mxu0 0
        %2535 = vmatprep.subr.bf16.mxu0 0
        %2536 = vmatpush1.bf16.xpose.msra.mxu0 0
        %2537 = vmatprep.mubr.bf16.mxu0 0
        %2538 = vmatmul.mubr.bf16.gmra.mrb[0].mxu0 %v2500
        %v2539 = vpop.f32.mrb[0].mxu0
        %v2540 = vadd.f32 0.0, %v2539
        %v2541 = vpop.f32.mrb[0].mxu0
        %v2542 = vpop.f32.mrb[0].mxu0
        %v2543 = vpop.f32.mrb[0].mxu0
        %2544 = vdwg.mxu0
        %v2545 = vsel %vm1022, %v2540, -inf
        %2546 = vmax.xlane.f32.xlu0 %v2545
        %v2547 = vpop.xlane.xlu0 %2546
        %v2548 = vsub.f32 %v2540, %v2547
        %v2549 = vmul.f32 %v2548, 1.442695
        %v2550 = vpow.pop %v2549
        %v2551 = vsel %vm1022, %v2550, 0.0
        %2552 = vadd.xlane.f32.xlu0 %v2551
        %v2553 = vpop.xlane.xlu0 %2552
        %v2554 = vrcp.pop %v2553
        %v2555 = vmul.f32 %v2550, %v2554
        %v2556 = vpack.c.bf16 %v2555, %v2555
        %v2558 = vsel %vm1022, %v2556, 0
        %v2561 = vsel %vm1038, %v2498, 0
        %2563 = vmatprep.subr.bf16.mxu0 0
        %2564 = vmatpush1.bf16.msra.mxu0 %v2561
        %2565 = vmatprep.subr.bf16.mxu0 0
        %2566 = vmatpush1.bf16.msra.mxu0 0
        %2567 = vmatprep.subr.bf16.mxu0 0
        %2568 = vmatpush1.bf16.msra.mxu0 0
        %2569 = vmatprep.subr.bf16.mxu0 0
        %2570 = vmatpush1.bf16.msra.mxu0 0
        %2571 = vmatprep.subr.bf16.mxu0 0
        %2572 = vmatpush1.bf16.msra.mxu0 0
        %2573 = vmatprep.subr.bf16.mxu0 0
        %2574 = vmatpush1.bf16.msra.mxu0 0
        %2575 = vmatprep.subr.bf16.mxu0 0
        %2576 = vmatpush1.bf16.msra.mxu0 0
        %2577 = vmatprep.subr.bf16.mxu0 0
        %2578 = vmatpush1.bf16.msra.mxu0 0
        %2579 = vmatprep.subr.bf16.mxu0 0
        %2580 = vmatpush1.bf16.msra.mxu0 0
        %2581 = vmatprep.subr.bf16.mxu0 0
        %2582 = vmatpush1.bf16.msra.mxu0 0
        %2583 = vmatprep.subr.bf16.mxu0 0
        %2584 = vmatpush1.bf16.msra.mxu0 0
        %2585 = vmatprep.subr.bf16.mxu0 0
        %2586 = vmatpush1.bf16.msra.mxu0 0
        %2587 = vmatprep.subr.bf16.mxu0 0
        %2588 = vmatpush1.bf16.msra.mxu0 0
        %2589 = vmatprep.subr.bf16.mxu0 0
        %2590 = vmatpush1.bf16.msra.mxu0 0
        %2591 = vmatprep.subr.bf16.mxu0 0
        %2592 = vmatpush1.bf16.msra.mxu0 0
        %2593 = vmatprep.subr.bf16.mxu0 0
        %2594 = vmatpush1.bf16.msra.mxu0 0
        %2595 = vmatprep.mubr.bf16.mxu0 0
        %2596 = vmatmul.mubr.bf16.gmra.mrb[0].mxu0 %v2558
        %v2597 = vpop.f32.mrb[0].mxu0
        %v2598 = vadd.f32 0.0, %v2597
        %v2599 = vpop.f32.mrb[0].mxu0
        %v2600 = vpop.f32.mrb[0].mxu0
        %v2601 = vpop.f32.mrb[0].mxu0
        %2602 = vdwg.mxu0
        %v2603 = vpack.c.bf16 %v2598, %v2598
        %s2604 = scalar_lea.vmem %s9, 48
        %v2605 = vld [vmem:[%s2604] sm:$0xf]
        %v2606 = vld [vmem:[%s2604 + $0x4] sm:$0xf]
        %v2607 = vld [vmem:[%s2604 + $0x8] sm:$0xf]
        %v2608 = vld [vmem:[%s2604 + $0xc] sm:$0xf]
        %v2613 = vunpack.c.l.b16 %v2605
        %v2614 = vunpack.c.l.b16 %v2606
        %v2615 = vunpack.c.l.b16 %v2607
        %v2616 = vunpack.c.l.b16 %v2608
        %v2617 = vpack.c.b16 %v2614, %v2613
        %v2618 = vpack.c.b16 %v2616, %v2615
        %v2622 = vsel %vm975, %v2603, 0
        %2624 = vmatprep.subr.bf16.mxu0 0
        %2625 = vmatpush1.bf16.msra.mxu0 %v2617
        %2626 = vmatprep.subr.bf16.mxu0 0
        %2627 = vmatpush1.bf16.msra.mxu0 %v2618
        %2628 = vmatprep.subr.bf16.mxu0 0
        %2629 = vmatpush1.bf16.msra.mxu0 0
        %2630 = vmatprep.subr.bf16.mxu0 0
        %2631 = vmatpush1.bf16.msra.mxu0 0
        %2632 = vmatprep.subr.bf16.mxu0 0
        %2633 = vmatpush1.bf16.msra.mxu0 0
        %2634 = vmatprep.subr.bf16.mxu0 0
        %2635 = vmatpush1.bf16.msra.mxu0 0
        %2636 = vmatprep.subr.bf16.mxu0 0
        %2637 = vmatpush1.bf16.msra.mxu0 0
        %2638 = vmatprep.subr.bf16.mxu0 0
        %2639 = vmatpush1.bf16.msra.mxu0 0
        %2640 = vmatprep.subr.bf16.mxu0 0
        %2641 = vmatpush1.bf16.msra.mxu0 0
        %2642 = vmatprep.subr.bf16.mxu0 0
        %2643 = vmatpush1.bf16.msra.mxu0 0
        %2644 = vmatprep.subr.bf16.mxu0 0
        %2645 = vmatpush1.bf16.msra.mxu0 0
        %2646 = vmatprep.subr.bf16.mxu0 0
        %2647 = vmatpush1.bf16.msra.mxu0 0
        %2648 = vmatprep.subr.bf16.mxu0 0
        %2649 = vmatpush1.bf16.msra.mxu0 0
        %2650 = vmatprep.subr.bf16.mxu0 0
        %2651 = vmatpush1.bf16.msra.mxu0 0
        %2652 = vmatprep.subr.bf16.mxu0 0
        %2653 = vmatpush1.bf16.msra.mxu0 0
        %2654 = vmatprep.subr.bf16.mxu0 0
        %2655 = vmatpush1.bf16.msra.mxu0 0
        %2656 = vmatprep.mubr.bf16.mxu0 0
        %2657 = vmatmul.mubr.bf16.gmra.mrb[0].mxu0 %v2622
        %v2658 = vpop.f32.mrb[0].mxu0
        %v2659 = vadd.f32 0.0, %v2658
        %v2660 = vpop.f32.mrb[0].mxu0
        %v2661 = vpop.f32.mrb[0].mxu0
        %v2662 = vpop.f32.mrb[0].mxu0
        %2663 = vdwg.mxu0
        %v2664 = vadd.f32 %v2156, %v2659
        %v2665 = vld [vmem:[%s10] sm:$0x1]
        %v2667 = vlaneseq
        %v2668 = vshrl.u32 %v2667, 7
        %v2669 = vsub.s32 0, %v2668
        %v2670 = vrot.slane %v2665, %v2669
        %v2672 = vadd.f32 %v2664, %v2670
        %v2673 = vadd.f32 %v633, %v2672
        %v2674 = vld [vmem:[%s11] sm:$0x1]
        %v2675 = vld [vmem:[%s12] sm:$0x1]
        %2676 = vadd.xlane.f32.xlu0 %v2673
        %v2677 = vpop.xlane.xlu0 %2676
        %v2678 = vrcp.pop 128.0
        %v2679 = vmul.f32 %v2677, %v2678
        %v2680 = vsub.f32 %v2673, %v2679
        %v2681 = vmul.f32 %v2680, %v2680
        %2682 = vadd.xlane.f32.xlu0 %v2681
        %v2683 = vpop.xlane.xlu0 %2682
        %v2684 = vmul.f32 %v2683, %v2678
        %v2685 = vadd.f32 %v2684, 1e-05
        %v2686 = vrsqrt.pop %v2685
        %v2687 = vmul.f32 %v2680, %v2686
        %v2689 = vlaneseq
        %v2690 = vshrl.u32 %v2689, 7
        %v2691 = vsub.s32 0, %v2690
        %v2692 = vrot.slane %v2674, %v2691
        %v2694 = vmul.f32 %v2687, %v2692
        %v2696 = vlaneseq
        %v2697 = vshrl.u32 %v2696, 7
        %v2698 = vsub.s32 0, %v2697
        %v2699 = vrot.slane %v2675, %v2698
        %v2701 = vadd.f32 %v2694, %v2699
        %v2702 = vpack.c.bf16 %v2701, %v2701
        %v2703 = vld [vmem:[%s13] sm:$0xff]
        %v2704 = vld [vmem:[%s13 + $0x8] sm:$0xff]
        %v2705 = vld [vmem:[%s13 + $0x10] sm:$0xff]
        %v2706 = vld [vmem:[%s13 + $0x18] sm:$0xff]
        %v2707 = vld [vmem:[%s13 + $0x20] sm:$0xff]
        %v2708 = vld [vmem:[%s13 + $0x28] sm:$0xff]
        %v2709 = vld [vmem:[%s13 + $0x30] sm:$0xff]
        %v2710 = vld [vmem:[%s13 + $0x38] sm:$0xff]
        %v2711 = vld [vmem:[%s13 + $0x40] sm:$0xff]
        %v2712 = vld [vmem:[%s13 + $0x48] sm:$0xff]
        %v2713 = vld [vmem:[%s13 + $0x50] sm:$0xff]
        %v2714 = vld [vmem:[%s13 + $0x58] sm:$0xff]
        %v2715 = vld [vmem:[%s13 + $0x60] sm:$0xff]
        %v2716 = vld [vmem:[%s13 + $0x68] sm:$0xff]
        %v2717 = vld [vmem:[%s13 + $0x70] sm:$0xff]
        %v2718 = vld [vmem:[%s13 + $0x78] sm:$0xff]
        %v2719 = vld [vmem:[%s14] sm:$0x3]
        %v2721 = vlaneseq
        %v2722 = vshrl.u32 %v2721, 7
        %v2723 = vsub.s32 0, %v2722
        %v2724 = vrot.slane %v2719, %v2723
        %v2725 = vlaneseq
        %v2726 = vshrl.u32 %v2725, 7
        %v2727 = vsub.s32 1, %v2726
        %v2728 = vrot.slane %v2719, %v2727
        %v2747 = vunpack.c.l.b16 %v2703
        %v2748 = vunpack.c.h.b16 %v2703
        %v2749 = vunpack.c.l.b16 %v2704
        %v2750 = vunpack.c.h.b16 %v2704
        %v2751 = vunpack.c.l.b16 %v2705
        %v2752 = vunpack.c.h.b16 %v2705
        %v2753 = vunpack.c.l.b16 %v2706
        %v2754 = vunpack.c.h.b16 %v2706
        %v2755 = vunpack.c.l.b16 %v2707
        %v2756 = vunpack.c.h.b16 %v2707
        %v2757 = vunpack.c.l.b16 %v2708
        %v2758 = vunpack.c.h.b16 %v2708
        %v2759 = vunpack.c.l.b16 %v2709
        %v2760 = vunpack.c.h.b16 %v2709
        %v2761 = vunpack.c.l.b16 %v2710
        %v2762 = vunpack.c.h.b16 %v2710
        %v2763 = vunpack.c.l.b16 %v2711
        %v2764 = vunpack.c.h.b16 %v2711
        %v2765 = vunpack.c.l.b16 %v2712
        %v2766 = vunpack.c.h.b16 %v2712
        %v2767 = vunpack.c.l.b16 %v2713
        %v2768 = vunpack.c.h.b16 %v2713
        %v2769 = vunpack.c.l.b16 %v2714
        %v2770 = vunpack.c.h.b16 %v2714
        %v2771 = vunpack.c.l.b16 %v2715
        %v2772 = vunpack.c.h.b16 %v2715
        %v2773 = vunpack.c.l.b16 %v2716
        %v2774 = vunpack.c.h.b16 %v2716
        %v2775 = vunpack.c.l.b16 %v2717
        %v2776 = vunpack.c.h.b16 %v2717
        %v2777 = vunpack.c.l.b16 %v2718
        %v2778 = vunpack.c.h.b16 %v2718
        %v2779 = vpack.c.b16 %v2749, %v2747
        %v2780 = vpack.c.b16 %v2750, %v2748
        %v2781 = vpack.c.b16 %v2753, %v2751
        %v2782 = vpack.c.b16 %v2754, %v2752
        %v2783 = vpack.c.b16 %v2757, %v2755
        %v2784 = vpack.c.b16 %v2758, %v2756
        %v2785 = vpack.c.b16 %v2761, %v2759
        %v2786 = vpack.c.b16 %v2762, %v2760
        %v2787 = vpack.c.b16 %v2765, %v2763
        %v2788 = vpack.c.b16 %v2766, %v2764
        %v2789 = vpack.c.b16 %v2769, %v2767
        %v2790 = vpack.c.b16 %v2770, %v2768
        %v2791 = vpack.c.b16 %v2773, %v2771
        %v2792 = vpack.c.b16 %v2774, %v2772
        %v2793 = vpack.c.b16 %v2777, %v2775
        %v2794 = vpack.c.b16 %v2778, %v2776
        %2811 = vmatprep.subr.bf16.mxu0 %v2780
        %2812 = vmatpush1.bf16.msra.mxu0 %v2779
        %2813 = vmatprep.subr.bf16.mxu0 %v2782
        %2814 = vmatpush1.bf16.msra.mxu0 %v2781
        %2815 = vmatprep.subr.bf16.mxu0 %v2784
        %2816 = vmatpush1.bf16.msra.mxu0 %v2783
        %2817 = vmatprep.subr.bf16.mxu0 %v2786
        %2818 = vmatpush1.bf16.msra.mxu0 %v2785
        %2819 = vmatprep.subr.bf16.mxu0 %v2788
        %2820 = vmatpush1.bf16.msra.mxu0 %v2787
        %2821 = vmatprep.subr.bf16.mxu0 %v2790
        %2822 = vmatpush1.bf16.msra.mxu0 %v2789
        %2823 = vmatprep.subr.bf16.mxu0 %v2792
        %2824 = vmatpush1.bf16.msra.mxu0 %v2791
        %2825 = vmatprep.subr.bf16.mxu0 %v2794
        %2826 = vmatpush1.bf16.msra.mxu0 %v2793
        %2827 = vmatprep.subr.bf16.mxu0 0
        %2828 = vmatpush1.bf16.msra.mxu0 0
        %2829 = vmatprep.subr.bf16.mxu0 0
        %2830 = vmatpush1.bf16.msra.mxu0 0
        %2831 = vmatprep.subr.bf16.mxu0 0
        %2832 = vmatpush1.bf16.msra.mxu0 0
        %2833 = vmatprep.subr.bf16.mxu0 0
        %2834 = vmatpush1.bf16.msra.mxu0 0
        %2835 = vmatprep.subr.bf16.mxu0 0
        %2836 = vmatpush1.bf16.msra.mxu0 0
        %2837 = vmatprep.subr.bf16.mxu0 0
        %2838 = vmatpush1.bf16.msra.mxu0 0
        %2839 = vmatprep.subr.bf16.mxu0 0
        %2840 = vmatpush1.bf16.msra.mxu0 0
        %2841 = vmatprep.subr.bf16.mxu0 0
        %2842 = vmatpush1.bf16.msra.mxu0 0
        %2843 = vmatprep.mubr.bf16.mxu0 0
        %2844 = vmatmul.mubr.bf16.gmra.mrb[0].mxu0 %v2702
        %v2845 = vpop.f32.mrb[0].mxu0
        %v2846 = vadd.f32 %v2724, %v2845
        %v2847 = vpop.f32.mrb[0].mxu0
        %v2848 = vadd.f32 %v2728, %v2847
        %v2849 = vpop.f32.mrb[0].mxu0
        %v2850 = vpop.f32.mrb[0].mxu0
        %2851 = vdwg.mxu0
        %v2852 = vmax.f32 %v2846, 0.0
        %v2853 = vmax.f32 %v2848, 0.0
        %v2854 = vpack.c.bf16 %v2852, %v2852
        %v2855 = vpack.c.bf16 %v2853, %v2853
        %v2856 = vld [vmem:[%s15] sm:$0xf]
        %v2857 = vld [vmem:[%s15 + $0x4] sm:$0xf]
        %v2858 = vld [vmem:[%s15 + $0x8] sm:$0xf]
        %v2859 = vld [vmem:[%s15 + $0xc] sm:$0xf]
        %v2860 = vld [vmem:[%s15 + $0x10] sm:$0xf]
        %v2861 = vld [vmem:[%s15 + $0x14] sm:$0xf]
        %v2862 = vld [vmem:[%s15 + $0x18] sm:$0xf]
        %v2863 = vld [vmem:[%s15 + $0x1c] sm:$0xf]
        %v2864 = vld [vmem:[%s15 + $0x20] sm:$0xf]
        %v2865 = vld [vmem:[%s15 + $0x24] sm:$0xf]
        %v2866 = vld [vmem:[%s15 + $0x28] sm:$0xf]
        %v2867 = vld [vmem:[%s15 + $0x2c] sm:$0xf]
        %v2868 = vld [vmem:[%s15 + $0x30] sm:$0xf]
        %v2869 = vld [vmem:[%s15 + $0x34] sm:$0xf]
        %v2870 = vld [vmem:[%s15 + $0x38] sm:$0xf]
        %v2871 = vld [vmem:[%s15 + $0x3c] sm:$0xf]
        %v2872 = vld [vmem:[%s15 + $0x40] sm:$0xf]
        %v2873 = vld [vmem:[%s15 + $0x44] sm:$0xf]
        %v2874 = vld [vmem:[%s15 + $0x48] sm:$0xf]
        %v2875 = vld [vmem:[%s15 + $0x4c] sm:$0xf]
        %v2876 = vld [vmem:[%s15 + $0x50] sm:$0xf]
        %v2877 = vld [vmem:[%s15 + $0x54] sm:$0xf]
        %v2878 = vld [vmem:[%s15 + $0x58] sm:$0xf]
        %v2879 = vld [vmem:[%s15 + $0x5c] sm:$0xf]
        %v2880 = vld [vmem:[%s15 + $0x60] sm:$0xf]
        %v2881 = vld [vmem:[%s15 + $0x64] sm:$0xf]
        %v2882 = vld [vmem:[%s15 + $0x68] sm:$0xf]
        %v2883 = vld [vmem:[%s15 + $0x6c] sm:$0xf]
        %v2884 = vld [vmem:[%s15 + $0x70] sm:$0xf]
        %v2885 = vld [vmem:[%s15 + $0x74] sm:$0xf]
        %v2886 = vld [vmem:[%s15 + $0x78] sm:$0xf]
        %v2887 = vld [vmem:[%s15 + $0x7c] sm:$0xf]
        %v2888 = vld [vmem:[%s16] sm:$0x1]
        %v2890 = vlaneseq
        %v2891 = vshrl.u32 %v2890, 7
        %v2892 = vsub.s32 0, %v2891
        %v2893 = vrot.slane %v2888, %v2892
        %v2927 = vunpack.c.l.b16 %v2856
        %v2928 = vunpack.c.l.b16 %v2857
        %v2929 = vunpack.c.l.b16 %v2858
        %v2930 = vunpack.c.l.b16 %v2859
        %v2931 = vunpack.c.l.b16 %v2860
        %v2932 = vunpack.c.l.b16 %v2861
        %v2933 = vunpack.c.l.b16 %v2862
        %v2934 = vunpack.c.l.b16 %v2863
        %v2935 = vunpack.c.l.b16 %v2864
        %v2936 = vunpack.c.l.b16 %v2865
        %v2937 = vunpack.c.l.b16 %v2866
        %v2938 = vunpack.c.l.b16 %v2867
        %v2939 = vunpack.c.l.b16 %v2868
        %v2940 = vunpack.c.l.b16 %v2869
        %v2941 = vunpack.c.l.b16 %v2870
        %v2942 = vunpack.c.l.b16 %v2871
        %v2943 = vunpack.c.l.b16 %v2872
        %v2944 = vunpack.c.l.b16 %v2873
        %v2945 = vunpack.c.l.b16 %v2874
        %v2946 = vunpack.c.l.b16 %v2875
        %v2947 = vunpack.c.l.b16 %v2876
        %v2948 = vunpack.c.l.b16 %v2877
        %v2949 = vunpack.c.l.b16 %v2878
        %v2950 = vunpack.c.l.b16 %v2879
        %v2951 = vunpack.c.l.b16 %v2880
        %v2952 = vunpack.c.l.b16 %v2881
        %v2953 = vunpack.c.l.b16 %v2882
        %v2954 = vunpack.c.l.b16 %v2883
        %v2955 = vunpack.c.l.b16 %v2884
        %v2956 = vunpack.c.l.b16 %v2885
        %v2957 = vunpack.c.l.b16 %v2886
        %v2958 = vunpack.c.l.b16 %v2887
        %v2959 = vpack.c.b16 %v2928, %v2927
        %v2960 = vpack.c.b16 %v2930, %v2929
        %v2961 = vpack.c.b16 %v2932, %v2931
        %v2962 = vpack.c.b16 %v2934, %v2933
        %v2963 = vpack.c.b16 %v2936, %v2935
        %v2964 = vpack.c.b16 %v2938, %v2937
        %v2965 = vpack.c.b16 %v2940, %v2939
        %v2966 = vpack.c.b16 %v2942, %v2941
        %v2967 = vpack.c.b16 %v2944, %v2943
        %v2968 = vpack.c.b16 %v2946, %v2945
        %v2969 = vpack.c.b16 %v2948, %v2947
        %v2970 = vpack.c.b16 %v2950, %v2949
        %v2971 = vpack.c.b16 %v2952, %v2951
        %v2972 = vpack.c.b16 %v2954, %v2953
        %v2973 = vpack.c.b16 %v2956, %v2955
        %v2974 = vpack.c.b16 %v2958, %v2957
        %2991 = vmatprep.subr.bf16.mxu0 0
        %2992 = vmatpush1.bf16.msra.mxu0 %v2959
        %2993 = vmatprep.subr.bf16.mxu0 0
        %2994 = vmatpush1.bf16.msra.mxu0 %v2960
        %2995 = vmatprep.subr.bf16.mxu0 0
        %2996 = vmatpush1.bf16.msra.mxu0 %v2961
        %2997 = vmatprep.subr.bf16.mxu0 0
        %2998 = vmatpush1.bf16.msra.mxu0 %v2962
        %2999 = vmatprep.subr.bf16.mxu0 0
        %3000 = vmatpush1.bf16.msra.mxu0 %v2963
        %3001 = vmatprep.subr.bf16.mxu0 0
        %3002 = vmatpush1.bf16.msra.mxu0 %v2964
        %3003 = vmatprep.subr.bf16.mxu0 0
        %3004 = vmatpush1.bf16.msra.mxu0 %v2965
        %3005 = vmatprep.subr.bf16.mxu0 0
        %3006 = vmatpush1.bf16.msra.mxu0 %v2966
        %3007 = vmatprep.subr.bf16.mxu0 0
        %3008 = vmatpush1.bf16.msra.mxu0 %v2967
        %3009 = vmatprep.subr.bf16.mxu0 0
        %3010 = vmatpush1.bf16.msra.mxu0 %v2968
        %3011 = vmatprep.subr.bf16.mxu0 0
        %3012 = vmatpush1.bf16.msra.mxu0 %v2969
        %3013 = vmatprep.subr.bf16.mxu0 0
        %3014 = vmatpush1.bf16.msra.mxu0 %v2970
        %3015 = vmatprep.subr.bf16.mxu0 0
        %3016 = vmatpush1.bf16.msra.mxu0 %v2971
        %3017 = vmatprep.subr.bf16.mxu0 0
        %3018 = vmatpush1.bf16.msra.mxu0 %v2972
        %3019 = vmatprep.subr.bf16.mxu0 0
        %3020 = vmatpush1.bf16.msra.mxu0 %v2973
        %3021 = vmatprep.subr.bf16.mxu0 0
        %3022 = vmatpush1.bf16.msra.mxu0 %v2974
        %3023 = vmatprep.mubr.bf16.mxu0 %v2855
        %3024 = vmatmul.mubr.bf16.gmra.mrb[0].mxu0 %v2854
        %v3025 = vpop.f32.mrb[0].mxu0
        %v3026 = vadd.f32 %v2893, %v3025
        %v3027 = vpop.f32.mrb[0].mxu0
        %v3028 = vpop.f32.mrb[0].mxu0
        %v3029 = vpop.f32.mrb[0].mxu0
        %3030 = vdwg.mxu0
        %v3031 = vadd.f32 %v2701, %v3026
        %v3032 = vld [vmem:[%s17] sm:$0x1]
        %v3033 = vld [vmem:[%s18] sm:$0x1]
        %3034 = vadd.xlane.f32.xlu0 %v3031
        %v3035 = vpop.xlane.xlu0 %3034
        %v3036 = vmul.f32 %v3035, %v2678
        %v3037 = vsub.f32 %v3031, %v3036
        %v3038 = vmul.f32 %v3037, %v3037
        %3039 = vadd.xlane.f32.xlu0 %v3038
        %v3040 = vpop.xlane.xlu0 %3039
        %v3041 = vmul.f32 %v3040, %v2678
        %v3042 = vadd.f32 %v3041, 1e-05
        %v3043 = vrsqrt.pop %v3042
        %v3044 = vmul.f32 %v3037, %v3043
        %v3046 = vlaneseq
        %v3047 = vshrl.u32 %v3046, 7
        %v3048 = vsub.s32 0, %v3047
        %v3049 = vrot.slane %v3032, %v3048
        %v3051 = vmul.f32 %v3044, %v3049
        %v3053 = vlaneseq
        %v3054 = vshrl.u32 %v3053, 7
        %v3055 = vsub.s32 0, %v3054
        %v3056 = vrot.slane %v3033, %v3055
        %v3058 = vadd.f32 %v3051, %v3056
        %3059 = vst [vmem:[%s619] sm:$0xff] %v3058
        %s3060 = sand.u32 %s455, 1
        %s3061 = scalar_lea.sflag [#allocation3], %s3060
        %s3062 = sand.u32 %s455, 1
        %s3063 = smul.addr %s3062, 8
        %s3064 = scalar_lea.vmem [#allocation2], %s3063
        // Predicated region
        $region97: #{forward.1} parent=95 // pred_check
          %p3065 = pneg %p465
        $region98: #{forward.1} parent=95 // pred_check_branch
          %3067 = sbr.rel (%p3065) target = $region100
        $region99: #{forward.1} parent=95 // pred_region
          %s3069 = ssub.s32 128, 128
          %3070 = vsyncadd %s3061, %s3069
          %s3071 = smul.addr %s33, 128
          %s3072 = scalar_lea.hbm %s19, %s3071
          %s3074 = sshll.u32 %s3064, 4
          %s3075 = int_to_ptr.vmem [resolvable:$true] %s3074
          %3077 = dma.vmem_to_hbm [thread:$0]  %s3075, 128, %s3072, %s3061
        $region100: #{forward.1} parent=95 // pred_fallthru
          _
      $region96: #{forward.1} parent=5 // pred_fallthru
        _
      %p3078 = scmp.le.s32.totalorder 2, %s28
      // Predicated region
      $region101: #{forward.1} parent=5 // pred_check
        %p3079 = pneg %p3078
      $region102: #{forward.1} parent=5 // pred_check_branch
        %3081 = sbr.rel (%p3079) target = $region104
      $region103: #{forward.1} parent=5 // pred_region
        %s3082 = ssub.s32 %s28, 2
        // Predicated region
        $region105: #{forward.1} parent=103 // pred_check
          %p3083 = pneg %p471
        $region106: #{forward.1} parent=103 // pred_check_branch
          %3085 = sbr.rel (%p3083) target = $region108
        $region107: #{forward.1} parent=103 // pred_region
          %s3086 = sand.u32 %s456, 1
          %s3087 = scalar_lea.sflag [#allocation3], %s3086
          %s3088 = sand.u32 %s456, 1
          %s3089 = smul.addr %s3088, 8
          %s3090 = scalar_lea.vmem [#allocation2], %s3089
          %3091 = dma.done %s3087, 128
        $region108: #{forward.1} parent=103 // pred_fallthru
          _
      $region104: #{forward.1} parent=5 // pred_fallthru
        _
    $region6: #{forward.1} parent=1 // loop_footer
      %s32 = sadd.s32 1, %s28
    $region7: #{forward.1} parent=1 // loop_footer_branch
      %27 = sbr.rel target = $region3
    $region8: #{forward.1} parent=1 // loop_exit
      _
    %3092 = vsyncpa [#allocation3], 1
    %s3093 = scalar_lea.sflag [#allocation3], 1
    %3094 = vsyncpa %s3093, 1

</llo_original>
